<compile_context>
chip_gen: v7x
topology: tpu7x:2x2x1
jax: 0.10.0
libtpu: 0.0.40
codegen_flags: <defaults>
</compile_context>

<pallas_src>
import functools

import jax
import jax.numpy as jnp
from jax import lax
from jax.experimental import pallas as pl
from jax.experimental.pallas import tpu as pltpu

BN_EPS = 1e-5
LEAKY_SLOPE = 0.2
MAX_TILE_T = 2048          # interior time-tile cap (multiple of 128)


def _round_up(n, m):
    return ((n + m - 1) // m) * m


def _stage_kernel(x_ref, m_ref,
                  win_ref, bin_ref,
                  wd_ref, bd_ref,
                  w1_ref, b1_ref,
                  bns_ref, bnt_ref,
                  wout_ref, bout_ref,
                  o_ref,
                  *, num_layers, dilation, tile_t, halo, seq_len):
    x = x_ref[0, 0]          # (Dp, Tin) bf16 -- channels on sublanes, time on lanes
    m = m_ref[0, 0]          # (1,  Tin) f32  -- user mask (0 outside the real sequence)
    Fp = win_ref.shape[0]
    Tin = x.shape[1]
    d = dilation             # always d < Tin (Tin >= 128 + 2*num_layers*d)

    # Hoisted iotas / broadcasts (JAX does not CSE them).
    t_local = lax.broadcasted_iota(jnp.int32, (1, Tin), 1)
    # Global validity of each window column, derived from the static sequence length
    # and the tile index -- no extra input array needed.
    t_global = pl.program_id(1) * tile_t - halo + t_local
    valid = (t_global >= 0) & (t_global < seq_len)            # (1, Tin)
    # Local window-wraparound masks for the rolled taps.
    mask_prev = t_local >= d
    mask_next = t_local < Tin - d
    m_f = jnp.broadcast_to(m, (Fp, Tin))

    # Initial 1x1 conv over channels: W_in^T @ x (MXU, f32 accumulate).
    out = jnp.dot(win_ref[...], x, preferred_element_type=jnp.float32) + bin_ref[...]
    # Zero columns outside the real sequence so boundary taps see the Conv1d zero
    # padding.  NB: like the PyTorch reference, the user mask is intentionally NOT
    # applied before layer 1.
    out = jnp.where(valid, out, 0.0)

    # Layer loop fully unrolled (num_layers is small and static): weight indices are
    # static slices and the scheduler can overlap one layer's VPU epilogue with the
    # next layer's MXU work.
    for l in range(num_layers):
        # Zero-masked time shifts (XLU lane rolls).  Rolls/selects stay f32 (v5e has
        # no bf16 VALU); no (3F, T) concat is ever materialized -- each tap is cast
        # to bf16 only as an MXU operand.
        x_prev = jnp.where(mask_prev, pltpu.roll(out, shift=d, axis=1), 0.0)       # out[t-d]
        x_next = jnp.where(mask_next, pltpu.roll(out, shift=Tin - d, axis=1), 0.0) # out[t+d]
        # 3-tap dilated conv as three accumulating MXU matmuls.
        h = jnp.dot(wd_ref[l, 0], x_prev.astype(jnp.bfloat16),
                    preferred_element_type=jnp.float32)
        h = h + jnp.dot(wd_ref[l, 1], out.astype(jnp.bfloat16),
                        preferred_element_type=jnp.float32)
        h = h + jnp.dot(wd_ref[l, 2], x_next.astype(jnp.bfloat16),
                        preferred_element_type=jnp.float32)
        h = h + bd_ref[l]
        h = jnp.maximum(h, 0.0)                                          # ReLU
        h = jnp.dot(w1_ref[l], h.astype(jnp.bfloat16),
                    preferred_element_type=jnp.float32) + b1_ref[l]      # conv_1x1
        h = jnp.maximum(h, LEAKY_SLOPE * h)                              # LeakyReLU(0.2)
        h = h * bns_ref[l] + bnt_ref[l]                                  # eval-mode BN affine
        # Dropout(0.5) is identity at inference.
        out = (out + h) * m_f

    logits = jnp.dot(wout_ref[...], out.astype(jnp.bfloat16),
                     preferred_element_type=jnp.float32) + bout_ref[...]
    logits = logits * m
    # Write only the interior tile (halo columns are recomputed by neighbour tiles).
    o_ref[0] = logits[:, halo:halo + tile_t].astype(o_ref.dtype)


def single_stage_forward(x_ncw, mask, params, *, num_layers, dilation):
    """x_ncw: (B, dim, T) float32, mask: (B, T) float32 -> (B, num_classes, T) float32."""
    B, D, T = x_ncw.shape
    F = params["w_in"].shape[1]
    C = params["w_out"].shape[1]
    Dp, Fp, Cp = _round_up(D, 8), _round_up(F, 8), _round_up(C, 8)

    f32, bf16 = jnp.float32, jnp.bfloat16
    halo = num_layers * dilation            # dependency radius of the whole layer stack

    # Interior time-tile: multiple of 128 (lane-dense stores); capped so ~10 live
    # (Fp, Tin) f32 temps stay far below VMEM even on v7x (64 MiB).  When B == 1 aim
    # for >= 2 tiles so megacore / the second TensorCore gets a parallel axis.
    tile_cap = MAX_TILE_T
    if B == 1 and T > 256:
        tile_cap = min(tile_cap, _round_up(pl.cdiv(T, 2), 128))
    tile_t = max(128, min(_round_up(T, 128), tile_cap))
    nt = pl.cdiv(T, tile_t)
    t_in = tile_t + 2 * halo                # per-tile window incl. recomputed halo
    t_total = nt * tile_t

    # ---- activations: native NCW, channels padded only to a multiple of 8 ----
    x_p = jnp.pad(x_ncw.astype(f32),
                  ((0, 0), (0, Dp - D), (halo, halo + t_total - T))).astype(bf16)
    m_p = jnp.pad(mask.astype(f32), ((0, 0), (halo, halo + t_total - T)))

    # Overlapping halo windows built by a cheap (D-channel) wrapper gather so the
    # kernel only needs plain non-overlapping BlockSpecs.
    # TODO(synk): use element-offset BlockSpecs / manual DMA to read the overlapping
    # windows straight from HBM and drop this small gather pass.
    col = jnp.arange(nt)[:, None] * tile_t + jnp.arange(t_in)[None, :]     # (nt, t_in)
    x_win = jnp.transpose(x_p[:, :, col], (0, 2, 1, 3))                    # (B, nt, Dp, t_in)
    m_win = m_p[:, col][:, :, None, :]                                     # (B, nt, 1, t_in)

    # ---- weights: transposed to (out, in) so they apply as W @ x; pad after folding ----
    def pad2(w, r, c):
        return jnp.pad(w, ((0, r - w.shape[0]), (0, c - w.shape[1])))

    w_in = pad2(params["w_in"].T, Fp, Dp).astype(bf16)                     # (Fp, Dp)
    b_in = pad2(params["b_in"].T, Fp, 1).astype(f32)                       # (Fp, 1)

    w_dil = jnp.transpose(params["w_dil"], (0, 1, 3, 2))                   # (L, 3, out, in)
    w_dil = jnp.pad(w_dil, ((0, 0), (0, 0), (0, Fp - F), (0, Fp - F))).astype(bf16)
    b_dil = jnp.pad(params["b_dil"], ((0, 0), (0, Fp - F)))[:, :, None].astype(f32)

    w_1x1 = jnp.transpose(params["w_1x1"], (0, 2, 1))
    w_1x1 = jnp.pad(w_1x1, ((0, 0), (0, Fp - F), (0, Fp - F))).astype(bf16)
    b_1x1 = jnp.pad(params["b_1x1"], ((0, 0), (0, Fp - F)))[:, :, None].astype(f32)

    # Eval-mode BatchNorm folded to a per-channel affine (it follows the LeakyReLU,
    # so it cannot be folded into conv_1x1 without assuming gamma > 0).
    inv = lax.rsqrt(params["bn_var"] + BN_EPS)
    bn_s = params["bn_gamma"] * inv
    bn_t = params["bn_beta"] - params["bn_mean"] * bn_s
    bn_s = jnp.pad(bn_s, ((0, 0), (0, Fp - F)))[:, :, None].astype(f32)    # (L, Fp, 1)
    bn_t = jnp.pad(bn_t, ((0, 0), (0, Fp - F)))[:, :, None].astype(f32)

    w_out = pad2(params["w_out"].T, Cp, Fp).astype(bf16)                   # (Cp, Fp)
    b_out = pad2(params["b_out"].T, Cp, 1).astype(f32)                     # (Cp, 1)

    weight_args = (w_in, b_in, w_dil, b_dil, w_1x1, b_1x1, bn_s, bn_t, w_out, b_out)

    kernel = functools.partial(_stage_kernel, num_layers=num_layers, dilation=dilation,
                               tile_t=tile_t, halo=halo, seq_len=T)

    # VMEM: request only what is needed (with headroom), never the full physical cap.
    weight_bytes = sum(int(a.size) * a.dtype.itemsize for a in weight_args)
    io_bytes = 2 * (Dp * t_in * 2 + 8 * _round_up(t_in, 128) * 4 + Cp * tile_t * 4)
    act_bytes = 10 * Fp * _round_up(t_in, 128) * 4
    vmem_needed = 2 * weight_bytes + io_bytes + act_bytes
    try:
        vmem_cap = int(pltpu.get_tpu_info().vmem_capacity_bytes)
    except Exception:
        vmem_cap = 64 * 1024 * 1024          # conservative (v7x physical VMEM)
    vmem_limit = int(min(int(0.85 * vmem_cap), max(32 << 20, 2 * vmem_needed)))

    def make_call(single_buffer_weights):
        if single_buffer_weights and hasattr(pl, "Buffered"):
            def weight_spec(arr):
                nd = arr.ndim
                return pl.BlockSpec(arr.shape, lambda b, j, _nd=nd: (0,) * _nd,
                                    pipeline_mode=pl.Buffered(1))
        else:
            def weight_spec(arr):
                nd = arr.ndim
                return pl.BlockSpec(arr.shape, lambda b, j, _nd=nd: (0,) * _nd)
        return pl.pallas_call(
            kernel,
            out_shape=jax.ShapeDtypeStruct((B, Cp, t_total), jnp.float32),
            grid_spec=pltpu.PrefetchScalarGridSpec(
                num_scalar_prefetch=0,
                grid=(B, nt),
                in_specs=[pl.BlockSpec((1, 1, Dp, t_in), lambda b, j: (b, j, 0, 0)),
                          pl.BlockSpec((1, 1, 1, t_in), lambda b, j: (b, j, 0, 0))]
                         + [weight_spec(w) for w in weight_args],
                out_specs=pl.BlockSpec((1, Cp, tile_t), lambda b, j: (b, 0, j)),
            ),
            compiler_params=pltpu.CompilerParams(
                dimension_semantics=("parallel", "parallel"),
                vmem_limit_bytes=vmem_limit),
        )

    try:
        # Grid-invariant weights single-buffered (no wasted second VMEM copy).
        out_ct = make_call(True)(x_win, m_win, *weight_args)
    except Exception:
        # Fallback if this Pallas build rejects pipeline_mode=pl.Buffered(1).
        out_ct = make_call(False)(x_win, m_win, *weight_args)

    # Already NCW: just strip channel / time padding.
    return out_ct[:, :C, :T]


def init_params(key, *, num_layers, num_f_maps, dim, num_classes):
    ks = jax.random.split(key, 8)
    s = 0.1
    return {
        # 1x1 convs stored as (in, out)
        "w_in":  s * jax.random.normal(ks[0], (dim, num_f_maps), jnp.float32),
        "b_in":  s * jax.random.normal(ks[1], (1, num_f_maps), jnp.float32),
        # dilated conv: (L, 3, in, out); tap k offsets time by (k-1)*dilation
        "w_dil": s * jax.random.normal(ks[2], (num_layers, 3, num_f_maps, num_f_maps), jnp.float32),
        "b_dil": s * jax.random.normal(ks[3], (num_layers, num_f_maps), jnp.float32),
        "w_1x1": s * jax.random.normal(ks[4], (num_layers, num_f_maps, num_f_maps), jnp.float32),
        "b_1x1": s * jax.random.normal(ks[5], (num_layers, num_f_maps), jnp.float32),
        # BatchNorm1d: affine random, running stats at PyTorch defaults
        "bn_gamma": 1.0 + s * jax.random.normal(ks[6], (num_layers, num_f_maps), jnp.float32),
        "bn_beta":  s * jax.random.normal(ks[7], (num_layers, num_f_maps), jnp.float32),
        "bn_mean":  jnp.zeros((num_layers, num_f_maps), jnp.float32),
        "bn_var":   jnp.ones((num_layers, num_f_maps), jnp.float32),
        "w_out": s * jax.random.normal(jax.random.fold_in(key, 99), (num_f_maps, num_classes), jnp.float32),
        "b_out": s * jax.random.normal(jax.random.fold_in(key, 100), (1, num_classes), jnp.float32),
    }


def reference_forward(x_ncw, mask, params, *, num_layers, dilation):
    """Pure-JAX f32 reference (channels-last), mirrors the eval-mode PyTorch forward."""
    x = jnp.transpose(x_ncw, (0, 2, 1))
    m = mask[:, :, None]
    T = x.shape[1]
    d = dilation
    out = x @ params["w_in"] + params["b_in"]
    for l in range(num_layers):
        res = out
        x_prev = jnp.pad(out, ((0, 0), (d, 0), (0, 0)))[:, :T, :]
        x_next = jnp.pad(out, ((0, 0), (0, d), (0, 0)))[:, d:, :]
        h = (x_prev @ params["w_dil"][l, 0] + out @ params["w_dil"][l, 1]
             + x_next @ params["w_dil"][l, 2] + params["b_dil"][l])
        h = jnp.maximum(h, 0.0)
        h = h @ params["w_1x1"][l] + params["b_1x1"][l]
        h = jnp.where(h > 0, h, LEAKY_SLOPE * h)
        h = (h - params["bn_mean"][l]) * lax.rsqrt(params["bn_var"][l] + BN_EPS) \
            * params["bn_gamma"][l] + params["bn_beta"][l]
        out = (res + h) * m
    out = (out @ params["w_out"] + params["b_out"]) * m
    return jnp.transpose(out, (0, 2, 1))


if __name__ == "__main__":
    num_layers, num_f_maps, dim, num_classes, dilation = 3, 32, 8, 5, 2
    B, T = 2, 16

    key = jax.random.PRNGKey(0)
    kx, km, kp = jax.random.split(key, 3)
    x = jax.random.normal(kx, (B, dim, T), jnp.float32)          # (batch, dim, window_size)
    mask = (jax.random.uniform(km, (B, T)) > 0.2).astype(jnp.float32)
    params = init_params(kp, num_layers=num_layers, num_f_maps=num_f_maps,
                         dim=dim, num_classes=num_classes)

    out = single_stage_forward(x, mask, params, num_layers=num_layers, dilation=dilation)
    out = jax.block_until_ready(out)

    ref = reference_forward(x, mask, params, num_layers=num_layers, dilation=dilation)
    assert out.shape == (B, num_classes, T)
    # bf16 matmul operands with f32 accumulation -> looser tolerance than the f32 path.
    assert jnp.allclose(out, ref, atol=3e-2, rtol=3e-2), "mismatch vs pure-JAX reference"

    print("KERNEL_OK")
</pallas_src>

<mosaic_0001>
module attributes {stable_mosaic.version = 11 : i64} {
  func.func @_stage_kernel(%arg0: i32, %arg1: i32, %arg2: memref<1x1x8x140xbf16, #tpu.memory_space<vmem>>, %arg3: memref<1x1x1x140xf32, #tpu.memory_space<vmem>>, %arg4: memref<32x8xbf16, #tpu.memory_space<vmem>>, %arg5: memref<32x1xf32, #tpu.memory_space<vmem>>, %arg6: memref<3x3x32x32xbf16, #tpu.memory_space<vmem>>, %arg7: memref<3x32x1xf32, #tpu.memory_space<vmem>>, %arg8: memref<3x32x32xbf16, #tpu.memory_space<vmem>>, %arg9: memref<3x32x1xf32, #tpu.memory_space<vmem>>, %arg10: memref<3x32x1xf32, #tpu.memory_space<vmem>>, %arg11: memref<3x32x1xf32, #tpu.memory_space<vmem>>, %arg12: memref<8x32xbf16, #tpu.memory_space<vmem>>, %arg13: memref<8x1xf32, #tpu.memory_space<vmem>>, %arg14: memref<1x8x128xf32, #tpu.memory_space<vmem>>) attributes {dimension_semantics = [#tpu.dimension_semantics<parallel>, #tpu.dimension_semantics<parallel>], iteration_bounds = array<i64: 2, 1>, scalar_prefetch = 0 : i64, scratch_operands = 0 : i64, tpu.core_type = #tpu.core_type<tc>, window_params = [{transform_indices = @transform_0, window_bounds = array<i64: 1, 1, 8, 140>}, {transform_indices = @transform_1, window_bounds = array<i64: 1, 1, 1, 140>}, {pipeline_mode = #tpu.pipeline_mode<synchronous>, transform_indices = @transform_2, window_bounds = array<i64: 32, 8>}, {pipeline_mode = #tpu.pipeline_mode<synchronous>, transform_indices = @transform_3, window_bounds = array<i64: 32, 1>}, {pipeline_mode = #tpu.pipeline_mode<synchronous>, transform_indices = @transform_4, window_bounds = array<i64: 3, 3, 32, 32>}, {pipeline_mode = #tpu.pipeline_mode<synchronous>, transform_indices = @transform_5, window_bounds = array<i64: 3, 32, 1>}, {pipeline_mode = #tpu.pipeline_mode<synchronous>, transform_indices = @transform_6, window_bounds = array<i64: 3, 32, 32>}, {pipeline_mode = #tpu.pipeline_mode<synchronous>, transform_indices = @transform_7, window_bounds = array<i64: 3, 32, 1>}, {pipeline_mode = #tpu.pipeline_mode<synchronous>, transform_indices = @transform_8, window_bounds = array<i64: 3, 32, 1>}, {pipeline_mode = #tpu.pipeline_mode<synchronous>, transform_indices = @transform_9, window_bounds = array<i64: 3, 32, 1>}, {pipeline_mode = #tpu.pipeline_mode<synchronous>, transform_indices = @transform_10, window_bounds = array<i64: 8, 32>}, {pipeline_mode = #tpu.pipeline_mode<synchronous>, transform_indices = @transform_11, window_bounds = array<i64: 8, 1>}, {transform_indices = @transform_12, window_bounds = array<i64: 1, 8, 128>}]} {
    %c0 = arith.constant 0 : index
    %c0_0 = arith.constant 0 : index
    %c0_1 = arith.constant 0 : index
    %c0_2 = arith.constant 0 : index
    %0 = vector.load %arg2[%c0, %c0_0, %c0_1, %c0_2] : memref<1x1x8x140xbf16, #tpu.memory_space<vmem>>, vector<1x1x8x140xbf16>
    %1 = vector.shape_cast %0 : vector<1x1x8x140xbf16> to vector<8x140xbf16>
    %c0_3 = arith.constant 0 : index
    %c0_4 = arith.constant 0 : index
    %c0_5 = arith.constant 0 : index
    %c0_6 = arith.constant 0 : index
    %2 = vector.load %arg3[%c0_3, %c0_4, %c0_5, %c0_6] : memref<1x1x1x140xf32, #tpu.memory_space<vmem>>, vector<1x1x1x140xf32>
    %3 = vector.shape_cast %2 : vector<1x1x1x140xf32> to vector<1x140xf32>
    %4 = tpu.iota {dimensions = array<i32: 1>} : vector<1x140xi32>
    %c128_i32 = arith.constant 128 : i32
    %5 = arith.muli %arg1, %c128_i32 : i32
    %c6_i32 = arith.constant 6 : i32
    %6 = arith.subi %5, %c6_i32 : i32
    %7 = vector.broadcast %6 : i32 to vector<1x140xi32>
    %8 = arith.addi %7, %4 : vector<1x140xi32>
    %c0_i32 = arith.constant 0 : i32
    %9 = vector.broadcast %c0_i32 : i32 to vector<1x140xi32>
    %10 = arith.cmpi sge, %8, %9 : vector<1x140xi32>
    %c16_i32 = arith.constant 16 : i32
    %11 = vector.broadcast %c16_i32 : i32 to vector<1x140xi32>
    %12 = arith.cmpi slt, %8, %11 : vector<1x140xi32>
    %13 = arith.andi %10, %12 : vector<1x140xi1>
    %c2_i32 = arith.constant 2 : i32
    %14 = vector.broadcast %c2_i32 : i32 to vector<1x140xi32>
    %15 = arith.cmpi sge, %4, %14 : vector<1x140xi32>
    %c138_i32 = arith.constant 138 : i32
    %16 = vector.broadcast %c138_i32 : i32 to vector<1x140xi32>
    %17 = arith.cmpi slt, %4, %16 : vector<1x140xi32>
    %18 = vector.shape_cast %3 : vector<1x140xf32> to vector<1x140xf32>
    %19 = vector.broadcast %18 : vector<1x140xf32> to vector<32x140xf32>
    %c0_7 = arith.constant 0 : index
    %c0_8 = arith.constant 0 : index
    %20 = vector.load %arg4[%c0_7, %c0_8] : memref<32x8xbf16, #tpu.memory_space<vmem>>, vector<32x8xbf16>
    %cst = arith.constant dense<0.000000e+00> : vector<32x140xf32>
    %21 = tpu.matmul %20, %1, %cst {dimension_numbers = #tpu.dot_dimension_numbers<[1], [0], [0], [1], [0, 0, 1, 1], [], []>} : vector<32x8xbf16>, vector<8x140xbf16>, vector<32x140xf32> -> vector<32x140xf32>
    %c0_9 = arith.constant 0 : index
    %c0_10 = arith.constant 0 : index
    %22 = vector.load %arg5[%c0_9, %c0_10] : memref<32x1xf32, #tpu.memory_space<vmem>>, vector<32x1xf32>
    %23 = vector.broadcast %22 : vector<32x1xf32> to vector<32x140xf32>
    %24 = arith.addf %21, %23 : vector<32x140xf32>
    %cst_11 = arith.constant 0.000000e+00 : f32
    %25 = vector.shape_cast %13 : vector<1x140xi1> to vector<1x140xi1>
    %26 = vector.broadcast %25 : vector<1x140xi1> to vector<32x140xi1>
    %27 = vector.broadcast %cst_11 : f32 to vector<32x140xf32>
    %28 = arith.select %26, %24, %27 : vector<32x140xi1>, vector<32x140xf32>
    %c2_i32_12 = arith.constant 2 : i32
    %29 = tpu.dynamic_rotate %28 by %c2_i32_12 dim 1 : vector<32x140xf32>, i32 -> vector<32x140xf32>
    %cst_13 = arith.constant 0.000000e+00 : f32
    %30 = vector.shape_cast %15 : vector<1x140xi1> to vector<1x140xi1>
    %31 = vector.broadcast %30 : vector<1x140xi1> to vector<32x140xi1>
    %32 = vector.broadcast %cst_13 : f32 to vector<32x140xf32>
    %33 = arith.select %31, %29, %32 : vector<32x140xi1>, vector<32x140xf32>
    %c138_i32_14 = arith.constant 138 : i32
    %34 = tpu.dynamic_rotate %28 by %c138_i32_14 dim 1 : vector<32x140xf32>, i32 -> vector<32x140xf32>
    %cst_15 = arith.constant 0.000000e+00 : f32
    %35 = vector.shape_cast %17 : vector<1x140xi1> to vector<1x140xi1>
    %36 = vector.broadcast %35 : vector<1x140xi1> to vector<32x140xi1>
    %37 = vector.broadcast %cst_15 : f32 to vector<32x140xf32>
    %38 = arith.select %36, %34, %37 : vector<32x140xi1>, vector<32x140xf32>
    %c0_16 = arith.constant 0 : index
    %c0_17 = arith.constant 0 : index
    %c0_18 = arith.constant 0 : index
    %c0_19 = arith.constant 0 : index
    %39 = vector.load %arg6[%c0_16, %c0_17, %c0_18, %c0_19] : memref<3x3x32x32xbf16, #tpu.memory_space<vmem>>, vector<1x1x32x32xbf16>
    %40 = vector.shape_cast %39 : vector<1x1x32x32xbf16> to vector<32x32xbf16>
    %41 = arith.truncf %33 : vector<32x140xf32> to vector<32x140xbf16>
    %cst_20 = arith.constant dense<0.000000e+00> : vector<32x140xf32>
    %42 = tpu.matmul %40, %41, %cst_20 {dimension_numbers = #tpu.dot_dimension_numbers<[1], [0], [0], [1], [0, 0, 1, 1], [], []>} : vector<32x32xbf16>, vector<32x140xbf16>, vector<32x140xf32> -> vector<32x140xf32>
    %c0_21 = arith.constant 0 : index
    %c1 = arith.constant 1 : index
    %c0_22 = arith.constant 0 : index
    %c0_23 = arith.constant 0 : index
    %43 = vector.load %arg6[%c0_21, %c1, %c0_22, %c0_23] : memref<3x3x32x32xbf16, #tpu.memory_space<vmem>>, vector<1x1x32x32xbf16>
    %44 = vector.shape_cast %43 : vector<1x1x32x32xbf16> to vector<32x32xbf16>
    %45 = arith.truncf %28 : vector<32x140xf32> to vector<32x140xbf16>
    %cst_24 = arith.constant dense<0.000000e+00> : vector<32x140xf32>
    %46 = tpu.matmul %44, %45, %cst_24 {dimension_numbers = #tpu.dot_dimension_numbers<[1], [0], [0], [1], [0, 0, 1, 1], [], []>} : vector<32x32xbf16>, vector<32x140xbf16>, vector<32x140xf32> -> vector<32x140xf32>
    %47 = arith.addf %42, %46 : vector<32x140xf32>
    %c0_25 = arith.constant 0 : index
    %c2 = arith.constant 2 : index
    %c0_26 = arith.constant 0 : index
    %c0_27 = arith.constant 0 : index
    %48 = vector.load %arg6[%c0_25, %c2, %c0_26, %c0_27] : memref<3x3x32x32xbf16, #tpu.memory_space<vmem>>, vector<1x1x32x32xbf16>
    %49 = vector.shape_cast %48 : vector<1x1x32x32xbf16> to vector<32x32xbf16>
    %50 = arith.truncf %38 : vector<32x140xf32> to vector<32x140xbf16>
    %cst_28 = arith.constant dense<0.000000e+00> : vector<32x140xf32>
    %51 = tpu.matmul %49, %50, %cst_28 {dimension_numbers = #tpu.dot_dimension_numbers<[1], [0], [0], [1], [0, 0, 1, 1], [], []>} : vector<32x32xbf16>, vector<32x140xbf16>, vector<32x140xf32> -> vector<32x140xf32>
    %52 = arith.addf %47, %51 : vector<32x140xf32>
    %c0_29 = arith.constant 0 : index
    %c0_30 = arith.constant 0 : index
    %c0_31 = arith.constant 0 : index
    %53 = vector.load %arg7[%c0_29, %c0_30, %c0_31] : memref<3x32x1xf32, #tpu.memory_space<vmem>>, vector<1x32x1xf32>
    %54 = vector.shape_cast %53 : vector<1x32x1xf32> to vector<32x1xf32>
    %55 = vector.broadcast %54 : vector<32x1xf32> to vector<32x140xf32>
    %56 = arith.addf %52, %55 : vector<32x140xf32>
    %cst_32 = arith.constant 0.000000e+00 : f32
    %57 = vector.broadcast %cst_32 : f32 to vector<32x140xf32>
    %58 = arith.maximumf %56, %57 : vector<32x140xf32>
    %c0_33 = arith.constant 0 : index
    %c0_34 = arith.constant 0 : index
    %c0_35 = arith.constant 0 : index
    %59 = vector.load %arg8[%c0_33, %c0_34, %c0_35] : memref<3x32x32xbf16, #tpu.memory_space<vmem>>, vector<1x32x32xbf16>
    %60 = vector.shape_cast %59 : vector<1x32x32xbf16> to vector<32x32xbf16>
    %61 = arith.truncf %58 : vector<32x140xf32> to vector<32x140xbf16>
    %cst_36 = arith.constant dense<0.000000e+00> : vector<32x140xf32>
    %62 = tpu.matmul %60, %61, %cst_36 {dimension_numbers = #tpu.dot_dimension_numbers<[1], [0], [0], [1], [0, 0, 1, 1], [], []>} : vector<32x32xbf16>, vector<32x140xbf16>, vector<32x140xf32> -> vector<32x140xf32>
    %c0_37 = arith.constant 0 : index
    %c0_38 = arith.constant 0 : index
    %c0_39 = arith.constant 0 : index
    %63 = vector.load %arg9[%c0_37, %c0_38, %c0_39] : memref<3x32x1xf32, #tpu.memory_space<vmem>>, vector<1x32x1xf32>
    %64 = vector.shape_cast %63 : vector<1x32x1xf32> to vector<32x1xf32>
    %65 = vector.broadcast %64 : vector<32x1xf32> to vector<32x140xf32>
    %66 = arith.addf %62, %65 : vector<32x140xf32>
    %cst_40 = arith.constant 2.000000e-01 : f32
    %67 = vector.broadcast %cst_40 : f32 to vector<32x140xf32>
    %68 = arith.mulf %67, %66 : vector<32x140xf32>
    %69 = arith.maximumf %66, %68 : vector<32x140xf32>
    %c0_41 = arith.constant 0 : index
    %c0_42 = arith.constant 0 : index
    %c0_43 = arith.constant 0 : index
    %70 = vector.load %arg10[%c0_41, %c0_42, %c0_43] : memref<3x32x1xf32, #tpu.memory_space<vmem>>, vector<1x32x1xf32>
    %71 = vector.shape_cast %70 : vector<1x32x1xf32> to vector<32x1xf32>
    %72 = vector.broadcast %71 : vector<32x1xf32> to vector<32x140xf32>
    %73 = arith.mulf %69, %72 : vector<32x140xf32>
    %c0_44 = arith.constant 0 : index
    %c0_45 = arith.constant 0 : index
    %c0_46 = arith.constant 0 : index
    %74 = vector.load %arg11[%c0_44, %c0_45, %c0_46] : memref<3x32x1xf32, #tpu.memory_space<vmem>>, vector<1x32x1xf32>
    %75 = vector.shape_cast %74 : vector<1x32x1xf32> to vector<32x1xf32>
    %76 = vector.broadcast %75 : vector<32x1xf32> to vector<32x140xf32>
    %77 = arith.addf %73, %76 : vector<32x140xf32>
    %78 = arith.addf %28, %77 : vector<32x140xf32>
    %79 = arith.mulf %78, %19 : vector<32x140xf32>
    %c2_i32_47 = arith.constant 2 : i32
    %80 = tpu.dynamic_rotate %79 by %c2_i32_47 dim 1 : vector<32x140xf32>, i32 -> vector<32x140xf32>
    %cst_48 = arith.constant 0.000000e+00 : f32
    %81 = vector.shape_cast %15 : vector<1x140xi1> to vector<1x140xi1>
    %82 = vector.broadcast %81 : vector<1x140xi1> to vector<32x140xi1>
    %83 = vector.broadcast %cst_48 : f32 to vector<32x140xf32>
    %84 = arith.select %82, %80, %83 : vector<32x140xi1>, vector<32x140xf32>
    %c138_i32_49 = arith.constant 138 : i32
    %85 = tpu.dynamic_rotate %79 by %c138_i32_49 dim 1 : vector<32x140xf32>, i32 -> vector<32x140xf32>
    %cst_50 = arith.constant 0.000000e+00 : f32
    %86 = vector.shape_cast %17 : vector<1x140xi1> to vector<1x140xi1>
    %87 = vector.broadcast %86 : vector<1x140xi1> to vector<32x140xi1>
    %88 = vector.broadcast %cst_50 : f32 to vector<32x140xf32>
    %89 = arith.select %87, %85, %88 : vector<32x140xi1>, vector<32x140xf32>
    %c1_51 = arith.constant 1 : index
    %c0_52 = arith.constant 0 : index
    %c0_53 = arith.constant 0 : index
    %c0_54 = arith.constant 0 : index
    %90 = vector.load %arg6[%c1_51, %c0_52, %c0_53, %c0_54] : memref<3x3x32x32xbf16, #tpu.memory_space<vmem>>, vector<1x1x32x32xbf16>
    %91 = vector.shape_cast %90 : vector<1x1x32x32xbf16> to vector<32x32xbf16>
    %92 = arith.truncf %84 : vector<32x140xf32> to vector<32x140xbf16>
    %cst_55 = arith.constant dense<0.000000e+00> : vector<32x140xf32>
    %93 = tpu.matmul %91, %92, %cst_55 {dimension_numbers = #tpu.dot_dimension_numbers<[1], [0], [0], [1], [0, 0, 1, 1], [], []>} : vector<32x32xbf16>, vector<32x140xbf16>, vector<32x140xf32> -> vector<32x140xf32>
    %c1_56 = arith.constant 1 : index
    %c1_57 = arith.constant 1 : index
    %c0_58 = arith.constant 0 : index
    %c0_59 = arith.constant 0 : index
    %94 = vector.load %arg6[%c1_56, %c1_57, %c0_58, %c0_59] : memref<3x3x32x32xbf16, #tpu.memory_space<vmem>>, vector<1x1x32x32xbf16>
    %95 = vector.shape_cast %94 : vector<1x1x32x32xbf16> to vector<32x32xbf16>
    %96 = arith.truncf %79 : vector<32x140xf32> to vector<32x140xbf16>
    %cst_60 = arith.constant dense<0.000000e+00> : vector<32x140xf32>
    %97 = tpu.matmul %95, %96, %cst_60 {dimension_numbers = #tpu.dot_dimension_numbers<[1], [0], [0], [1], [0, 0, 1, 1], [], []>} : vector<32x32xbf16>, vector<32x140xbf16>, vector<32x140xf32> -> vector<32x140xf32>
    %98 = arith.addf %93, %97 : vector<32x140xf32>
    %c1_61 = arith.constant 1 : index
    %c2_62 = arith.constant 2 : index
    %c0_63 = arith.constant 0 : index
    %c0_64 = arith.constant 0 : index
    %99 = vector.load %arg6[%c1_61, %c2_62, %c0_63, %c0_64] : memref<3x3x32x32xbf16, #tpu.memory_space<vmem>>, vector<1x1x32x32xbf16>
    %100 = vector.shape_cast %99 : vector<1x1x32x32xbf16> to vector<32x32xbf16>
    %101 = arith.truncf %89 : vector<32x140xf32> to vector<32x140xbf16>
    %cst_65 = arith.constant dense<0.000000e+00> : vector<32x140xf32>
    %102 = tpu.matmul %100, %101, %cst_65 {dimension_numbers = #tpu.dot_dimension_numbers<[1], [0], [0], [1], [0, 0, 1, 1], [], []>} : vector<32x32xbf16>, vector<32x140xbf16>, vector<32x140xf32> -> vector<32x140xf32>
    %103 = arith.addf %98, %102 : vector<32x140xf32>
    %c1_66 = arith.constant 1 : index
    %c0_67 = arith.constant 0 : index
    %c0_68 = arith.constant 0 : index
    %104 = vector.load %arg7[%c1_66, %c0_67, %c0_68] : memref<3x32x1xf32, #tpu.memory_space<vmem>>, vector<1x32x1xf32>
    %105 = vector.shape_cast %104 : vector<1x32x1xf32> to vector<32x1xf32>
    %106 = vector.broadcast %105 : vector<32x1xf32> to vector<32x140xf32>
    %107 = arith.addf %103, %106 : vector<32x140xf32>
    %cst_69 = arith.constant 0.000000e+00 : f32
    %108 = vector.broadcast %cst_69 : f32 to vector<32x140xf32>
    %109 = arith.maximumf %107, %108 : vector<32x140xf32>
    %c1_70 = arith.constant 1 : index
    %c0_71 = arith.constant 0 : index
    %c0_72 = arith.constant 0 : index
    %110 = vector.load %arg8[%c1_70, %c0_71, %c0_72] : memref<3x32x32xbf16, #tpu.memory_space<vmem>>, vector<1x32x32xbf16>
    %111 = vector.shape_cast %110 : vector<1x32x32xbf16> to vector<32x32xbf16>
    %112 = arith.truncf %109 : vector<32x140xf32> to vector<32x140xbf16>
    %cst_73 = arith.constant dense<0.000000e+00> : vector<32x140xf32>
    %113 = tpu.matmul %111, %112, %cst_73 {dimension_numbers = #tpu.dot_dimension_numbers<[1], [0], [0], [1], [0, 0, 1, 1], [], []>} : vector<32x32xbf16>, vector<32x140xbf16>, vector<32x140xf32> -> vector<32x140xf32>
    %c1_74 = arith.constant 1 : index
    %c0_75 = arith.constant 0 : index
    %c0_76 = arith.constant 0 : index
    %114 = vector.load %arg9[%c1_74, %c0_75, %c0_76] : memref<3x32x1xf32, #tpu.memory_space<vmem>>, vector<1x32x1xf32>
    %115 = vector.shape_cast %114 : vector<1x32x1xf32> to vector<32x1xf32>
    %116 = vector.broadcast %115 : vector<32x1xf32> to vector<32x140xf32>
    %117 = arith.addf %113, %116 : vector<32x140xf32>
    %cst_77 = arith.constant 2.000000e-01 : f32
    %118 = vector.broadcast %cst_77 : f32 to vector<32x140xf32>
    %119 = arith.mulf %118, %117 : vector<32x140xf32>
    %120 = arith.maximumf %117, %119 : vector<32x140xf32>
    %c1_78 = arith.constant 1 : index
    %c0_79 = arith.constant 0 : index
    %c0_80 = arith.constant 0 : index
    %121 = vector.load %arg10[%c1_78, %c0_79, %c0_80] : memref<3x32x1xf32, #tpu.memory_space<vmem>>, vector<1x32x1xf32>
    %122 = vector.shape_cast %121 : vector<1x32x1xf32> to vector<32x1xf32>
    %123 = vector.broadcast %122 : vector<32x1xf32> to vector<32x140xf32>
    %124 = arith.mulf %120, %123 : vector<32x140xf32>
    %c1_81 = arith.constant 1 : index
    %c0_82 = arith.constant 0 : index
    %c0_83 = arith.constant 0 : index
    %125 = vector.load %arg11[%c1_81, %c0_82, %c0_83] : memref<3x32x1xf32, #tpu.memory_space<vmem>>, vector<1x32x1xf32>
    %126 = vector.shape_cast %125 : vector<1x32x1xf32> to vector<32x1xf32>
    %127 = vector.broadcast %126 : vector<32x1xf32> to vector<32x140xf32>
    %128 = arith.addf %124, %127 : vector<32x140xf32>
    %129 = arith.addf %79, %128 : vector<32x140xf32>
    %130 = arith.mulf %129, %19 : vector<32x140xf32>
    %c2_i32_84 = arith.constant 2 : i32
    %131 = tpu.dynamic_rotate %130 by %c2_i32_84 dim 1 : vector<32x140xf32>, i32 -> vector<32x140xf32>
    %cst_85 = arith.constant 0.000000e+00 : f32
    %132 = vector.shape_cast %15 : vector<1x140xi1> to vector<1x140xi1>
    %133 = vector.broadcast %132 : vector<1x140xi1> to vector<32x140xi1>
    %134 = vector.broadcast %cst_85 : f32 to vector<32x140xf32>
    %135 = arith.select %133, %131, %134 : vector<32x140xi1>, vector<32x140xf32>
    %c138_i32_86 = arith.constant 138 : i32
    %136 = tpu.dynamic_rotate %130 by %c138_i32_86 dim 1 : vector<32x140xf32>, i32 -> vector<32x140xf32>
    %cst_87 = arith.constant 0.000000e+00 : f32
    %137 = vector.shape_cast %17 : vector<1x140xi1> to vector<1x140xi1>
    %138 = vector.broadcast %137 : vector<1x140xi1> to vector<32x140xi1>
    %139 = vector.broadcast %cst_87 : f32 to vector<32x140xf32>
    %140 = arith.select %138, %136, %139 : vector<32x140xi1>, vector<32x140xf32>
    %c2_88 = arith.constant 2 : index
    %c0_89 = arith.constant 0 : index
    %c0_90 = arith.constant 0 : index
    %c0_91 = arith.constant 0 : index
    %141 = vector.load %arg6[%c2_88, %c0_89, %c0_90, %c0_91] : memref<3x3x32x32xbf16, #tpu.memory_space<vmem>>, vector<1x1x32x32xbf16>
    %142 = vector.shape_cast %141 : vector<1x1x32x32xbf16> to vector<32x32xbf16>
    %143 = arith.truncf %135 : vector<32x140xf32> to vector<32x140xbf16>
    %cst_92 = arith.constant dense<0.000000e+00> : vector<32x140xf32>
    %144 = tpu.matmul %142, %143, %cst_92 {dimension_numbers = #tpu.dot_dimension_numbers<[1], [0], [0], [1], [0, 0, 1, 1], [], []>} : vector<32x32xbf16>, vector<32x140xbf16>, vector<32x140xf32> -> vector<32x140xf32>
    %c2_93 = arith.constant 2 : index
    %c1_94 = arith.constant 1 : index
    %c0_95 = arith.constant 0 : index
    %c0_96 = arith.constant 0 : index
    %145 = vector.load %arg6[%c2_93, %c1_94, %c0_95, %c0_96] : memref<3x3x32x32xbf16, #tpu.memory_space<vmem>>, vector<1x1x32x32xbf16>
    %146 = vector.shape_cast %145 : vector<1x1x32x32xbf16> to vector<32x32xbf16>
    %147 = arith.truncf %130 : vector<32x140xf32> to vector<32x140xbf16>
    %cst_97 = arith.constant dense<0.000000e+00> : vector<32x140xf32>
    %148 = tpu.matmul %146, %147, %cst_97 {dimension_numbers = #tpu.dot_dimension_numbers<[1], [0], [0], [1], [0, 0, 1, 1], [], []>} : vector<32x32xbf16>, vector<32x140xbf16>, vector<32x140xf32> -> vector<32x140xf32>
    %149 = arith.addf %144, %148 : vector<32x140xf32>
    %c2_98 = arith.constant 2 : index
    %c2_99 = arith.constant 2 : index
    %c0_100 = arith.constant 0 : index
    %c0_101 = arith.constant 0 : index
    %150 = vector.load %arg6[%c2_98, %c2_99, %c0_100, %c0_101] : memref<3x3x32x32xbf16, #tpu.memory_space<vmem>>, vector<1x1x32x32xbf16>
    %151 = vector.shape_cast %150 : vector<1x1x32x32xbf16> to vector<32x32xbf16>
    %152 = arith.truncf %140 : vector<32x140xf32> to vector<32x140xbf16>
    %cst_102 = arith.constant dense<0.000000e+00> : vector<32x140xf32>
    %153 = tpu.matmul %151, %152, %cst_102 {dimension_numbers = #tpu.dot_dimension_numbers<[1], [0], [0], [1], [0, 0, 1, 1], [], []>} : vector<32x32xbf16>, vector<32x140xbf16>, vector<32x140xf32> -> vector<32x140xf32>
    %154 = arith.addf %149, %153 : vector<32x140xf32>
    %c2_103 = arith.constant 2 : index
    %c0_104 = arith.constant 0 : index
    %c0_105 = arith.constant 0 : index
    %155 = vector.load %arg7[%c2_103, %c0_104, %c0_105] : memref<3x32x1xf32, #tpu.memory_space<vmem>>, vector<1x32x1xf32>
    %156 = vector.shape_cast %155 : vector<1x32x1xf32> to vector<32x1xf32>
    %157 = vector.broadcast %156 : vector<32x1xf32> to vector<32x140xf32>
    %158 = arith.addf %154, %157 : vector<32x140xf32>
    %cst_106 = arith.constant 0.000000e+00 : f32
    %159 = vector.broadcast %cst_106 : f32 to vector<32x140xf32>
    %160 = arith.maximumf %158, %159 : vector<32x140xf32>
    %c2_107 = arith.constant 2 : index
    %c0_108 = arith.constant 0 : index
    %c0_109 = arith.constant 0 : index
    %161 = vector.load %arg8[%c2_107, %c0_108, %c0_109] : memref<3x32x32xbf16, #tpu.memory_space<vmem>>, vector<1x32x32xbf16>
    %162 = vector.shape_cast %161 : vector<1x32x32xbf16> to vector<32x32xbf16>
    %163 = arith.truncf %160 : vector<32x140xf32> to vector<32x140xbf16>
    %cst_110 = arith.constant dense<0.000000e+00> : vector<32x140xf32>
    %164 = tpu.matmul %162, %163, %cst_110 {dimension_numbers = #tpu.dot_dimension_numbers<[1], [0], [0], [1], [0, 0, 1, 1], [], []>} : vector<32x32xbf16>, vector<32x140xbf16>, vector<32x140xf32> -> vector<32x140xf32>
    %c2_111 = arith.constant 2 : index
    %c0_112 = arith.constant 0 : index
    %c0_113 = arith.constant 0 : index
    %165 = vector.load %arg9[%c2_111, %c0_112, %c0_113] : memref<3x32x1xf32, #tpu.memory_space<vmem>>, vector<1x32x1xf32>
    %166 = vector.shape_cast %165 : vector<1x32x1xf32> to vector<32x1xf32>
    %167 = vector.broadcast %166 : vector<32x1xf32> to vector<32x140xf32>
    %168 = arith.addf %164, %167 : vector<32x140xf32>
    %cst_114 = arith.constant 2.000000e-01 : f32
    %169 = vector.broadcast %cst_114 : f32 to vector<32x140xf32>
    %170 = arith.mulf %169, %168 : vector<32x140xf32>
    %171 = arith.maximumf %168, %170 : vector<32x140xf32>
    %c2_115 = arith.constant 2 : index
    %c0_116 = arith.constant 0 : index
    %c0_117 = arith.constant 0 : index
    %172 = vector.load %arg10[%c2_115, %c0_116, %c0_117] : memref<3x32x1xf32, #tpu.memory_space<vmem>>, vector<1x32x1xf32>
    %173 = vector.shape_cast %172 : vector<1x32x1xf32> to vector<32x1xf32>
    %174 = vector.broadcast %173 : vector<32x1xf32> to vector<32x140xf32>
    %175 = arith.mulf %171, %174 : vector<32x140xf32>
    %c2_118 = arith.constant 2 : index
    %c0_119 = arith.constant 0 : index
    %c0_120 = arith.constant 0 : index
    %176 = vector.load %arg11[%c2_118, %c0_119, %c0_120] : memref<3x32x1xf32, #tpu.memory_space<vmem>>, vector<1x32x1xf32>
    %177 = vector.shape_cast %176 : vector<1x32x1xf32> to vector<32x1xf32>
    %178 = vector.broadcast %177 : vector<32x1xf32> to vector<32x140xf32>
    %179 = arith.addf %175, %178 : vector<32x140xf32>
    %180 = arith.addf %130, %179 : vector<32x140xf32>
    %181 = arith.mulf %180, %19 : vector<32x140xf32>
    %c0_121 = arith.constant 0 : index
    %c0_122 = arith.constant 0 : index
    %182 = vector.load %arg12[%c0_121, %c0_122] : memref<8x32xbf16, #tpu.memory_space<vmem>>, vector<8x32xbf16>
    %183 = arith.truncf %181 : vector<32x140xf32> to vector<32x140xbf16>
    %cst_123 = arith.constant dense<0.000000e+00> : vector<8x140xf32>
    %184 = tpu.matmul %182, %183, %cst_123 {dimension_numbers = #tpu.dot_dimension_numbers<[1], [0], [0], [1], [0, 0, 1, 1], [], []>} : vector<8x32xbf16>, vector<32x140xbf16>, vector<8x140xf32> -> vector<8x140xf32>
    %c0_124 = arith.constant 0 : index
    %c0_125 = arith.constant 0 : index
    %185 = vector.load %arg13[%c0_124, %c0_125] : memref<8x1xf32, #tpu.memory_space<vmem>>, vector<8x1xf32>
    %186 = vector.broadcast %185 : vector<8x1xf32> to vector<8x140xf32>
    %187 = arith.addf %184, %186 : vector<8x140xf32>
    %188 = vector.broadcast %3 : vector<1x140xf32> to vector<8x140xf32>
    %189 = arith.mulf %187, %188 : vector<8x140xf32>
    %190 = vector.extract_strided_slice %189 {offsets = [0, 6], sizes = [8, 128], strides = [1, 1]} : vector<8x140xf32> to vector<8x128xf32>
    %c0_126 = arith.constant 0 : index
    %c0_127 = arith.constant 0 : index
    %c0_128 = arith.constant 0 : index
    %191 = vector.load %arg14[%c0_126, %c0_127, %c0_128] : memref<1x8x128xf32, #tpu.memory_space<vmem>>, vector<1x8x128xf32>
    %192 = vector.shape_cast %191 : vector<1x8x128xf32> to vector<8x128xf32>
    %193 = vector.shape_cast %190 : vector<8x128xf32> to vector<1x8x128xf32>
    tpu.vector_store %arg14[%c0_126, %c0_127, %c0_128], %193 {strides = array<i32>} : memref<1x8x128xf32, #tpu.memory_space<vmem>>, vector<1x8x128xf32>,
    return
  }
  func.func @transform_0(%arg0: i32, %arg1: i32) -> (i32, i32, i32, i32) {
    %c0_i32 = arith.constant 0 : i32
    %c0_i32_0 = arith.constant 0 : i32
    %c0_i32_1 = arith.constant 0 : i32
    return %arg0, %arg1, %c0_i32, %c0_i32_0 : i32, i32, i32, i32
  }
  func.func @transform_1(%arg0: i32, %arg1: i32) -> (i32, i32, i32, i32) {
    %c0_i32 = arith.constant 0 : i32
    %c0_i32_0 = arith.constant 0 : i32
    %c0_i32_1 = arith.constant 0 : i32
    return %arg0, %arg1, %c0_i32, %c0_i32_0 : i32, i32, i32, i32
  }
  func.func @transform_2(%arg0: i32, %arg1: i32) -> (i32, i32) {
    %c0_i32 = arith.constant 0 : i32
    %c0_i32_0 = arith.constant 0 : i32
    %c0_i32_1 = arith.constant 0 : i32
    return %c0_i32, %c0_i32_0 : i32, i32
  }
  func.func @transform_3(%arg0: i32, %arg1: i32) -> (i32, i32) {
    %c0_i32 = arith.constant 0 : i32
    %c0_i32_0 = arith.constant 0 : i32
    %c0_i32_1 = arith.constant 0 : i32
    return %c0_i32, %c0_i32_0 : i32, i32
  }
  func.func @transform_4(%arg0: i32, %arg1: i32) -> (i32, i32, i32, i32) {
    %c0_i32 = arith.constant 0 : i32
    %c0_i32_0 = arith.constant 0 : i32
    %c0_i32_1 = arith.constant 0 : i32
    %c0_i32_2 = arith.constant 0 : i32
    %c0_i32_3 = arith.constant 0 : i32
    return %c0_i32, %c0_i32_0, %c0_i32_1, %c0_i32_2 : i32, i32, i32, i32
  }
  func.func @transform_5(%arg0: i32, %arg1: i32) -> (i32, i32, i32) {
    %c0_i32 = arith.constant 0 : i32
    %c0_i32_0 = arith.constant 0 : i32
    %c0_i32_1 = arith.constant 0 : i32
    %c0_i32_2 = arith.constant 0 : i32
    return %c0_i32, %c0_i32_0, %c0_i32_1 : i32, i32, i32
  }
  func.func @transform_6(%arg0: i32, %arg1: i32) -> (i32, i32, i32) {
    %c0_i32 = arith.constant 0 : i32
    %c0_i32_0 = arith.constant 0 : i32
    %c0_i32_1 = arith.constant 0 : i32
    %c0_i32_2 = arith.constant 0 : i32
    return %c0_i32, %c0_i32_0, %c0_i32_1 : i32, i32, i32
  }
  func.func @transform_7(%arg0: i32, %arg1: i32) -> (i32, i32, i32) {
    %c0_i32 = arith.constant 0 : i32
    %c0_i32_0 = arith.constant 0 : i32
    %c0_i32_1 = arith.constant 0 : i32
    %c0_i32_2 = arith.constant 0 : i32
    return %c0_i32, %c0_i32_0, %c0_i32_1 : i32, i32, i32
  }
  func.func @transform_8(%arg0: i32, %arg1: i32) -> (i32, i32, i32) {
    %c0_i32 = arith.constant 0 : i32
    %c0_i32_0 = arith.constant 0 : i32
    %c0_i32_1 = arith.constant 0 : i32
    %c0_i32_2 = arith.constant 0 : i32
    return %c0_i32, %c0_i32_0, %c0_i32_1 : i32, i32, i32
  }
  func.func @transform_9(%arg0: i32, %arg1: i32) -> (i32, i32, i32) {
    %c0_i32 = arith.constant 0 : i32
    %c0_i32_0 = arith.constant 0 : i32
    %c0_i32_1 = arith.constant 0 : i32
    %c0_i32_2 = arith.constant 0 : i32
    return %c0_i32, %c0_i32_0, %c0_i32_1 : i32, i32, i32
  }
  func.func @transform_10(%arg0: i32, %arg1: i32) -> (i32, i32) {
    %c0_i32 = arith.constant 0 : i32
    %c0_i32_0 = arith.constant 0 : i32
    %c0_i32_1 = arith.constant 0 : i32
    return %c0_i32, %c0_i32_0 : i32, i32
  }
  func.func @transform_11(%arg0: i32, %arg1: i32) -> (i32, i32) {
    %c0_i32 = arith.constant 0 : i32
    %c0_i32_0 = arith.constant 0 : i32
    %c0_i32_1 = arith.constant 0 : i32
    return %c0_i32, %c0_i32_0 : i32, i32
  }
  func.func @transform_12(%arg0: i32, %arg1: i32) -> (i32, i32, i32) {
    %c0_i32 = arith.constant 0 : i32
    %c0_i32_0 = arith.constant 0 : i32
    return %arg0, %c0_i32, %arg1 : i32, i32, i32
  }
}

module attributes {stable_mosaic.version = 11 : i64} {
  func.func @_stage_kernel(%arg0: i32, %arg1: i32, %arg2: memref<1x1x8x140xbf16, #tpu.memory_space<vmem>>, %arg3: memref<1x1x1x140xf32, #tpu.memory_space<vmem>>, %arg4: memref<32x8xbf16, #tpu.memory_space<vmem>>, %arg5: memref<32x1xf32, #tpu.memory_space<vmem>>, %arg6: memref<3x3x32x32xbf16, #tpu.memory_space<vmem>>, %arg7: memref<3x32x1xf32, #tpu.memory_space<vmem>>, %arg8: memref<3x32x32xbf16, #tpu.memory_space<vmem>>, %arg9: memref<3x32x1xf32, #tpu.memory_space<vmem>>, %arg10: memref<3x32x1xf32, #tpu.memory_space<vmem>>, %arg11: memref<3x32x1xf32, #tpu.memory_space<vmem>>, %arg12: memref<8x32xbf16, #tpu.memory_space<vmem>>, %arg13: memref<8x1xf32, #tpu.memory_space<vmem>>, %arg14: memref<1x8x128xf32, #tpu.memory_space<vmem>>) attributes {dimension_semantics = [#tpu.dimension_semantics<parallel>, #tpu.dimension_semantics<parallel>], iteration_bounds = array<i64: 2, 1>, scalar_prefetch = 0 : i64, scratch_operands = 0 : i64, tpu.core_type = #tpu.core_type<tc>, window_params = [{transform_indices = @transform_0, window_bounds = array<i64: 1, 1, 8, 140>}, {transform_indices = @transform_1, window_bounds = array<i64: 1, 1, 1, 140>}, {pipeline_mode = #tpu.pipeline_mode<synchronous>, transform_indices = @transform_2, window_bounds = array<i64: 32, 8>}, {pipeline_mode = #tpu.pipeline_mode<synchronous>, transform_indices = @transform_3, window_bounds = array<i64: 32, 1>}, {pipeline_mode = #tpu.pipeline_mode<synchronous>, transform_indices = @transform_4, window_bounds = array<i64: 3, 3, 32, 32>}, {pipeline_mode = #tpu.pipeline_mode<synchronous>, transform_indices = @transform_5, window_bounds = array<i64: 3, 32, 1>}, {pipeline_mode = #tpu.pipeline_mode<synchronous>, transform_indices = @transform_6, window_bounds = array<i64: 3, 32, 32>}, {pipeline_mode = #tpu.pipeline_mode<synchronous>, transform_indices = @transform_7, window_bounds = array<i64: 3, 32, 1>}, {pipeline_mode = #tpu.pipeline_mode<synchronous>, transform_indices = @transform_8, window_bounds = array<i64: 3, 32, 1>}, {pipeline_mode = #tpu.pipeline_mode<synchronous>, transform_indices = @transform_9, window_bounds = array<i64: 3, 32, 1>}, {pipeline_mode = #tpu.pipeline_mode<synchronous>, transform_indices = @transform_10, window_bounds = array<i64: 8, 32>}, {pipeline_mode = #tpu.pipeline_mode<synchronous>, transform_indices = @transform_11, window_bounds = array<i64: 8, 1>}, {transform_indices = @transform_12, window_bounds = array<i64: 1, 8, 128>}]} {
    %c0 = arith.constant 0 : index
    %c0_0 = arith.constant 0 : index
    %c0_1 = arith.constant 0 : index
    %c0_2 = arith.constant 0 : index
    %0 = vector.load %arg2[%c0, %c0_0, %c0_1, %c0_2] : memref<1x1x8x140xbf16, #tpu.memory_space<vmem>>, vector<1x1x8x140xbf16>
    %1 = vector.shape_cast %0 : vector<1x1x8x140xbf16> to vector<8x140xbf16>
    %c0_3 = arith.constant 0 : index
    %c0_4 = arith.constant 0 : index
    %c0_5 = arith.constant 0 : index
    %c0_6 = arith.constant 0 : index
    %2 = vector.load %arg3[%c0_3, %c0_4, %c0_5, %c0_6] : memref<1x1x1x140xf32, #tpu.memory_space<vmem>>, vector<1x1x1x140xf32>
    %3 = vector.shape_cast %2 : vector<1x1x1x140xf32> to vector<1x140xf32>
    %4 = tpu.iota {dimensions = array<i32: 1>} : vector<1x140xi32>
    %c128_i32 = arith.constant 128 : i32
    %5 = arith.muli %arg1, %c128_i32 : i32
    %c6_i32 = arith.constant 6 : i32
    %6 = arith.subi %5, %c6_i32 : i32
    %7 = vector.broadcast %6 : i32 to vector<1x140xi32>
    %8 = arith.addi %7, %4 : vector<1x140xi32>
    %c0_i32 = arith.constant 0 : i32
    %9 = vector.broadcast %c0_i32 : i32 to vector<1x140xi32>
    %10 = arith.cmpi sge, %8, %9 : vector<1x140xi32>
    %c16_i32 = arith.constant 16 : i32
    %11 = vector.broadcast %c16_i32 : i32 to vector<1x140xi32>
    %12 = arith.cmpi slt, %8, %11 : vector<1x140xi32>
    %13 = arith.andi %10, %12 : vector<1x140xi1>
    %c2_i32 = arith.constant 2 : i32
    %14 = vector.broadcast %c2_i32 : i32 to vector<1x140xi32>
    %15 = arith.cmpi sge, %4, %14 : vector<1x140xi32>
    %c138_i32 = arith.constant 138 : i32
    %16 = vector.broadcast %c138_i32 : i32 to vector<1x140xi32>
    %17 = arith.cmpi slt, %4, %16 : vector<1x140xi32>
    %18 = vector.shape_cast %3 : vector<1x140xf32> to vector<1x140xf32>
    %19 = vector.broadcast %18 : vector<1x140xf32> to vector<32x140xf32>
    %c0_7 = arith.constant 0 : index
    %c0_8 = arith.constant 0 : index
    %20 = vector.load %arg4[%c0_7, %c0_8] : memref<32x8xbf16, #tpu.memory_space<vmem>>, vector<32x8xbf16>
    %cst = arith.constant dense<0.000000e+00> : vector<32x140xf32>
    %21 = tpu.matmul %20, %1, %cst {dimension_numbers = #tpu.dot_dimension_numbers<[1], [0], [0], [1], [0, 0, 1, 1], [], []>} : vector<32x8xbf16>, vector<8x140xbf16>, vector<32x140xf32> -> vector<32x140xf32>
    %c0_9 = arith.constant 0 : index
    %c0_10 = arith.constant 0 : index
    %22 = vector.load %arg5[%c0_9, %c0_10] : memref<32x1xf32, #tpu.memory_space<vmem>>, vector<32x1xf32>
    %23 = vector.broadcast %22 : vector<32x1xf32> to vector<32x140xf32>
    %24 = arith.addf %21, %23 : vector<32x140xf32>
    %cst_11 = arith.constant 0.000000e+00 : f32
    %25 = vector.shape_cast %13 : vector<1x140xi1> to vector<1x140xi1>
    %26 = vector.broadcast %25 : vector<1x140xi1> to vector<32x140xi1>
    %27 = vector.broadcast %cst_11 : f32 to vector<32x140xf32>
    %28 = arith.select %26, %24, %27 : vector<32x140xi1>, vector<32x140xf32>
    %c2_i32_12 = arith.constant 2 : i32
    %29 = tpu.dynamic_rotate %28 by %c2_i32_12 dim 1 : vector<32x140xf32>, i32 -> vector<32x140xf32>
    %cst_13 = arith.constant 0.000000e+00 : f32
    %30 = vector.shape_cast %15 : vector<1x140xi1> to vector<1x140xi1>
    %31 = vector.broadcast %30 : vector<1x140xi1> to vector<32x140xi1>
    %32 = vector.broadcast %cst_13 : f32 to vector<32x140xf32>
    %33 = arith.select %31, %29, %32 : vector<32x140xi1>, vector<32x140xf32>
    %c138_i32_14 = arith.constant 138 : i32
    %34 = tpu.dynamic_rotate %28 by %c138_i32_14 dim 1 : vector<32x140xf32>, i32 -> vector<32x140xf32>
    %cst_15 = arith.constant 0.000000e+00 : f32
    %35 = vector.shape_cast %17 : vector<1x140xi1> to vector<1x140xi1>
    %36 = vector.broadcast %35 : vector<1x140xi1> to vector<32x140xi1>
    %37 = vector.broadcast %cst_15 : f32 to vector<32x140xf32>
    %38 = arith.select %36, %34, %37 : vector<32x140xi1>, vector<32x140xf32>
    %c0_16 = arith.constant 0 : index
    %c0_17 = arith.constant 0 : index
    %c0_18 = arith.constant 0 : index
    %c0_19 = arith.constant 0 : index
    %39 = vector.load %arg6[%c0_16, %c0_17, %c0_18, %c0_19] : memref<3x3x32x32xbf16, #tpu.memory_space<vmem>>, vector<1x1x32x32xbf16>
    %40 = vector.shape_cast %39 : vector<1x1x32x32xbf16> to vector<32x32xbf16>
    %41 = arith.truncf %33 : vector<32x140xf32> to vector<32x140xbf16>
    %cst_20 = arith.constant dense<0.000000e+00> : vector<32x140xf32>
    %42 = tpu.matmul %40, %41, %cst_20 {dimension_numbers = #tpu.dot_dimension_numbers<[1], [0], [0], [1], [0, 0, 1, 1], [], []>} : vector<32x32xbf16>, vector<32x140xbf16>, vector<32x140xf32> -> vector<32x140xf32>
    %c0_21 = arith.constant 0 : index
    %c1 = arith.constant 1 : index
    %c0_22 = arith.constant 0 : index
    %c0_23 = arith.constant 0 : index
    %43 = vector.load %arg6[%c0_21, %c1, %c0_22, %c0_23] : memref<3x3x32x32xbf16, #tpu.memory_space<vmem>>, vector<1x1x32x32xbf16>
    %44 = vector.shape_cast %43 : vector<1x1x32x32xbf16> to vector<32x32xbf16>
    %45 = arith.truncf %28 : vector<32x140xf32> to vector<32x140xbf16>
    %cst_24 = arith.constant dense<0.000000e+00> : vector<32x140xf32>
    %46 = tpu.matmul %44, %45, %cst_24 {dimension_numbers = #tpu.dot_dimension_numbers<[1], [0], [0], [1], [0, 0, 1, 1], [], []>} : vector<32x32xbf16>, vector<32x140xbf16>, vector<32x140xf32> -> vector<32x140xf32>
    %47 = arith.addf %42, %46 : vector<32x140xf32>
    %c0_25 = arith.constant 0 : index
    %c2 = arith.constant 2 : index
    %c0_26 = arith.constant 0 : index
    %c0_27 = arith.constant 0 : index
    %48 = vector.load %arg6[%c0_25, %c2, %c0_26, %c0_27] : memref<3x3x32x32xbf16, #tpu.memory_space<vmem>>, vector<1x1x32x32xbf16>
    %49 = vector.shape_cast %48 : vector<1x1x32x32xbf16> to vector<32x32xbf16>
    %50 = arith.truncf %38 : vector<32x140xf32> to vector<32x140xbf16>
    %cst_28 = arith.constant dense<0.000000e+00> : vector<32x140xf32>
    %51 = tpu.matmul %49, %50, %cst_28 {dimension_numbers = #tpu.dot_dimension_numbers<[1], [0], [0], [1], [0, 0, 1, 1], [], []>} : vector<32x32xbf16>, vector<32x140xbf16>, vector<32x140xf32> -> vector<32x140xf32>
    %52 = arith.addf %47, %51 : vector<32x140xf32>
    %c0_29 = arith.constant 0 : index
    %c0_30 = arith.constant 0 : index
    %c0_31 = arith.constant 0 : index
    %53 = vector.load %arg7[%c0_29, %c0_30, %c0_31] : memref<3x32x1xf32, #tpu.memory_space<vmem>>, vector<1x32x1xf32>
    %54 = vector.shape_cast %53 : vector<1x32x1xf32> to vector<32x1xf32>
    %55 = vector.broadcast %54 : vector<32x1xf32> to vector<32x140xf32>
    %56 = arith.addf %52, %55 : vector<32x140xf32>
    %cst_32 = arith.constant 0.000000e+00 : f32
    %57 = vector.broadcast %cst_32 : f32 to vector<32x140xf32>
    %58 = arith.maximumf %56, %57 : vector<32x140xf32>
    %c0_33 = arith.constant 0 : index
    %c0_34 = arith.constant 0 : index
    %c0_35 = arith.constant 0 : index
    %59 = vector.load %arg8[%c0_33, %c0_34, %c0_35] : memref<3x32x32xbf16, #tpu.memory_space<vmem>>, vector<1x32x32xbf16>
    %60 = vector.shape_cast %59 : vector<1x32x32xbf16> to vector<32x32xbf16>
    %61 = arith.truncf %58 : vector<32x140xf32> to vector<32x140xbf16>
    %cst_36 = arith.constant dense<0.000000e+00> : vector<32x140xf32>
    %62 = tpu.matmul %60, %61, %cst_36 {dimension_numbers = #tpu.dot_dimension_numbers<[1], [0], [0], [1], [0, 0, 1, 1], [], []>} : vector<32x32xbf16>, vector<32x140xbf16>, vector<32x140xf32> -> vector<32x140xf32>
    %c0_37 = arith.constant 0 : index
    %c0_38 = arith.constant 0 : index
    %c0_39 = arith.constant 0 : index
    %63 = vector.load %arg9[%c0_37, %c0_38, %c0_39] : memref<3x32x1xf32, #tpu.memory_space<vmem>>, vector<1x32x1xf32>
    %64 = vector.shape_cast %63 : vector<1x32x1xf32> to vector<32x1xf32>
    %65 = vector.broadcast %64 : vector<32x1xf32> to vector<32x140xf32>
    %66 = arith.addf %62, %65 : vector<32x140xf32>
    %cst_40 = arith.constant 2.000000e-01 : f32
    %67 = vector.broadcast %cst_40 : f32 to vector<32x140xf32>
    %68 = arith.mulf %67, %66 : vector<32x140xf32>
    %69 = arith.maximumf %66, %68 : vector<32x140xf32>
    %c0_41 = arith.constant 0 : index
    %c0_42 = arith.constant 0 : index
    %c0_43 = arith.constant 0 : index
    %70 = vector.load %arg10[%c0_41, %c0_42, %c0_43] : memref<3x32x1xf32, #tpu.memory_space<vmem>>, vector<1x32x1xf32>
    %71 = vector.shape_cast %70 : vector<1x32x1xf32> to vector<32x1xf32>
    %72 = vector.broadcast %71 : vector<32x1xf32> to vector<32x140xf32>
    %73 = arith.mulf %69, %72 : vector<32x140xf32>
    %c0_44 = arith.constant 0 : index
    %c0_45 = arith.constant 0 : index
    %c0_46 = arith.constant 0 : index
    %74 = vector.load %arg11[%c0_44, %c0_45, %c0_46] : memref<3x32x1xf32, #tpu.memory_space<vmem>>, vector<1x32x1xf32>
    %75 = vector.shape_cast %74 : vector<1x32x1xf32> to vector<32x1xf32>
    %76 = vector.broadcast %75 : vector<32x1xf32> to vector<32x140xf32>
    %77 = arith.addf %73, %76 : vector<32x140xf32>
    %78 = arith.addf %28, %77 : vector<32x140xf32>
    %79 = arith.mulf %78, %19 : vector<32x140xf32>
    %c2_i32_47 = arith.constant 2 : i32
    %80 = tpu.dynamic_rotate %79 by %c2_i32_47 dim 1 : vector<32x140xf32>, i32 -> vector<32x140xf32>
    %cst_48 = arith.constant 0.000000e+00 : f32
    %81 = vector.shape_cast %15 : vector<1x140xi1> to vector<1x140xi1>
    %82 = vector.broadcast %81 : vector<1x140xi1> to vector<32x140xi1>
    %83 = vector.broadcast %cst_48 : f32 to vector<32x140xf32>
    %84 = arith.select %82, %80, %83 : vector<32x140xi1>, vector<32x140xf32>
    %c138_i32_49 = arith.constant 138 : i32
    %85 = tpu.dynamic_rotate %79 by %c138_i32_49 dim 1 : vector<32x140xf32>, i32 -> vector<32x140xf32>
    %cst_50 = arith.constant 0.000000e+00 : f32
    %86 = vector.shape_cast %17 : vector<1x140xi1> to vector<1x140xi1>
    %87 = vector.broadcast %86 : vector<1x140xi1> to vector<32x140xi1>
    %88 = vector.broadcast %cst_50 : f32 to vector<32x140xf32>
    %89 = arith.select %87, %85, %88 : vector<32x140xi1>, vector<32x140xf32>
    %c1_51 = arith.constant 1 : index
    %c0_52 = arith.constant 0 : index
    %c0_53 = arith.constant 0 : index
    %c0_54 = arith.constant 0 : index
    %90 = vector.load %arg6[%c1_51, %c0_52, %c0_53, %c0_54] : memref<3x3x32x32xbf16, #tpu.memory_space<vmem>>, vector<1x1x32x32xbf16>
    %91 = vector.shape_cast %90 : vector<1x1x32x32xbf16> to vector<32x32xbf16>
    %92 = arith.truncf %84 : vector<32x140xf32> to vector<32x140xbf16>
    %cst_55 = arith.constant dense<0.000000e+00> : vector<32x140xf32>
    %93 = tpu.matmul %91, %92, %cst_55 {dimension_numbers = #tpu.dot_dimension_numbers<[1], [0], [0], [1], [0, 0, 1, 1], [], []>} : vector<32x32xbf16>, vector<32x140xbf16>, vector<32x140xf32> -> vector<32x140xf32>
    %c1_56 = arith.constant 1 : index
    %c1_57 = arith.constant 1 : index
    %c0_58 = arith.constant 0 : index
    %c0_59 = arith.constant 0 : index
    %94 = vector.load %arg6[%c1_56, %c1_57, %c0_58, %c0_59] : memref<3x3x32x32xbf16, #tpu.memory_space<vmem>>, vector<1x1x32x32xbf16>
    %95 = vector.shape_cast %94 : vector<1x1x32x32xbf16> to vector<32x32xbf16>
    %96 = arith.truncf %79 : vector<32x140xf32> to vector<32x140xbf16>
    %cst_60 = arith.constant dense<0.000000e+00> : vector<32x140xf32>
    %97 = tpu.matmul %95, %96, %cst_60 {dimension_numbers = #tpu.dot_dimension_numbers<[1], [0], [0], [1], [0, 0, 1, 1], [], []>} : vector<32x32xbf16>, vector<32x140xbf16>, vector<32x140xf32> -> vector<32x140xf32>
    %98 = arith.addf %93, %97 : vector<32x140xf32>
    %c1_61 = arith.constant 1 : index
    %c2_62 = arith.constant 2 : index
    %c0_63 = arith.constant 0 : index
    %c0_64 = arith.constant 0 : index
    %99 = vector.load %arg6[%c1_61, %c2_62, %c0_63, %c0_64] : memref<3x3x32x32xbf16, #tpu.memory_space<vmem>>, vector<1x1x32x32xbf16>
    %100 = vector.shape_cast %99 : vector<1x1x32x32xbf16> to vector<32x32xbf16>
    %101 = arith.truncf %89 : vector<32x140xf32> to vector<32x140xbf16>
    %cst_65 = arith.constant dense<0.000000e+00> : vector<32x140xf32>
    %102 = tpu.matmul %100, %101, %cst_65 {dimension_numbers = #tpu.dot_dimension_numbers<[1], [0], [0], [1], [0, 0, 1, 1], [], []>} : vector<32x32xbf16>, vector<32x140xbf16>, vector<32x140xf32> -> vector<32x140xf32>
    %103 = arith.addf %98, %102 : vector<32x140xf32>
    %c1_66 = arith.constant 1 : index
    %c0_67 = arith.constant 0 : index
    %c0_68 = arith.constant 0 : index
    %104 = vector.load %arg7[%c1_66, %c0_67, %c0_68] : memref<3x32x1xf32, #tpu.memory_space<vmem>>, vector<1x32x1xf32>
    %105 = vector.shape_cast %104 : vector<1x32x1xf32> to vector<32x1xf32>
    %106 = vector.broadcast %105 : vector<32x1xf32> to vector<32x140xf32>
    %107 = arith.addf %103, %106 : vector<32x140xf32>
    %cst_69 = arith.constant 0.000000e+00 : f32
    %108 = vector.broadcast %cst_69 : f32 to vector<32x140xf32>
    %109 = arith.maximumf %107, %108 : vector<32x140xf32>
    %c1_70 = arith.constant 1 : index
    %c0_71 = arith.constant 0 : index
    %c0_72 = arith.constant 0 : index
    %110 = vector.load %arg8[%c1_70, %c0_71, %c0_72] : memref<3x32x32xbf16, #tpu.memory_space<vmem>>, vector<1x32x32xbf16>
    %111 = vector.shape_cast %110 : vector<1x32x32xbf16> to vector<32x32xbf16>
    %112 = arith.truncf %109 : vector<32x140xf32> to vector<32x140xbf16>
    %cst_73 = arith.constant dense<0.000000e+00> : vector<32x140xf32>
    %113 = tpu.matmul %111, %112, %cst_73 {dimension_numbers = #tpu.dot_dimension_numbers<[1], [0], [0], [1], [0, 0, 1, 1], [], []>} : vector<32x32xbf16>, vector<32x140xbf16>, vector<32x140xf32> -> vector<32x140xf32>
    %c1_74 = arith.constant 1 : index
    %c0_75 = arith.constant 0 : index
    %c0_76 = arith.constant 0 : index
    %114 = vector.load %arg9[%c1_74, %c0_75, %c0_76] : memref<3x32x1xf32, #tpu.memory_space<vmem>>, vector<1x32x1xf32>
    %115 = vector.shape_cast %114 : vector<1x32x1xf32> to vector<32x1xf32>
    %116 = vector.broadcast %115 : vector<32x1xf32> to vector<32x140xf32>
    %117 = arith.addf %113, %116 : vector<32x140xf32>
    %cst_77 = arith.constant 2.000000e-01 : f32
    %118 = vector.broadcast %cst_77 : f32 to vector<32x140xf32>
    %119 = arith.mulf %118, %117 : vector<32x140xf32>
    %120 = arith.maximumf %117, %119 : vector<32x140xf32>
    %c1_78 = arith.constant 1 : index
    %c0_79 = arith.constant 0 : index
    %c0_80 = arith.constant 0 : index
    %121 = vector.load %arg10[%c1_78, %c0_79, %c0_80] : memref<3x32x1xf32, #tpu.memory_space<vmem>>, vector<1x32x1xf32>
    %122 = vector.shape_cast %121 : vector<1x32x1xf32> to vector<32x1xf32>
    %123 = vector.broadcast %122 : vector<32x1xf32> to vector<32x140xf32>
    %124 = arith.mulf %120, %123 : vector<32x140xf32>
    %c1_81 = arith.constant 1 : index
    %c0_82 = arith.constant 0 : index
    %c0_83 = arith.constant 0 : index
    %125 = vector.load %arg11[%c1_81, %c0_82, %c0_83] : memref<3x32x1xf32, #tpu.memory_space<vmem>>, vector<1x32x1xf32>
    %126 = vector.shape_cast %125 : vector<1x32x1xf32> to vector<32x1xf32>
    %127 = vector.broadcast %126 : vector<32x1xf32> to vector<32x140xf32>
    %128 = arith.addf %124, %127 : vector<32x140xf32>
    %129 = arith.addf %79, %128 : vector<32x140xf32>
    %130 = arith.mulf %129, %19 : vector<32x140xf32>
    %c2_i32_84 = arith.constant 2 : i32
    %131 = tpu.dynamic_rotate %130 by %c2_i32_84 dim 1 : vector<32x140xf32>, i32 -> vector<32x140xf32>
    %cst_85 = arith.constant 0.000000e+00 : f32
    %132 = vector.shape_cast %15 : vector<1x140xi1> to vector<1x140xi1>
    %133 = vector.broadcast %132 : vector<1x140xi1> to vector<32x140xi1>
    %134 = vector.broadcast %cst_85 : f32 to vector<32x140xf32>
    %135 = arith.select %133, %131, %134 : vector<32x140xi1>, vector<32x140xf32>
    %c138_i32_86 = arith.constant 138 : i32
    %136 = tpu.dynamic_rotate %130 by %c138_i32_86 dim 1 : vector<32x140xf32>, i32 -> vector<32x140xf32>
    %cst_87 = arith.constant 0.000000e+00 : f32
    %137 = vector.shape_cast %17 : vector<1x140xi1> to vector<1x140xi1>
    %138 = vector.broadcast %137 : vector<1x140xi1> to vector<32x140xi1>
    %139 = vector.broadcast %cst_87 : f32 to vector<32x140xf32>
    %140 = arith.select %138, %136, %139 : vector<32x140xi1>, vector<32x140xf32>
    %c2_88 = arith.constant 2 : index
    %c0_89 = arith.constant 0 : index
    %c0_90 = arith.constant 0 : index
    %c0_91 = arith.constant 0 : index
    %141 = vector.load %arg6[%c2_88, %c0_89, %c0_90, %c0_91] : memref<3x3x32x32xbf16, #tpu.memory_space<vmem>>, vector<1x1x32x32xbf16>
    %142 = vector.shape_cast %141 : vector<1x1x32x32xbf16> to vector<32x32xbf16>
    %143 = arith.truncf %135 : vector<32x140xf32> to vector<32x140xbf16>
    %cst_92 = arith.constant dense<0.000000e+00> : vector<32x140xf32>
    %144 = tpu.matmul %142, %143, %cst_92 {dimension_numbers = #tpu.dot_dimension_numbers<[1], [0], [0], [1], [0, 0, 1, 1], [], []>} : vector<32x32xbf16>, vector<32x140xbf16>, vector<32x140xf32> -> vector<32x140xf32>
    %c2_93 = arith.constant 2 : index
    %c1_94 = arith.constant 1 : index
    %c0_95 = arith.constant 0 : index
    %c0_96 = arith.constant 0 : index
    %145 = vector.load %arg6[%c2_93, %c1_94, %c0_95, %c0_96] : memref<3x3x32x32xbf16, #tpu.memory_space<vmem>>, vector<1x1x32x32xbf16>
    %146 = vector.shape_cast %145 : vector<1x1x32x32xbf16> to vector<32x32xbf16>
    %147 = arith.truncf %130 : vector<32x140xf32> to vector<32x140xbf16>
    %cst_97 = arith.constant dense<0.000000e+00> : vector<32x140xf32>
    %148 = tpu.matmul %146, %147, %cst_97 {dimension_numbers = #tpu.dot_dimension_numbers<[1], [0], [0], [1], [0, 0, 1, 1], [], []>} : vector<32x32xbf16>, vector<32x140xbf16>, vector<32x140xf32> -> vector<32x140xf32>
    %149 = arith.addf %144, %148 : vector<32x140xf32>
    %c2_98 = arith.constant 2 : index
    %c2_99 = arith.constant 2 : index
    %c0_100 = arith.constant 0 : index
    %c0_101 = arith.constant 0 : index
    %150 = vector.load %arg6[%c2_98, %c2_99, %c0_100, %c0_101] : memref<3x3x32x32xbf16, #tpu.memory_space<vmem>>, vector<1x1x32x32xbf16>
    %151 = vector.shape_cast %150 : vector<1x1x32x32xbf16> to vector<32x32xbf16>
    %152 = arith.truncf %140 : vector<32x140xf32> to vector<32x140xbf16>
    %cst_102 = arith.constant dense<0.000000e+00> : vector<32x140xf32>
    %153 = tpu.matmul %151, %152, %cst_102 {dimension_numbers = #tpu.dot_dimension_numbers<[1], [0], [0], [1], [0, 0, 1, 1], [], []>} : vector<32x32xbf16>, vector<32x140xbf16>, vector<32x140xf32> -> vector<32x140xf32>
    %154 = arith.addf %149, %153 : vector<32x140xf32>
    %c2_103 = arith.constant 2 : index
    %c0_104 = arith.constant 0 : index
    %c0_105 = arith.constant 0 : index
    %155 = vector.load %arg7[%c2_103, %c0_104, %c0_105] : memref<3x32x1xf32, #tpu.memory_space<vmem>>, vector<1x32x1xf32>
    %156 = vector.shape_cast %155 : vector<1x32x1xf32> to vector<32x1xf32>
    %157 = vector.broadcast %156 : vector<32x1xf32> to vector<32x140xf32>
    %158 = arith.addf %154, %157 : vector<32x140xf32>
    %cst_106 = arith.constant 0.000000e+00 : f32
    %159 = vector.broadcast %cst_106 : f32 to vector<32x140xf32>
    %160 = arith.maximumf %158, %159 : vector<32x140xf32>
    %c2_107 = arith.constant 2 : index
    %c0_108 = arith.constant 0 : index
    %c0_109 = arith.constant 0 : index
    %161 = vector.load %arg8[%c2_107, %c0_108, %c0_109] : memref<3x32x32xbf16, #tpu.memory_space<vmem>>, vector<1x32x32xbf16>
    %162 = vector.shape_cast %161 : vector<1x32x32xbf16> to vector<32x32xbf16>
    %163 = arith.truncf %160 : vector<32x140xf32> to vector<32x140xbf16>
    %cst_110 = arith.constant dense<0.000000e+00> : vector<32x140xf32>
    %164 = tpu.matmul %162, %163, %cst_110 {dimension_numbers = #tpu.dot_dimension_numbers<[1], [0], [0], [1], [0, 0, 1, 1], [], []>} : vector<32x32xbf16>, vector<32x140xbf16>, vector<32x140xf32> -> vector<32x140xf32>
    %c2_111 = arith.constant 2 : index
    %c0_112 = arith.constant 0 : index
    %c0_113 = arith.constant 0 : index
    %165 = vector.load %arg9[%c2_111, %c0_112, %c0_113] : memref<3x32x1xf32, #tpu.memory_space<vmem>>, vector<1x32x1xf32>
    %166 = vector.shape_cast %165 : vector<1x32x1xf32> to vector<32x1xf32>
    %167 = vector.broadcast %166 : vector<32x1xf32> to vector<32x140xf32>
    %168 = arith.addf %164, %167 : vector<32x140xf32>
    %cst_114 = arith.constant 2.000000e-01 : f32
    %169 = vector.broadcast %cst_114 : f32 to vector<32x140xf32>
    %170 = arith.mulf %169, %168 : vector<32x140xf32>
    %171 = arith.maximumf %168, %170 : vector<32x140xf32>
    %c2_115 = arith.constant 2 : index
    %c0_116 = arith.constant 0 : index
    %c0_117 = arith.constant 0 : index
    %172 = vector.load %arg10[%c2_115, %c0_116, %c0_117] : memref<3x32x1xf32, #tpu.memory_space<vmem>>, vector<1x32x1xf32>
    %173 = vector.shape_cast %172 : vector<1x32x1xf32> to vector<32x1xf32>
    %174 = vector.broadcast %173 : vector<32x1xf32> to vector<32x140xf32>
    %175 = arith.mulf %171, %174 : vector<32x140xf32>
    %c2_118 = arith.constant 2 : index
    %c0_119 = arith.constant 0 : index
    %c0_120 = arith.constant 0 : index
    %176 = vector.load %arg11[%c2_118, %c0_119, %c0_120] : memref<3x32x1xf32, #tpu.memory_space<vmem>>, vector<1x32x1xf32>
    %177 = vector.shape_cast %176 : vector<1x32x1xf32> to vector<32x1xf32>
    %178 = vector.broadcast %177 : vector<32x1xf32> to vector<32x140xf32>
    %179 = arith.addf %175, %178 : vector<32x140xf32>
    %180 = arith.addf %130, %179 : vector<32x140xf32>
    %181 = arith.mulf %180, %19 : vector<32x140xf32>
    %c0_121 = arith.constant 0 : index
    %c0_122 = arith.constant 0 : index
    %182 = vector.load %arg12[%c0_121, %c0_122] : memref<8x32xbf16, #tpu.memory_space<vmem>>, vector<8x32xbf16>
    %183 = arith.truncf %181 : vector<32x140xf32> to vector<32x140xbf16>
    %cst_123 = arith.constant dense<0.000000e+00> : vector<8x140xf32>
    %184 = tpu.matmul %182, %183, %cst_123 {dimension_numbers = #tpu.dot_dimension_numbers<[1], [0], [0], [1], [0, 0, 1, 1], [], []>} : vector<8x32xbf16>, vector<32x140xbf16>, vector<8x140xf32> -> vector<8x140xf32>
    %c0_124 = arith.constant 0 : index
    %c0_125 = arith.constant 0 : index
    %185 = vector.load %arg13[%c0_124, %c0_125] : memref<8x1xf32, #tpu.memory_space<vmem>>, vector<8x1xf32>
    %186 = vector.broadcast %185 : vector<8x1xf32> to vector<8x140xf32>
    %187 = arith.addf %184, %186 : vector<8x140xf32>
    %188 = vector.broadcast %3 : vector<1x140xf32> to vector<8x140xf32>
    %189 = arith.mulf %187, %188 : vector<8x140xf32>
    %190 = vector.extract_strided_slice %189 {offsets = [0, 6], sizes = [8, 128], strides = [1, 1]} : vector<8x140xf32> to vector<8x128xf32>
    %c0_126 = arith.constant 0 : index
    %c0_127 = arith.constant 0 : index
    %c0_128 = arith.constant 0 : index
    %191 = vector.load %arg14[%c0_126, %c0_127, %c0_128] : memref<1x8x128xf32, #tpu.memory_space<vmem>>, vector<1x8x128xf32>
    %192 = vector.shape_cast %191 : vector<1x8x128xf32> to vector<8x128xf32>
    %193 = vector.shape_cast %190 : vector<8x128xf32> to vector<1x8x128xf32>
    tpu.vector_store %arg14[%c0_126, %c0_127, %c0_128], %193 {strides = array<i32>} : memref<1x8x128xf32, #tpu.memory_space<vmem>>, vector<1x8x128xf32>,
    return
  }
  func.func @transform_0(%arg0: i32, %arg1: i32) -> (i32, i32, i32, i32) {
    %c0_i32 = arith.constant 0 : i32
    %c0_i32_0 = arith.constant 0 : i32
    %c0_i32_1 = arith.constant 0 : i32
    return %arg0, %arg1, %c0_i32, %c0_i32_0 : i32, i32, i32, i32
  }
  func.func @transform_1(%arg0: i32, %arg1: i32) -> (i32, i32, i32, i32) {
    %c0_i32 = arith.constant 0 : i32
    %c0_i32_0 = arith.constant 0 : i32
    %c0_i32_1 = arith.constant 0 : i32
    return %arg0, %arg1, %c0_i32, %c0_i32_0 : i32, i32, i32, i32
  }
  func.func @transform_2(%arg0: i32, %arg1: i32) -> (i32, i32) {
    %c0_i32 = arith.constant 0 : i32
    %c0_i32_0 = arith.constant 0 : i32
    %c0_i32_1 = arith.constant 0 : i32
    return %c0_i32, %c0_i32_0 : i32, i32
  }
  func.func @transform_3(%arg0: i32, %arg1: i32) -> (i32, i32) {
    %c0_i32 = arith.constant 0 : i32
    %c0_i32_0 = arith.constant 0 : i32
    %c0_i32_1 = arith.constant 0 : i32
    return %c0_i32, %c0_i32_0 : i32, i32
  }
  func.func @transform_4(%arg0: i32, %arg1: i32) -> (i32, i32, i32, i32) {
    %c0_i32 = arith.constant 0 : i32
    %c0_i32_0 = arith.constant 0 : i32
    %c0_i32_1 = arith.constant 0 : i32
    %c0_i32_2 = arith.constant 0 : i32
    %c0_i32_3 = arith.constant 0 : i32
    return %c0_i32, %c0_i32_0, %c0_i32_1, %c0_i32_2 : i32, i32, i32, i32
  }
  func.func @transform_5(%arg0: i32, %arg1: i32) -> (i32, i32, i32) {
    %c0_i32 = arith.constant 0 : i32
    %c0_i32_0 = arith.constant 0 : i32
    %c0_i32_1 = arith.constant 0 : i32
    %c0_i32_2 = arith.constant 0 : i32
    return %c0_i32, %c0_i32_0, %c0_i32_1 : i32, i32, i32
  }
  func.func @transform_6(%arg0: i32, %arg1: i32) -> (i32, i32, i32) {
    %c0_i32 = arith.constant 0 : i32
    %c0_i32_0 = arith.constant 0 : i32
    %c0_i32_1 = arith.constant 0 : i32
    %c0_i32_2 = arith.constant 0 : i32
    return %c0_i32, %c0_i32_0, %c0_i32_1 : i32, i32, i32
  }
  func.func @transform_7(%arg0: i32, %arg1: i32) -> (i32, i32, i32) {
    %c0_i32 = arith.constant 0 : i32
    %c0_i32_0 = arith.constant 0 : i32
    %c0_i32_1 = arith.constant 0 : i32
    %c0_i32_2 = arith.constant 0 : i32
    return %c0_i32, %c0_i32_0, %c0_i32_1 : i32, i32, i32
  }
  func.func @transform_8(%arg0: i32, %arg1: i32) -> (i32, i32, i32) {
    %c0_i32 = arith.constant 0 : i32
    %c0_i32_0 = arith.constant 0 : i32
    %c0_i32_1 = arith.constant 0 : i32
    %c0_i32_2 = arith.constant 0 : i32
    return %c0_i32, %c0_i32_0, %c0_i32_1 : i32, i32, i32
  }
  func.func @transform_9(%arg0: i32, %arg1: i32) -> (i32, i32, i32) {
    %c0_i32 = arith.constant 0 : i32
    %c0_i32_0 = arith.constant 0 : i32
    %c0_i32_1 = arith.constant 0 : i32
    %c0_i32_2 = arith.constant 0 : i32
    return %c0_i32, %c0_i32_0, %c0_i32_1 : i32, i32, i32
  }
  func.func @transform_10(%arg0: i32, %arg1: i32) -> (i32, i32) {
    %c0_i32 = arith.constant 0 : i32
    %c0_i32_0 = arith.constant 0 : i32
    %c0_i32_1 = arith.constant 0 : i32
    return %c0_i32, %c0_i32_0 : i32, i32
  }
  func.func @transform_11(%arg0: i32, %arg1: i32) -> (i32, i32) {
    %c0_i32 = arith.constant 0 : i32
    %c0_i32_0 = arith.constant 0 : i32
    %c0_i32_1 = arith.constant 0 : i32
    return %c0_i32, %c0_i32_0 : i32, i32
  }
  func.func @transform_12(%arg0: i32, %arg1: i32) -> (i32, i32, i32) {
    %c0_i32 = arith.constant 0 : i32
    %c0_i32_0 = arith.constant 0 : i32
    return %arg0, %c0_i32, %arg1 : i32, i32, i32
  }
}

</mosaic_0001>

<llo_original>
// kernel: tpu_custom_call.1
$region0: #{tpu_custom_call.1}
  #allocation0 [shape = 'u32[]', space=smem, size = 0x4, offset = 0x4, fixed_abs, tag = 'smem constant byte address 0x4 - core index']
  #allocation1 [shape = 'u32[144,128]{1,0:T(1,128)}', space=vmem, size = 0x12000, scoped, tag = 'internal scratch']
  %s0 = inlined_call_operand.vmem [shape: bf16[2,1,8,140], index: 0, kind: input, shape index: {}]
  %s1 = inlined_call_operand.vmem [shape: f32[2,1,1,140], index: 1, kind: input, shape index: {}]
  %s2 = inlined_call_operand.vmem [shape: bf16[32,8], index: 2, kind: input, shape index: {}]
  %s3 = inlined_call_operand.vmem [shape: f32[32,1], index: 3, kind: input, shape index: {}]
  %s4 = inlined_call_operand.vmem [shape: bf16[3,3,32,32], index: 4, kind: input, shape index: {}]
  %s5 = inlined_call_operand.vmem [shape: f32[3,32,1], index: 5, kind: input, shape index: {}]
  %s6 = inlined_call_operand.vmem [shape: bf16[3,32,32], index: 6, kind: input, shape index: {}]
  %s7 = inlined_call_operand.vmem [shape: f32[3,32,1], index: 7, kind: input, shape index: {}]
  %s8 = inlined_call_operand.vmem [shape: f32[3,32,1], index: 8, kind: input, shape index: {}]
  %s9 = inlined_call_operand.vmem [shape: f32[3,32,1], index: 9, kind: input, shape index: {}]
  %s10 = inlined_call_operand.vmem [shape: bf16[8,32], index: 10, kind: input, shape index: {}]
  %s11 = inlined_call_operand.vmem [shape: f32[8,1], index: 11, kind: input, shape index: {}]
  %s12 = inlined_call_operand.hbm [shape: f32[2,8,128], index: 12, kind: output, shape index: {}]
  %s13 = sld [smem:[#allocation0]]
  $region81: #{tpu_custom_call.1} parent=0
    _
  %s15 = ssub.s32 1, %s13
  %s16 = scalar_select 0, %s15, %s13
  $region1: #{tpu_custom_call.1} parent=0
    #allocation2 [shape = 'u8[8192]{0}', space=vmem, size = 0x2000, scoped, tag = 'output window, operand 0']
    #allocation3 [shape = 's32[2]{0}', space=sflag, size = 0x8, scoped, tag = 'scoped memory for tpu_custom_call.1']
    %17 = vsyncpa [#allocation3], 0
    %s18 = scalar_lea.sflag [#allocation3], 1
    %19 = vsyncpa %s18, 0
    loop: start=0, step=1, limit=4
    $region2: #{tpu_custom_call.1} parent=1 // loop_pre_header
      _
    $region3: #{tpu_custom_call.1} parent=1 // loop_header
      %s21 = sphi 0, %s25
      %p22 = scmp.ge.s32.totalorder %s21, 4
      %s28 = sphi 0, %s40
      %s29 = sphi 0, %s36
      %s30 = sphi 0, %s28
      %s31 = sphi 0, %s29
      %s32 = sphi 0, %s30
      %s33 = sphi 0, %s31
      %s45 = sphi 0, %s47
      %s48 = sphi 0, %s45
      %s49 = sphi 0, %s48
      %s65 = sphi 0, %s49
      %s73 = sphi 0, %s75
      %s76 = sphi 0, %s73
      %s77 = sphi 0, %s76
      %s93 = sphi 0, %s77
      %s97 = sphi 0, %s97
      %s99 = sphi 0, %s97
      %s100 = sphi 0, %s99
      %s114 = sphi 0, %s100
      %s118 = sphi 0, %s118
      %s120 = sphi 0, %s118
      %s121 = sphi 0, %s120
      %s135 = sphi 0, %s121
      %s139 = sphi 0, %s139
      %s141 = sphi 0, %s139
      %s142 = sphi 0, %s141
      %s156 = sphi 0, %s142
      %s160 = sphi 0, %s160
      %s162 = sphi 0, %s160
      %s163 = sphi 0, %s162
      %s177 = sphi 0, %s163
      %s181 = sphi 0, %s181
      %s183 = sphi 0, %s181
      %s184 = sphi 0, %s183
      %s198 = sphi 0, %s184
      %s202 = sphi 0, %s202
      %s204 = sphi 0, %s202
      %s205 = sphi 0, %s204
      %s219 = sphi 0, %s205
      %s223 = sphi 0, %s223
      %s225 = sphi 0, %s223
      %s226 = sphi 0, %s225
      %s240 = sphi 0, %s226
      %s244 = sphi 0, %s244
      %s246 = sphi 0, %s244
      %s247 = sphi 0, %s246
      %s261 = sphi 0, %s247
      %s265 = sphi 0, %s265
      %s267 = sphi 0, %s265
      %s268 = sphi 0, %s267
      %s282 = sphi 0, %s268
      %s286 = sphi 0, %s286
      %s288 = sphi 0, %s286
      %s289 = sphi 0, %s288
      %s303 = sphi 0, %s289
      %s311 = sphi 0, %s313
      %s314 = sphi 0, %s311
      %s315 = sphi 0, %s314
      %s331 = sphi 0, %s315
    $region4: #{tpu_custom_call.1} parent=1 // loop_header_branch
      %24 = sbr.rel (%p22) target = $region8
    $region5: #{tpu_custom_call.1} parent=1 // loop_body
      %s26 = ssub.s32 %s21, 1
      %s27 = ssub.s32 %s21, 2
      %s34 = sadd.s32 1, %s29
      %p35 = scmp.ge.s32.totalorder %s34, 1
      %s36 = scalar_select %p35, 0, %s34
      %s37 = sadd.s32 1, %s28
      %s38 = scalar_select %p35, %s37, %s28
      %p39 = scmp.ge.s32.totalorder %s38, 2
      %s40 = scalar_select %p39, 0, %s38
      %s41 = ssub.s32 %s28, %s40
      %s42 = ssub.s32 %s29, %s36
      %s43 = sor.u32 %s41, %s42
      %p44 = scmp.eq.s32.totalorder %s43, 0
      %s46 = sadd.s32 %s45, 1
      %s47 = scalar_select %p44, %s45, %s46
      %p50 = pneg %p44
      %p51 = scmp.eq.s32.totalorder %s21, 1
      %p52 = por %p50, %p51
      %p53 = scmp.ne.s32.totalorder %s45, %s48
      %p54 = scmp.eq.s32.totalorder %s21, 0
      %p55 = por %p53, %p54
      %p56 = scmp.ne.s32.totalorder %s45, %s48
      %p57 = scmp.eq.s32.totalorder %s26, 1
      %p58 = por %p56, %p57
      %p59 = scmp.ne.s32.totalorder %s48, %s49
      %p60 = scmp.eq.s32.totalorder %s26, 0
      %p61 = por %p59, %p60
      %p62 = scmp.ne.s32.totalorder %s48, %s49
      %p63 = scmp.eq.s32.totalorder %s27, 1
      %p64 = por %p62, %p63
      %p66 = scmp.ne.s32.totalorder %s49, %s65
      %p67 = scmp.eq.s32.totalorder %s27, 0
      %p68 = por %p66, %p67
      %s69 = ssub.s32 %s28, %s40
      %s70 = ssub.s32 %s29, %s36
      %s71 = sor.u32 %s69, %s70
      %p72 = scmp.eq.s32.totalorder %s71, 0
      %s74 = sadd.s32 %s73, 1
      %s75 = scalar_select %p72, %s73, %s74
      %p78 = pneg %p72
      %p79 = scmp.eq.s32.totalorder %s21, 1
      %p80 = por %p78, %p79
      %p81 = scmp.ne.s32.totalorder %s73, %s76
      %p82 = scmp.eq.s32.totalorder %s21, 0
      %p83 = por %p81, %p82
      %p84 = scmp.ne.s32.totalorder %s73, %s76
      %p85 = scmp.eq.s32.totalorder %s26, 1
      %p86 = por %p84, %p85
      %p87 = scmp.ne.s32.totalorder %s76, %s77
      %p88 = scmp.eq.s32.totalorder %s26, 0
      %p89 = por %p87, %p88
      %p90 = scmp.ne.s32.totalorder %s76, %s77
      %p91 = scmp.eq.s32.totalorder %s27, 1
      %p92 = por %p90, %p91
      %p94 = scmp.ne.s32.totalorder %s77, %s93
      %p95 = scmp.eq.s32.totalorder %s27, 0
      %p96 = por %p94, %p95
      %s98 = sadd.s32 %s97, 1
      %p101 = scmp.eq.s32.totalorder %s21, 1
      %p102 = scmp.ne.s32.totalorder %s97, %s99
      %p103 = scmp.eq.s32.totalorder %s21, 0
      %p104 = por %p102, %p103
      %p105 = scmp.ne.s32.totalorder %s97, %s99
      %p106 = scmp.eq.s32.totalorder %s26, 1
      %p107 = por %p105, %p106
      %p108 = scmp.ne.s32.totalorder %s99, %s100
      %p109 = scmp.eq.s32.totalorder %s26, 0
      %p110 = por %p108, %p109
      %p111 = scmp.ne.s32.totalorder %s99, %s100
      %p112 = scmp.eq.s32.totalorder %s27, 1
      %p113 = por %p111, %p112
      %p115 = scmp.ne.s32.totalorder %s100, %s114
      %p116 = scmp.eq.s32.totalorder %s27, 0
      %p117 = por %p115, %p116
      %s119 = sadd.s32 %s118, 1
      %p122 = scmp.eq.s32.totalorder %s21, 1
      %p123 = scmp.ne.s32.totalorder %s118, %s120
      %p124 = scmp.eq.s32.totalorder %s21, 0
      %p125 = por %p123, %p124
      %p126 = scmp.ne.s32.totalorder %s118, %s120
      %p127 = scmp.eq.s32.totalorder %s26, 1
      %p128 = por %p126, %p127
      %p129 = scmp.ne.s32.totalorder %s120, %s121
      %p130 = scmp.eq.s32.totalorder %s26, 0
      %p131 = por %p129, %p130
      %p132 = scmp.ne.s32.totalorder %s120, %s121
      %p133 = scmp.eq.s32.totalorder %s27, 1
      %p134 = por %p132, %p133
      %p136 = scmp.ne.s32.totalorder %s121, %s135
      %p137 = scmp.eq.s32.totalorder %s27, 0
      %p138 = por %p136, %p137
      %s140 = sadd.s32 %s139, 1
      %p143 = scmp.eq.s32.totalorder %s21, 1
      %p144 = scmp.ne.s32.totalorder %s139, %s141
      %p145 = scmp.eq.s32.totalorder %s21, 0
      %p146 = por %p144, %p145
      %p147 = scmp.ne.s32.totalorder %s139, %s141
      %p148 = scmp.eq.s32.totalorder %s26, 1
      %p149 = por %p147, %p148
      %p150 = scmp.ne.s32.totalorder %s141, %s142
      %p151 = scmp.eq.s32.totalorder %s26, 0
      %p152 = por %p150, %p151
      %p153 = scmp.ne.s32.totalorder %s141, %s142
      %p154 = scmp.eq.s32.totalorder %s27, 1
      %p155 = por %p153, %p154
      %p157 = scmp.ne.s32.totalorder %s142, %s156
      %p158 = scmp.eq.s32.totalorder %s27, 0
      %p159 = por %p157, %p158
      %s161 = sadd.s32 %s160, 1
      %p164 = scmp.eq.s32.totalorder %s21, 1
      %p165 = scmp.ne.s32.totalorder %s160, %s162
      %p166 = scmp.eq.s32.totalorder %s21, 0
      %p167 = por %p165, %p166
      %p168 = scmp.ne.s32.totalorder %s160, %s162
      %p169 = scmp.eq.s32.totalorder %s26, 1
      %p170 = por %p168, %p169
      %p171 = scmp.ne.s32.totalorder %s162, %s163
      %p172 = scmp.eq.s32.totalorder %s26, 0
      %p173 = por %p171, %p172
      %p174 = scmp.ne.s32.totalorder %s162, %s163
      %p175 = scmp.eq.s32.totalorder %s27, 1
      %p176 = por %p174, %p175
      %p178 = scmp.ne.s32.totalorder %s163, %s177
      %p179 = scmp.eq.s32.totalorder %s27, 0
      %p180 = por %p178, %p179
      %s182 = sadd.s32 %s181, 1
      %p185 = scmp.eq.s32.totalorder %s21, 1
      %p186 = scmp.ne.s32.totalorder %s181, %s183
      %p187 = scmp.eq.s32.totalorder %s21, 0
      %p188 = por %p186, %p187
      %p189 = scmp.ne.s32.totalorder %s181, %s183
      %p190 = scmp.eq.s32.totalorder %s26, 1
      %p191 = por %p189, %p190
      %p192 = scmp.ne.s32.totalorder %s183, %s184
      %p193 = scmp.eq.s32.totalorder %s26, 0
      %p194 = por %p192, %p193
      %p195 = scmp.ne.s32.totalorder %s183, %s184
      %p196 = scmp.eq.s32.totalorder %s27, 1
      %p197 = por %p195, %p196
      %p199 = scmp.ne.s32.totalorder %s184, %s198
      %p200 = scmp.eq.s32.totalorder %s27, 0
      %p201 = por %p199, %p200
      %s203 = sadd.s32 %s202, 1
      %p206 = scmp.eq.s32.totalorder %s21, 1
      %p207 = scmp.ne.s32.totalorder %s202, %s204
      %p208 = scmp.eq.s32.totalorder %s21, 0
      %p209 = por %p207, %p208
      %p210 = scmp.ne.s32.totalorder %s202, %s204
      %p211 = scmp.eq.s32.totalorder %s26, 1
      %p212 = por %p210, %p211
      %p213 = scmp.ne.s32.totalorder %s204, %s205
      %p214 = scmp.eq.s32.totalorder %s26, 0
      %p215 = por %p213, %p214
      %p216 = scmp.ne.s32.totalorder %s204, %s205
      %p217 = scmp.eq.s32.totalorder %s27, 1
      %p218 = por %p216, %p217
      %p220 = scmp.ne.s32.totalorder %s205, %s219
      %p221 = scmp.eq.s32.totalorder %s27, 0
      %p222 = por %p220, %p221
      %s224 = sadd.s32 %s223, 1
      %p227 = scmp.eq.s32.totalorder %s21, 1
      %p228 = scmp.ne.s32.totalorder %s223, %s225
      %p229 = scmp.eq.s32.totalorder %s21, 0
      %p230 = por %p228, %p229
      %p231 = scmp.ne.s32.totalorder %s223, %s225
      %p232 = scmp.eq.s32.totalorder %s26, 1
      %p233 = por %p231, %p232
      %p234 = scmp.ne.s32.totalorder %s225, %s226
      %p235 = scmp.eq.s32.totalorder %s26, 0
      %p236 = por %p234, %p235
      %p237 = scmp.ne.s32.totalorder %s225, %s226
      %p238 = scmp.eq.s32.totalorder %s27, 1
      %p239 = por %p237, %p238
      %p241 = scmp.ne.s32.totalorder %s226, %s240
      %p242 = scmp.eq.s32.totalorder %s27, 0
      %p243 = por %p241, %p242
      %s245 = sadd.s32 %s244, 1
      %p248 = scmp.eq.s32.totalorder %s21, 1
      %p249 = scmp.ne.s32.totalorder %s244, %s246
      %p250 = scmp.eq.s32.totalorder %s21, 0
      %p251 = por %p249, %p250
      %p252 = scmp.ne.s32.totalorder %s244, %s246
      %p253 = scmp.eq.s32.totalorder %s26, 1
      %p254 = por %p252, %p253
      %p255 = scmp.ne.s32.totalorder %s246, %s247
      %p256 = scmp.eq.s32.totalorder %s26, 0
      %p257 = por %p255, %p256
      %p258 = scmp.ne.s32.totalorder %s246, %s247
      %p259 = scmp.eq.s32.totalorder %s27, 1
      %p260 = por %p258, %p259
      %p262 = scmp.ne.s32.totalorder %s247, %s261
      %p263 = scmp.eq.s32.totalorder %s27, 0
      %p264 = por %p262, %p263
      %s266 = sadd.s32 %s265, 1
      %p269 = scmp.eq.s32.totalorder %s21, 1
      %p270 = scmp.ne.s32.totalorder %s265, %s267
      %p271 = scmp.eq.s32.totalorder %s21, 0
      %p272 = por %p270, %p271
      %p273 = scmp.ne.s32.totalorder %s265, %s267
      %p274 = scmp.eq.s32.totalorder %s26, 1
      %p275 = por %p273, %p274
      %p276 = scmp.ne.s32.totalorder %s267, %s268
      %p277 = scmp.eq.s32.totalorder %s26, 0
      %p278 = por %p276, %p277
      %p279 = scmp.ne.s32.totalorder %s267, %s268
      %p280 = scmp.eq.s32.totalorder %s27, 1
      %p281 = por %p279, %p280
      %p283 = scmp.ne.s32.totalorder %s268, %s282
      %p284 = scmp.eq.s32.totalorder %s27, 0
      %p285 = por %p283, %p284
      %s287 = sadd.s32 %s286, 1
      %p290 = scmp.eq.s32.totalorder %s21, 1
      %p291 = scmp.ne.s32.totalorder %s286, %s288
      %p292 = scmp.eq.s32.totalorder %s21, 0
      %p293 = por %p291, %p292
      %p294 = scmp.ne.s32.totalorder %s286, %s288
      %p295 = scmp.eq.s32.totalorder %s26, 1
      %p296 = por %p294, %p295
      %p297 = scmp.ne.s32.totalorder %s288, %s289
      %p298 = scmp.eq.s32.totalorder %s26, 0
      %p299 = por %p297, %p298
      %p300 = scmp.ne.s32.totalorder %s288, %s289
      %p301 = scmp.eq.s32.totalorder %s27, 1
      %p302 = por %p300, %p301
      %p304 = scmp.ne.s32.totalorder %s289, %s303
      %p305 = scmp.eq.s32.totalorder %s27, 0
      %p306 = por %p304, %p305
      %s307 = ssub.s32 %s28, %s40
      %s308 = ssub.s32 %s29, %s36
      %s309 = sor.u32 %s307, %s308
      %p310 = scmp.eq.s32.totalorder %s309, 0
      %s312 = sadd.s32 %s311, 1
      %s313 = scalar_select %p310, %s311, %s312
      %p316 = pneg %p310
      %p317 = scmp.eq.s32.totalorder %s21, 1
      %p318 = por %p316, %p317
      %p319 = scmp.ne.s32.totalorder %s311, %s314
      %p320 = scmp.eq.s32.totalorder %s21, 0
      %p321 = por %p319, %p320
      %p322 = scmp.ne.s32.totalorder %s311, %s314
      %p323 = scmp.eq.s32.totalorder %s26, 1
      %p324 = por %p322, %p323
      %p325 = scmp.ne.s32.totalorder %s314, %s315
      %p326 = scmp.eq.s32.totalorder %s26, 0
      %p327 = por %p325, %p326
      %p328 = scmp.ne.s32.totalorder %s314, %s315
      %p329 = scmp.eq.s32.totalorder %s27, 1
      %p330 = por %p328, %p329
      %p332 = scmp.ne.s32.totalorder %s315, %s331
      %p333 = scmp.eq.s32.totalorder %s27, 0
      %p334 = por %p332, %p333
      %p335 = scmp.le.s32.totalorder 1, %s21
      %p336 = scmp.lt.s32.totalorder %s21, 3
      %p337 = pnand %p335, %p336
      %p338 = pneg %p337
      // Predicated region
      $region9: #{tpu_custom_call.1} parent=5 // pred_check
        _
      $region10: #{tpu_custom_call.1} parent=5 // pred_check_branch
        %340 = sbr.rel (%p337) target = $region12
      $region11: #{tpu_custom_call.1} parent=5 // pred_region
        %s341 = ssub.s32 %s21, 1
        // Predicated region
        $region13: #{tpu_custom_call.1} parent=11 // pred_check
          %p342 = pneg %p110
        $region14: #{tpu_custom_call.1} parent=11 // pred_check_branch
          %344 = sbr.rel (%p342) target = $region16
        $region15: #{tpu_custom_call.1} parent=11 // pred_region
          _
        $region16: #{tpu_custom_call.1} parent=11 // pred_fallthru
          _
        // Predicated region
        $region17: #{tpu_custom_call.1} parent=11 // pred_check
          %p345 = pneg %p131
        $region18: #{tpu_custom_call.1} parent=11 // pred_check_branch
          %347 = sbr.rel (%p345) target = $region20
        $region19: #{tpu_custom_call.1} parent=11 // pred_region
          _
        $region20: #{tpu_custom_call.1} parent=11 // pred_fallthru
          _
        // Predicated region
        $region21: #{tpu_custom_call.1} parent=11 // pred_check
          %p348 = pneg %p152
        $region22: #{tpu_custom_call.1} parent=11 // pred_check_branch
          %350 = sbr.rel (%p348) target = $region24
        $region23: #{tpu_custom_call.1} parent=11 // pred_region
          _
        $region24: #{tpu_custom_call.1} parent=11 // pred_fallthru
          _
        // Predicated region
        $region25: #{tpu_custom_call.1} parent=11 // pred_check
          %p351 = pneg %p173
        $region26: #{tpu_custom_call.1} parent=11 // pred_check_branch
          %353 = sbr.rel (%p351) target = $region28
        $region27: #{tpu_custom_call.1} parent=11 // pred_region
          _
        $region28: #{tpu_custom_call.1} parent=11 // pred_fallthru
          _
        // Predicated region
        $region29: #{tpu_custom_call.1} parent=11 // pred_check
          %p354 = pneg %p194
        $region30: #{tpu_custom_call.1} parent=11 // pred_check_branch
          %356 = sbr.rel (%p354) target = $region32
        $region31: #{tpu_custom_call.1} parent=11 // pred_region
          _
        $region32: #{tpu_custom_call.1} parent=11 // pred_fallthru
          _
        // Predicated region
        $region33: #{tpu_custom_call.1} parent=11 // pred_check
          %p357 = pneg %p215
        $region34: #{tpu_custom_call.1} parent=11 // pred_check_branch
          %359 = sbr.rel (%p357) target = $region36
        $region35: #{tpu_custom_call.1} parent=11 // pred_region
          _
        $region36: #{tpu_custom_call.1} parent=11 // pred_fallthru
          _
        // Predicated region
        $region37: #{tpu_custom_call.1} parent=11 // pred_check
          %p360 = pneg %p236
        $region38: #{tpu_custom_call.1} parent=11 // pred_check_branch
          %362 = sbr.rel (%p360) target = $region40
        $region39: #{tpu_custom_call.1} parent=11 // pred_region
          _
        $region40: #{tpu_custom_call.1} parent=11 // pred_fallthru
          _
        // Predicated region
        $region41: #{tpu_custom_call.1} parent=11 // pred_check
          %p363 = pneg %p257
        $region42: #{tpu_custom_call.1} parent=11 // pred_check_branch
          %365 = sbr.rel (%p363) target = $region44
        $region43: #{tpu_custom_call.1} parent=11 // pred_region
          _
        $region44: #{tpu_custom_call.1} parent=11 // pred_fallthru
          _
        // Predicated region
        $region45: #{tpu_custom_call.1} parent=11 // pred_check
          %p366 = pneg %p278
        $region46: #{tpu_custom_call.1} parent=11 // pred_check_branch
          %368 = sbr.rel (%p366) target = $region48
        $region47: #{tpu_custom_call.1} parent=11 // pred_region
          _
        $region48: #{tpu_custom_call.1} parent=11 // pred_fallthru
          _
        // Predicated region
        $region49: #{tpu_custom_call.1} parent=11 // pred_check
          %p369 = pneg %p299
        $region50: #{tpu_custom_call.1} parent=11 // pred_check_branch
          %371 = sbr.rel (%p369) target = $region52
        $region51: #{tpu_custom_call.1} parent=11 // pred_region
          _
        $region52: #{tpu_custom_call.1} parent=11 // pred_fallthru
          _
      $region12: #{tpu_custom_call.1} parent=5 // pred_fallthru
        _
      %p372 = scmp.lt.s32.totalorder %s21, 2
      // Predicated region
      $region53: #{tpu_custom_call.1} parent=5 // pred_check
        %p373 = pneg %p372
      $region54: #{tpu_custom_call.1} parent=5 // pred_check_branch
        %375 = sbr.rel (%p373) target = $region56
      $region55: #{tpu_custom_call.1} parent=5 // pred_region
        // Predicated region
        $region57: #{tpu_custom_call.1} parent=55 // pred_check
          %p376 = pneg %p55
        $region58: #{tpu_custom_call.1} parent=55 // pred_check_branch
          %378 = sbr.rel (%p376) target = $region60
        $region59: #{tpu_custom_call.1} parent=55 // pred_region
          %p379 = scmp.lt.s32.totalorder %s28, 1
          %s380 = scalar_select %p379, %s28, 1
          %p381 = scmp.lt.s32.totalorder %s29, 0
          %s382 = scalar_select %p381, %s29, 0
          %s383 = smul.addr %s382, 2
          %s384 = smul.addr %s380, 2
          %s385 = sadd.s32 %s383, %s384
          %s386 = smul.addr %s385, 4
          %s387 = scalar_lea.vmem %s0, %s386
        $region60: #{tpu_custom_call.1} parent=55 // pred_fallthru
          _
        // Predicated region
        $region61: #{tpu_custom_call.1} parent=55 // pred_check
          %p388 = pneg %p83
        $region62: #{tpu_custom_call.1} parent=55 // pred_check_branch
          %390 = sbr.rel (%p388) target = $region64
        $region63: #{tpu_custom_call.1} parent=55 // pred_region
          %p391 = scmp.lt.s32.totalorder %s28, 1
          %s392 = scalar_select %p391, %s28, 1
          %p393 = scmp.lt.s32.totalorder %s29, 0
          %s394 = scalar_select %p393, %s29, 0
          %s395 = smul.addr %s394, 2
          %s396 = smul.addr %s392, 2
          %s397 = sadd.s32 %s395, %s396
          %s398 = scalar_lea.vmem %s1, %s397
        $region64: #{tpu_custom_call.1} parent=55 // pred_fallthru
          _
      $region56: #{tpu_custom_call.1} parent=5 // pred_fallthru
        _
      %p399 = scmp.le.s32.totalorder 1, %s21
      %p400 = scmp.lt.s32.totalorder %s21, 3
      %p401 = pnand %p399, %p400
      %p402 = pneg %p401
      // Predicated region
      $region65: #{tpu_custom_call.1} parent=5 // pred_check
        _
      $region66: #{tpu_custom_call.1} parent=5 // pred_check_branch
        %404 = sbr.rel (%p401) target = $region68
      $region67: #{tpu_custom_call.1} parent=5 // pred_region
        %s405 = ssub.s32 %s21, 1
        %p406 = scmp.lt.s32.totalorder %s30, 1
        %s407 = scalar_select %p406, %s30, 1
        %p408 = scmp.lt.s32.totalorder %s31, 0
        %s409 = scalar_select %p408, %s31, 0
        %s410 = smul.addr %s409, 2
        %s411 = smul.addr %s407, 2
        %s412 = sadd.s32 %s410, %s411
        %s413 = smul.addr %s412, 4
        %s414 = scalar_lea.vmem %s0, %s413
        %p415 = pneg %p61
        %p416 = pneg %p58
        %p417 = scmp.lt.s32.totalorder %s30, 1
        %s418 = scalar_select %p417, %s30, 1
        %p419 = scmp.lt.s32.totalorder %s31, 0
        %s420 = scalar_select %p419, %s31, 0
        %s421 = smul.addr %s420, 2
        %s422 = smul.addr %s418, 2
        %s423 = sadd.s32 %s421, %s422
        %s424 = scalar_lea.vmem %s1, %s423
        %p425 = pneg %p89
        %p426 = pneg %p86
        %p427 = pneg %p110
        %p428 = pneg %p107
        %p429 = pneg %p131
        %p430 = pneg %p128
        %p431 = pneg %p152
        %p432 = pneg %p149
        %p433 = pneg %p173
        %p434 = pneg %p170
        %p435 = pneg %p194
        %p436 = pneg %p191
        %p437 = pneg %p215
        %p438 = pneg %p212
        %p439 = pneg %p236
        %p440 = pneg %p233
        %p441 = pneg %p257
        %p442 = pneg %p254
        %p443 = pneg %p278
        %p444 = pneg %p275
        %p445 = pneg %p299
        %p446 = pneg %p296
        %p447 = pneg %p327
        %p448 = pneg %p324
        %s449 = sand.u32 %s314, 1
        %s450 = scalar_lea.sflag [#allocation3], %s449
        %s451 = sand.u32 %s314, 1
        %s452 = smul.addr %s451, 8
        %s453 = scalar_lea.vmem [#allocation2], %s452
        %p454 = scmp.lt.s32.totalorder %s30, 1
        %s455 = scalar_select %p454, %s30, 1
        %p456 = scmp.lt.s32.totalorder %s31, 0
        %s457 = scalar_select %p456, %s31, 0
        %s458 = smul.addr %s457, 2
        %s459 = smul.addr %s455, 2
        %s460 = sadd.s32 %s458, %s459
        %s461 = smul.addr %s460, 4
        %s462 = scalar_lea.vmem %s0, %s461
        %p463 = scmp.lt.s32.totalorder %s30, 1
        %s464 = scalar_select %p463, %s30, 1
        %p465 = scmp.lt.s32.totalorder %s31, 0
        %s466 = scalar_select %p465, %s31, 0
        %s467 = smul.addr %s466, 2
        %s468 = smul.addr %s464, 2
        %s469 = sadd.s32 %s467, %s468
        %s470 = scalar_lea.vmem %s1, %s469
        %v472 = vld [vmem:[%s462] sm:$0xff]
        %v473 = vld [vmem:[%s470] sm:$0x3]
        %v474 = vlaneseq
        %v475 = vand.u32 %v474, 127
        %v476 = vadd.s32 %v475, 128
        %s477 = smul.u32 %s31, 128
        %s478 = ssub.s32 %s477, 6
        %v479 = vstv %s478
        %v480 = vadd.s32 %v479, %v475
        %v481 = vadd.s32 %v479, %v476
        %vm482 = vcmp.ge.s32.totalorder %v480, 0
        %vm483 = vcmp.ge.s32.totalorder %v481, 0
        %vm484 = vcmp.lt.s32.totalorder %v480, 16
        %vm485 = vcmp.lt.s32.totalorder %v481, 16
        %vm486 = vmand %vm482, %vm484
        %vm487 = vmand %vm483, %vm485
        %vm488 = vcmp.ge.s32.totalorder %v475, 2
        %vm489 = vcmp.ge.s32.totalorder %v476, 2
        %vm490 = vcmp.lt.s32.totalorder %v475, 138
        %vm491 = vcmp.lt.s32.totalorder %v476, 138
        %v493 = vlaneseq
        %v494 = vshrl.u32 %v493, 7
        %v495 = vsub.s32 0, %v494
        %v496 = vrot.slane %v473, %v495
        %v497 = vlaneseq
        %v498 = vshrl.u32 %v497, 7
        %v499 = vsub.s32 1, %v498
        %v500 = vrot.slane %v473, %v499
        %v503 = vld [vmem:[%s2] sm:$0xf]
        %v504 = vld [vmem:[%s2 + $0x4] sm:$0xf]
        %v505 = vld [vmem:[%s2 + $0x8] sm:$0xf]
        %v506 = vld [vmem:[%s2 + $0xc] sm:$0xf]
        %v507 = vld [vmem:[%s3] sm:$0xff]
        %v508 = vld [vmem:[%s3 + $0x8] sm:$0xff]
        %v509 = vld [vmem:[%s3 + $0x10] sm:$0xff]
        %v510 = vld [vmem:[%s3 + $0x18] sm:$0xff]
        %512 = vset.pattern.permute.xlu0 0
        %513 = vperm.xlu0 %512, %v507
        %v514 = vpop.permute.xlu0 %513
        %517 = vset.pattern.permute.xlu0 0
        %518 = vperm.xlu0 %517, %v508
        %v519 = vpop.permute.xlu0 %518
        %522 = vset.pattern.permute.xlu0 0
        %523 = vperm.xlu0 %522, %v509
        %v524 = vpop.permute.xlu0 %523
        %527 = vset.pattern.permute.xlu0 0
        %528 = vperm.xlu0 %527, %v510
        %v529 = vpop.permute.xlu0 %528
        %v535 = vunpack.c.l.b16 %v503
        %v536 = vunpack.c.l.b16 %v504
        %v537 = vunpack.c.l.b16 %v505
        %v538 = vunpack.c.l.b16 %v506
        %v539 = vpack.c.b16 %v536, %v535
        %v540 = vpack.c.b16 %v538, %v537
        %v542 = vunpack.c.l.b16 %v472
        %v543 = vunpack.c.h.b16 %v472
        %v544 = vpack.c.b16 %v542, %v542
        %v545 = vpack.c.b16 %v543, %v543
        %vm546 = vcmask 64512
        %v548 = vsel %vm546, %v539, 0
        %v551 = vsel %vm546, %v540, 0
        %vm553 = vcmask 1043456
        %v555 = vsel %vm553, %v544, 0
        %v558 = vsel %vm553, %v545, 0
        %560 = vmatprep.subr.bf16.mxu0 %v558
        %561 = vmatpush1.bf16.msra.mxu0 %v555
        %562 = vmatprep.subr.bf16.mxu0 0
        %563 = vmatpush1.bf16.msra.mxu0 0
        %564 = vmatprep.subr.bf16.mxu0 0
        %565 = vmatpush1.bf16.msra.mxu0 0
        %566 = vmatprep.subr.bf16.mxu0 0
        %567 = vmatpush1.bf16.msra.mxu0 0
        %568 = vmatprep.subr.bf16.mxu0 0
        %569 = vmatpush1.bf16.msra.mxu0 0
        %570 = vmatprep.subr.bf16.mxu0 0
        %571 = vmatpush1.bf16.msra.mxu0 0
        %572 = vmatprep.subr.bf16.mxu0 0
        %573 = vmatpush1.bf16.msra.mxu0 0
        %574 = vmatprep.subr.bf16.mxu0 0
        %575 = vmatpush1.bf16.msra.mxu0 0
        %576 = vmatprep.subr.bf16.mxu0 0
        %577 = vmatpush1.bf16.msra.mxu0 0
        %578 = vmatprep.subr.bf16.mxu0 0
        %579 = vmatpush1.bf16.msra.mxu0 0
        %580 = vmatprep.subr.bf16.mxu0 0
        %581 = vmatpush1.bf16.msra.mxu0 0
        %582 = vmatprep.subr.bf16.mxu0 0
        %583 = vmatpush1.bf16.msra.mxu0 0
        %584 = vmatprep.subr.bf16.mxu0 0
        %585 = vmatpush1.bf16.msra.mxu0 0
        %586 = vmatprep.subr.bf16.mxu0 0
        %587 = vmatpush1.bf16.msra.mxu0 0
        %588 = vmatprep.subr.bf16.mxu0 0
        %589 = vmatpush1.bf16.msra.mxu0 0
        %590 = vmatprep.subr.bf16.mxu0 0
        %591 = vmatpush1.bf16.msra.mxu0 0
        %592 = vmatprep.mubr.bf16.mxu0 0
        %593 = vmatmul.mubr.bf16.gmra.mrb[0].mxu0 %v548
        %v594 = vpop.f32.mrb[0].mxu0
        %v595 = vadd.f32 %v514, %v594
        %v596 = vpop.f32.mrb[0].mxu0
        %v597 = vadd.f32 %v514, %v596
        %v598 = vpop.f32.mrb[0].mxu0
        %v599 = vadd.f32 %v519, %v598
        %v600 = vpop.f32.mrb[0].mxu0
        %v601 = vadd.f32 %v519, %v600
        %602 = vmatprep.mubr.bf16.mxu0 0
        %603 = vmatmul.mubr.bf16.gmra.mrb[0].mxu0 %v551
        %v604 = vpop.f32.mrb[0].mxu0
        %v605 = vadd.f32 %v524, %v604
        %v606 = vpop.f32.mrb[0].mxu0
        %v607 = vadd.f32 %v524, %v606
        %v608 = vpop.f32.mrb[0].mxu0
        %v609 = vadd.f32 %v529, %v608
        %v610 = vpop.f32.mrb[0].mxu0
        %v611 = vadd.f32 %v529, %v610
        %612 = vdwg.mxu0
        %v613 = vsel %vm486, 1, 0
        %v614 = vsel %vm487, 1, 0
        %vm615 = vcmp.eq.s32.totalorder %v613, 1
        %vm616 = vcmp.eq.s32.totalorder %v614, 1
        %v617 = vsel %vm615, %v595, 0.0
        %v618 = vsel %vm616, %v597, 0.0
        %v619 = vsel %vm615, %v599, 0.0
        %v620 = vsel %vm616, %v601, 0.0
        %v621 = vsel %vm615, %v605, 0.0
        %v622 = vsel %vm616, %v607, 0.0
        %v623 = vsel %vm615, %v609, 0.0
        %v624 = vsel %vm616, %v611, 0.0
        %vm625 = vcmask 1047648
        %626 = vrot.lane.b32.xlu0 %v617, 12
        %v627 = vpop.permute.xlu0 %626
        %v628 = vsel %vm625, %v627, %v618
        %629 = vrot.lane.b32.xlu0 %v619, 12
        %v630 = vpop.permute.xlu0 %629
        %v631 = vsel %vm625, %v630, %v620
        %632 = vrot.lane.b32.xlu0 %v621, 12
        %v633 = vpop.permute.xlu0 %632
        %v634 = vsel %vm625, %v633, %v622
        %635 = vrot.lane.b32.xlu0 %v623, 12
        %v636 = vpop.permute.xlu0 %635
        %v637 = vsel %vm625, %v636, %v624
        %638 = vrot.lane.b32.xlu0 %v628, 12
        %v639 = vpop.permute.xlu0 %638
        %640 = vrot.lane.b32.xlu0 %v631, 12
        %v641 = vpop.permute.xlu0 %640
        %642 = vrot.lane.b32.xlu0 %v634, 12
        %v643 = vpop.permute.xlu0 %642
        %644 = vrot.lane.b32.xlu0 %v637, 12
        %v645 = vpop.permute.xlu0 %644
        %v646 = vsel %vm625, %v639, %v627
        %v647 = vsel %vm625, %v641, %v630
        %v648 = vsel %vm625, %v643, %v633
        %v649 = vsel %vm625, %v645, %v636
        %v650 = vsel %vm488, 1, 0
        %v651 = vsel %vm489, 1, 0
        %vm652 = vcmp.eq.s32.totalorder %v650, 1
        %vm653 = vcmp.eq.s32.totalorder %v651, 1
        %662 = vrot.lane.b32.xlu0 %v628, 118
        %v663 = vpop.permute.xlu0 %662
        %664 = vrot.lane.b32.xlu0 %v646, 118
        %v665 = vpop.permute.xlu0 %664
        %666 = vrot.lane.b32.xlu0 %v631, 118
        %v667 = vpop.permute.xlu0 %666
        %668 = vrot.lane.b32.xlu0 %v647, 118
        %v669 = vpop.permute.xlu0 %668
        %670 = vrot.lane.b32.xlu0 %v634, 118
        %v671 = vpop.permute.xlu0 %670
        %672 = vrot.lane.b32.xlu0 %v648, 118
        %v673 = vpop.permute.xlu0 %672
        %674 = vrot.lane.b32.xlu0 %v637, 118
        %v675 = vpop.permute.xlu0 %674
        %676 = vrot.lane.b32.xlu0 %v649, 118
        %v677 = vpop.permute.xlu0 %676
        %vm678 = vcmask 965632
        %v679 = vsel %vm678, %v663, %v665
        %v680 = vsel %vm678, %v667, %v669
        %v681 = vsel %vm678, %v671, %v673
        %v682 = vsel %vm678, %v675, %v677
        %v691 = vsel %vm652, %v679, 0.0
        %v692 = vsel %vm653, %v665, 0.0
        %v693 = vsel %vm652, %v680, 0.0
        %v694 = vsel %vm653, %v669, 0.0
        %v695 = vsel %vm652, %v681, 0.0
        %v696 = vsel %vm653, %v673, 0.0
        %v697 = vsel %vm652, %v682, 0.0
        %v698 = vsel %vm653, %v677, 0.0
        %v699 = vsel %vm490, 1, 0
        %v700 = vsel %vm491, 1, 0
        %vm701 = vcmp.eq.s32.totalorder %v699, 1
        %vm702 = vcmp.eq.s32.totalorder %v700, 1
        %707 = vrot.lane.b32.xlu0 %v617, 126
        %v708 = vpop.permute.xlu0 %707
        %709 = vrot.lane.b32.xlu0 %v628, 126
        %v710 = vpop.permute.xlu0 %709
        %711 = vrot.lane.b32.xlu0 %v619, 126
        %v712 = vpop.permute.xlu0 %711
        %713 = vrot.lane.b32.xlu0 %v631, 126
        %v714 = vpop.permute.xlu0 %713
        %715 = vrot.lane.b32.xlu0 %v621, 126
        %v716 = vpop.permute.xlu0 %715
        %717 = vrot.lane.b32.xlu0 %v634, 126
        %v718 = vpop.permute.xlu0 %717
        %719 = vrot.lane.b32.xlu0 %v623, 126
        %v720 = vpop.permute.xlu0 %719
        %721 = vrot.lane.b32.xlu0 %v637, 126
        %v722 = vpop.permute.xlu0 %721
        %vm723 = vcmask 1031168
        %v724 = vsel %vm723, %v708, %v710
        %v725 = vsel %vm723, %v712, %v714
        %v726 = vsel %vm723, %v716, %v718
        %v727 = vsel %vm723, %v720, %v722
        %v736 = vsel %vm701, %v724, 0.0
        %v737 = vsel %vm702, %v710, 0.0
        %v738 = vsel %vm701, %v725, 0.0
        %v739 = vsel %vm702, %v714, 0.0
        %v740 = vsel %vm701, %v726, 0.0
        %v741 = vsel %vm702, %v718, 0.0
        %v742 = vsel %vm701, %v727, 0.0
        %v743 = vsel %vm702, %v722, 0.0
        %v744 = vld [vmem:[%s4] sm:$0xf]
        %v745 = vld [vmem:[%s4 + $0x4] sm:$0xf]
        %v746 = vld [vmem:[%s4 + $0x8] sm:$0xf]
        %v747 = vld [vmem:[%s4 + $0xc] sm:$0xf]
        %v748 = vpack.c.bf16 %v693, %v691
        %v749 = vpack.c.bf16 %v694, %v692
        %v750 = vpack.c.bf16 %v697, %v695
        %v751 = vpack.c.bf16 %v698, %v696
        %s752 = scalar_lea.vmem %s4, 16
        %v753 = vld [vmem:[%s752] sm:$0xf]
        %v754 = vld [vmem:[%s752 + $0x4] sm:$0xf]
        %v755 = vld [vmem:[%s752 + $0x8] sm:$0xf]
        %v756 = vld [vmem:[%s752 + $0xc] sm:$0xf]
        %v757 = vpack.c.bf16 %v619, %v617
        %v758 = vpack.c.bf16 %v620, %v618
        %v759 = vpack.c.bf16 %v623, %v621
        %v760 = vpack.c.bf16 %v624, %v622
        %v765 = vunpack.c.l.b16 %v753
        %v766 = vunpack.c.l.b16 %v754
        %v767 = vunpack.c.l.b16 %v755
        %v768 = vunpack.c.l.b16 %v756
        %v769 = vpack.c.b16 %v766, %v765
        %v770 = vpack.c.b16 %v768, %v767
        %vm771 = vcmask 261120
        %v773 = vsel %vm771, %v769, 0
        %v776 = vsel %vm771, %v770, 0
        %778 = vmatprep.subr.bf16.mxu0 %v758
        %779 = vmatpush1.bf16.msra.mxu0 %v757
        %780 = vmatprep.subr.bf16.mxu0 %v760
        %781 = vmatpush1.bf16.msra.mxu0 %v759
        %782 = vmatprep.subr.bf16.mxu0 0
        %783 = vmatpush1.bf16.msra.mxu0 0
        %784 = vmatprep.subr.bf16.mxu0 0
        %785 = vmatpush1.bf16.msra.mxu0 0
        %786 = vmatprep.subr.bf16.mxu0 0
        %787 = vmatpush1.bf16.msra.mxu0 0
        %788 = vmatprep.subr.bf16.mxu0 0
        %789 = vmatpush1.bf16.msra.mxu0 0
        %790 = vmatprep.subr.bf16.mxu0 0
        %791 = vmatpush1.bf16.msra.mxu0 0
        %792 = vmatprep.subr.bf16.mxu0 0
        %793 = vmatpush1.bf16.msra.mxu0 0
        %794 = vmatprep.subr.bf16.mxu0 0
        %795 = vmatpush1.bf16.msra.mxu0 0
        %796 = vmatprep.subr.bf16.mxu0 0
        %797 = vmatpush1.bf16.msra.mxu0 0
        %798 = vmatprep.subr.bf16.mxu0 0
        %799 = vmatpush1.bf16.msra.mxu0 0
        %800 = vmatprep.subr.bf16.mxu0 0
        %801 = vmatpush1.bf16.msra.mxu0 0
        %802 = vmatprep.subr.bf16.mxu0 0
        %803 = vmatpush1.bf16.msra.mxu0 0
        %804 = vmatprep.subr.bf16.mxu0 0
        %805 = vmatpush1.bf16.msra.mxu0 0
        %806 = vmatprep.subr.bf16.mxu0 0
        %807 = vmatpush1.bf16.msra.mxu0 0
        %808 = vmatprep.subr.bf16.mxu0 0
        %809 = vmatpush1.bf16.msra.mxu0 0
        %810 = vmatprep.mubr.bf16.mxu0 0
        %811 = vmatmul.mubr.bf16.gmra.mrb[0].mxu0 %v773
        %v812 = vpop.f32.mrb[0].mxu0
        %v813 = vadd.f32 0.0, %v812
        %v814 = vpop.f32.mrb[0].mxu0
        %v815 = vadd.f32 0.0, %v814
        %v816 = vpop.f32.mrb[0].mxu0
        %v817 = vadd.f32 0.0, %v816
        %v818 = vpop.f32.mrb[0].mxu0
        %v819 = vadd.f32 0.0, %v818
        %820 = vmatprep.mubr.bf16.mxu0 0
        %821 = vmatmul.mubr.bf16.gmra.mrb[0].mxu0 %v776
        %v822 = vpop.f32.mrb[0].mxu0
        %v823 = vadd.f32 0.0, %v822
        %v824 = vpop.f32.mrb[0].mxu0
        %v825 = vadd.f32 0.0, %v824
        %v826 = vpop.f32.mrb[0].mxu0
        %v827 = vadd.f32 0.0, %v826
        %v828 = vpop.f32.mrb[0].mxu0
        %v829 = vadd.f32 0.0, %v828
        %830 = vdwg.mxu0
        %v835 = vunpack.c.l.b16 %v744
        %v836 = vunpack.c.l.b16 %v745
        %v837 = vunpack.c.l.b16 %v746
        %v838 = vunpack.c.l.b16 %v747
        %v839 = vpack.c.b16 %v836, %v835
        %v840 = vpack.c.b16 %v838, %v837
        %v842 = vsel %vm771, %v839, 0
        %v845 = vsel %vm771, %v840, 0
        %847 = vmatprep.subr.bf16.mxu0 %v749
        %848 = vmatpush1.bf16.msra.mxu0 %v748
        %849 = vmatprep.subr.bf16.mxu0 %v751
        %850 = vmatpush1.bf16.msra.mxu0 %v750
        %851 = vmatprep.subr.bf16.mxu0 0
        %852 = vmatpush1.bf16.msra.mxu0 0
        %853 = vmatprep.subr.bf16.mxu0 0
        %854 = vmatpush1.bf16.msra.mxu0 0
        %855 = vmatprep.subr.bf16.mxu0 0
        %856 = vmatpush1.bf16.msra.mxu0 0
        %857 = vmatprep.subr.bf16.mxu0 0
        %858 = vmatpush1.bf16.msra.mxu0 0
        %859 = vmatprep.subr.bf16.mxu0 0
        %860 = vmatpush1.bf16.msra.mxu0 0
        %861 = vmatprep.subr.bf16.mxu0 0
        %862 = vmatpush1.bf16.msra.mxu0 0
        %863 = vmatprep.subr.bf16.mxu0 0
        %864 = vmatpush1.bf16.msra.mxu0 0
        %865 = vmatprep.subr.bf16.mxu0 0
        %866 = vmatpush1.bf16.msra.mxu0 0
        %867 = vmatprep.subr.bf16.mxu0 0
        %868 = vmatpush1.bf16.msra.mxu0 0
        %869 = vmatprep.subr.bf16.mxu0 0
        %870 = vmatpush1.bf16.msra.mxu0 0
        %871 = vmatprep.subr.bf16.mxu0 0
        %872 = vmatpush1.bf16.msra.mxu0 0
        %873 = vmatprep.subr.bf16.mxu0 0
        %874 = vmatpush1.bf16.msra.mxu0 0
        %875 = vmatprep.subr.bf16.mxu0 0
        %876 = vmatpush1.bf16.msra.mxu0 0
        %877 = vmatprep.subr.bf16.mxu0 0
        %878 = vmatpush1.bf16.msra.mxu0 0
        %879 = vmatprep.mubr.bf16.mxu0 0
        %880 = vmatmul.mubr.bf16.gmra.mrb[0].mxu0 %v842
        %v881 = vpop.f32.mrb[0].mxu0
        %v882 = vadd.f32 %v813, %v881
        %v883 = vpop.f32.mrb[0].mxu0
        %v884 = vadd.f32 %v815, %v883
        %v885 = vpop.f32.mrb[0].mxu0
        %v886 = vadd.f32 %v817, %v885
        %v887 = vpop.f32.mrb[0].mxu0
        %v888 = vadd.f32 %v819, %v887
        %889 = vmatprep.mubr.bf16.mxu0 0
        %890 = vmatmul.mubr.bf16.gmra.mrb[0].mxu0 %v845
        %v891 = vpop.f32.mrb[0].mxu0
        %v892 = vadd.f32 %v823, %v891
        %v893 = vpop.f32.mrb[0].mxu0
        %v894 = vadd.f32 %v825, %v893
        %v895 = vpop.f32.mrb[0].mxu0
        %v896 = vadd.f32 %v827, %v895
        %v897 = vpop.f32.mrb[0].mxu0
        %v898 = vadd.f32 %v829, %v897
        %899 = vdwg.mxu0
        %s900 = scalar_lea.vmem %s4, 32
        %v901 = vld [vmem:[%s900] sm:$0xf]
        %v902 = vld [vmem:[%s900 + $0x4] sm:$0xf]
        %v903 = vld [vmem:[%s900 + $0x8] sm:$0xf]
        %v904 = vld [vmem:[%s900 + $0xc] sm:$0xf]
        %v905 = vpack.c.bf16 %v738, %v736
        %v906 = vpack.c.bf16 %v739, %v737
        %v907 = vpack.c.bf16 %v742, %v740
        %v908 = vpack.c.bf16 %v743, %v741
        %v913 = vunpack.c.l.b16 %v901
        %v914 = vunpack.c.l.b16 %v902
        %v915 = vunpack.c.l.b16 %v903
        %v916 = vunpack.c.l.b16 %v904
        %v917 = vpack.c.b16 %v914, %v913
        %v918 = vpack.c.b16 %v916, %v915
        %v920 = vsel %vm771, %v917, 0
        %v923 = vsel %vm771, %v918, 0
        %925 = vmatprep.subr.bf16.mxu0 %v906
        %926 = vmatpush1.bf16.msra.mxu0 %v905
        %927 = vmatprep.subr.bf16.mxu0 %v908
        %928 = vmatpush1.bf16.msra.mxu0 %v907
        %929 = vmatprep.subr.bf16.mxu0 0
        %930 = vmatpush1.bf16.msra.mxu0 0
        %931 = vmatprep.subr.bf16.mxu0 0
        %932 = vmatpush1.bf16.msra.mxu0 0
        %933 = vmatprep.subr.bf16.mxu0 0
        %934 = vmatpush1.bf16.msra.mxu0 0
        %935 = vmatprep.subr.bf16.mxu0 0
        %936 = vmatpush1.bf16.msra.mxu0 0
        %937 = vmatprep.subr.bf16.mxu0 0
        %938 = vmatpush1.bf16.msra.mxu0 0
        %939 = vmatprep.subr.bf16.mxu0 0
        %940 = vmatpush1.bf16.msra.mxu0 0
        %941 = vmatprep.subr.bf16.mxu0 0
        %942 = vmatpush1.bf16.msra.mxu0 0
        %943 = vmatprep.subr.bf16.mxu0 0
        %944 = vmatpush1.bf16.msra.mxu0 0
        %945 = vmatprep.subr.bf16.mxu0 0
        %946 = vmatpush1.bf16.msra.mxu0 0
        %947 = vmatprep.subr.bf16.mxu0 0
        %948 = vmatpush1.bf16.msra.mxu0 0
        %949 = vmatprep.subr.bf16.mxu0 0
        %950 = vmatpush1.bf16.msra.mxu0 0
        %951 = vmatprep.subr.bf16.mxu0 0
        %952 = vmatpush1.bf16.msra.mxu0 0
        %953 = vmatprep.subr.bf16.mxu0 0
        %954 = vmatpush1.bf16.msra.mxu0 0
        %955 = vmatprep.subr.bf16.mxu0 0
        %956 = vmatpush1.bf16.msra.mxu0 0
        %957 = vmatprep.mubr.bf16.mxu0 0
        %958 = vmatmul.mubr.bf16.gmra.mrb[0].mxu0 %v920
        %v959 = vpop.f32.mrb[0].mxu0
        %v960 = vadd.f32 0.0, %v959
        %v961 = vpop.f32.mrb[0].mxu0
        %v962 = vadd.f32 0.0, %v961
        %v963 = vpop.f32.mrb[0].mxu0
        %v964 = vadd.f32 0.0, %v963
        %v965 = vpop.f32.mrb[0].mxu0
        %v966 = vadd.f32 0.0, %v965
        %967 = vmatprep.mubr.bf16.mxu0 0
        %968 = vmatmul.mubr.bf16.gmra.mrb[0].mxu0 %v923
        %v969 = vpop.f32.mrb[0].mxu0
        %v970 = vadd.f32 0.0, %v969
        %v971 = vpop.f32.mrb[0].mxu0
        %v972 = vadd.f32 0.0, %v971
        %v973 = vpop.f32.mrb[0].mxu0
        %v974 = vadd.f32 0.0, %v973
        %v975 = vpop.f32.mrb[0].mxu0
        %v976 = vadd.f32 0.0, %v975
        %977 = vdwg.mxu0
        %v978 = vadd.f32 %v882, %v960
        %v979 = vadd.f32 %v884, %v962
        %v980 = vadd.f32 %v886, %v964
        %v981 = vadd.f32 %v888, %v966
        %v982 = vadd.f32 %v892, %v970
        %v983 = vadd.f32 %v894, %v972
        %v984 = vadd.f32 %v896, %v974
        %v985 = vadd.f32 %v898, %v976
        %v986 = vld [vmem:[%s5] sm:$0xff]
        %v987 = vld [vmem:[%s5 + $0x8] sm:$0xff]
        %v988 = vld [vmem:[%s5 + $0x10] sm:$0xff]
        %v989 = vld [vmem:[%s5 + $0x18] sm:$0xff]
        %991 = vset.pattern.permute.xlu0 0
        %992 = vperm.xlu0 %991, %v986
        %v993 = vpop.permute.xlu0 %992
        %996 = vset.pattern.permute.xlu0 0
        %997 = vperm.xlu0 %996, %v987
        %v998 = vpop.permute.xlu0 %997
        %1001 = vset.pattern.permute.xlu0 0
        %1002 = vperm.xlu0 %1001, %v988
        %v1003 = vpop.permute.xlu0 %1002
        %1006 = vset.pattern.permute.xlu0 0
        %1007 = vperm.xlu0 %1006, %v989
        %v1008 = vpop.permute.xlu0 %1007
        %v1010 = vadd.f32 %v978, %v993
        %v1011 = vadd.f32 %v979, %v993
        %v1012 = vadd.f32 %v980, %v998
        %v1013 = vadd.f32 %v981, %v998
        %v1014 = vadd.f32 %v982, %v1003
        %v1015 = vadd.f32 %v983, %v1003
        %v1016 = vadd.f32 %v984, %v1008
        %v1017 = vadd.f32 %v985, %v1008
        %v1018 = vmax.f32 %v1010, 0.0
        %v1019 = vmax.f32 %v1011, 0.0
        %v1020 = vmax.f32 %v1012, 0.0
        %v1021 = vmax.f32 %v1013, 0.0
        %v1022 = vmax.f32 %v1014, 0.0
        %v1023 = vmax.f32 %v1015, 0.0
        %v1024 = vmax.f32 %v1016, 0.0
        %v1025 = vmax.f32 %v1017, 0.0
        %v1026 = vld [vmem:[%s6] sm:$0xf]
        %v1027 = vld [vmem:[%s6 + $0x4] sm:$0xf]
        %v1028 = vld [vmem:[%s6 + $0x8] sm:$0xf]
        %v1029 = vld [vmem:[%s6 + $0xc] sm:$0xf]
        %v1030 = vpack.c.bf16 %v1020, %v1018
        %v1031 = vpack.c.bf16 %v1021, %v1019
        %v1032 = vpack.c.bf16 %v1024, %v1022
        %v1033 = vpack.c.bf16 %v1025, %v1023
        %v1034 = vld [vmem:[%s7] sm:$0xff]
        %v1035 = vld [vmem:[%s7 + $0x8] sm:$0xff]
        %v1036 = vld [vmem:[%s7 + $0x10] sm:$0xff]
        %v1037 = vld [vmem:[%s7 + $0x18] sm:$0xff]
        %1039 = vset.pattern.permute.xlu0 0
        %1040 = vperm.xlu0 %1039, %v1034
        %v1041 = vpop.permute.xlu0 %1040
        %1044 = vset.pattern.permute.xlu0 0
        %1045 = vperm.xlu0 %1044, %v1035
        %v1046 = vpop.permute.xlu0 %1045
        %1049 = vset.pattern.permute.xlu0 0
        %1050 = vperm.xlu0 %1049, %v1036
        %v1051 = vpop.permute.xlu0 %1050
        %1054 = vset.pattern.permute.xlu0 0
        %1055 = vperm.xlu0 %1054, %v1037
        %v1056 = vpop.permute.xlu0 %1055
        %v1062 = vunpack.c.l.b16 %v1026
        %v1063 = vunpack.c.l.b16 %v1027
        %v1064 = vunpack.c.l.b16 %v1028
        %v1065 = vunpack.c.l.b16 %v1029
        %v1066 = vpack.c.b16 %v1063, %v1062
        %v1067 = vpack.c.b16 %v1065, %v1064
        %v1069 = vsel %vm771, %v1066, 0
        %v1072 = vsel %vm771, %v1067, 0
        %1074 = vmatprep.subr.bf16.mxu0 %v1031
        %1075 = vmatpush1.bf16.msra.mxu0 %v1030
        %1076 = vmatprep.subr.bf16.mxu0 %v1033
        %1077 = vmatpush1.bf16.msra.mxu0 %v1032
        %1078 = vmatprep.subr.bf16.mxu0 0
        %1079 = vmatpush1.bf16.msra.mxu0 0
        %1080 = vmatprep.subr.bf16.mxu0 0
        %1081 = vmatpush1.bf16.msra.mxu0 0
        %1082 = vmatprep.subr.bf16.mxu0 0
        %1083 = vmatpush1.bf16.msra.mxu0 0
        %1084 = vmatprep.subr.bf16.mxu0 0
        %1085 = vmatpush1.bf16.msra.mxu0 0
        %1086 = vmatprep.subr.bf16.mxu0 0
        %1087 = vmatpush1.bf16.msra.mxu0 0
        %1088 = vmatprep.subr.bf16.mxu0 0
        %1089 = vmatpush1.bf16.msra.mxu0 0
        %1090 = vmatprep.subr.bf16.mxu0 0
        %1091 = vmatpush1.bf16.msra.mxu0 0
        %1092 = vmatprep.subr.bf16.mxu0 0
        %1093 = vmatpush1.bf16.msra.mxu0 0
        %1094 = vmatprep.subr.bf16.mxu0 0
        %1095 = vmatpush1.bf16.msra.mxu0 0
        %1096 = vmatprep.subr.bf16.mxu0 0
        %1097 = vmatpush1.bf16.msra.mxu0 0
        %1098 = vmatprep.subr.bf16.mxu0 0
        %1099 = vmatpush1.bf16.msra.mxu0 0
        %1100 = vmatprep.subr.bf16.mxu0 0
        %1101 = vmatpush1.bf16.msra.mxu0 0
        %1102 = vmatprep.subr.bf16.mxu0 0
        %1103 = vmatpush1.bf16.msra.mxu0 0
        %1104 = vmatprep.subr.bf16.mxu0 0
        %1105 = vmatpush1.bf16.msra.mxu0 0
        %1106 = vmatprep.mubr.bf16.mxu0 0
        %1107 = vmatmul.mubr.bf16.gmra.mrb[0].mxu0 %v1069
        %v1108 = vpop.f32.mrb[0].mxu0
        %v1109 = vadd.f32 %v1041, %v1108
        %v1110 = vpop.f32.mrb[0].mxu0
        %v1111 = vadd.f32 %v1041, %v1110
        %v1112 = vpop.f32.mrb[0].mxu0
        %v1113 = vadd.f32 %v1046, %v1112
        %v1114 = vpop.f32.mrb[0].mxu0
        %v1115 = vadd.f32 %v1046, %v1114
        %1116 = vmatprep.mubr.bf16.mxu0 0
        %1117 = vmatmul.mubr.bf16.gmra.mrb[0].mxu0 %v1072
        %v1118 = vpop.f32.mrb[0].mxu0
        %v1119 = vadd.f32 %v1051, %v1118
        %v1120 = vpop.f32.mrb[0].mxu0
        %v1121 = vadd.f32 %v1051, %v1120
        %v1122 = vpop.f32.mrb[0].mxu0
        %v1123 = vadd.f32 %v1056, %v1122
        %v1124 = vpop.f32.mrb[0].mxu0
        %v1125 = vadd.f32 %v1056, %v1124
        %1126 = vdwg.mxu0
        %v1127 = vmul.f32 %v1109, 0.2
        %v1128 = vmul.f32 %v1111, 0.2
        %v1129 = vmul.f32 %v1113, 0.2
        %v1130 = vmul.f32 %v1115, 0.2
        %v1131 = vmul.f32 %v1119, 0.2
        %v1132 = vmul.f32 %v1121, 0.2
        %v1133 = vmul.f32 %v1123, 0.2
        %v1134 = vmul.f32 %v1125, 0.2
        %v1135 = vmax.f32 %v1109, %v1127
        %v1136 = vmax.f32 %v1111, %v1128
        %v1137 = vmax.f32 %v1113, %v1129
        %v1138 = vmax.f32 %v1115, %v1130
        %v1139 = vmax.f32 %v1119, %v1131
        %v1140 = vmax.f32 %v1121, %v1132
        %v1141 = vmax.f32 %v1123, %v1133
        %v1142 = vmax.f32 %v1125, %v1134
        %v1143 = vld [vmem:[%s8] sm:$0xff]
        %v1144 = vld [vmem:[%s8 + $0x8] sm:$0xff]
        %v1145 = vld [vmem:[%s8 + $0x10] sm:$0xff]
        %v1146 = vld [vmem:[%s8 + $0x18] sm:$0xff]
        %1148 = vset.pattern.permute.xlu0 0
        %1149 = vperm.xlu0 %1148, %v1143
        %v1150 = vpop.permute.xlu0 %1149
        %1153 = vset.pattern.permute.xlu0 0
        %1154 = vperm.xlu0 %1153, %v1144
        %v1155 = vpop.permute.xlu0 %1154
        %1158 = vset.pattern.permute.xlu0 0
        %1159 = vperm.xlu0 %1158, %v1145
        %v1160 = vpop.permute.xlu0 %1159
        %1163 = vset.pattern.permute.xlu0 0
        %1164 = vperm.xlu0 %1163, %v1146
        %v1165 = vpop.permute.xlu0 %1164
        %v1167 = vmul.f32 %v1135, %v1150
        %v1168 = vmul.f32 %v1136, %v1150
        %v1169 = vmul.f32 %v1137, %v1155
        %v1170 = vmul.f32 %v1138, %v1155
        %v1171 = vmul.f32 %v1139, %v1160
        %v1172 = vmul.f32 %v1140, %v1160
        %v1173 = vmul.f32 %v1141, %v1165
        %v1174 = vmul.f32 %v1142, %v1165
        %v1175 = vld [vmem:[%s9] sm:$0xff]
        %v1176 = vld [vmem:[%s9 + $0x8] sm:$0xff]
        %v1177 = vld [vmem:[%s9 + $0x10] sm:$0xff]
        %v1178 = vld [vmem:[%s9 + $0x18] sm:$0xff]
        %1180 = vset.pattern.permute.xlu0 0
        %1181 = vperm.xlu0 %1180, %v1175
        %v1182 = vpop.permute.xlu0 %1181
        %1185 = vset.pattern.permute.xlu0 0
        %1186 = vperm.xlu0 %1185, %v1176
        %v1187 = vpop.permute.xlu0 %1186
        %1190 = vset.pattern.permute.xlu0 0
        %1191 = vperm.xlu0 %1190, %v1177
        %v1192 = vpop.permute.xlu0 %1191
        %1195 = vset.pattern.permute.xlu0 0
        %1196 = vperm.xlu0 %1195, %v1178
        %v1197 = vpop.permute.xlu0 %1196
        %v1199 = vadd.f32 %v1167, %v1182
        %v1200 = vadd.f32 %v1168, %v1182
        %v1201 = vadd.f32 %v1169, %v1187
        %v1202 = vadd.f32 %v1170, %v1187
        %v1203 = vadd.f32 %v1171, %v1192
        %v1204 = vadd.f32 %v1172, %v1192
        %v1205 = vadd.f32 %v1173, %v1197
        %v1206 = vadd.f32 %v1174, %v1197
        %v1207 = vadd.f32 %v617, %v1199
        %v1208 = vadd.f32 %v618, %v1200
        %v1209 = vadd.f32 %v619, %v1201
        %v1210 = vadd.f32 %v620, %v1202
        %v1211 = vadd.f32 %v621, %v1203
        %v1212 = vadd.f32 %v622, %v1204
        %v1213 = vadd.f32 %v623, %v1205
        %v1214 = vadd.f32 %v624, %v1206
        %v1215 = vmul.f32 %v1207, %v496
        %v1216 = vmul.f32 %v1208, %v500
        %v1217 = vmul.f32 %v1209, %v496
        %v1218 = vmul.f32 %v1210, %v500
        %v1219 = vmul.f32 %v1211, %v496
        %v1220 = vmul.f32 %v1212, %v500
        %v1221 = vmul.f32 %v1213, %v496
        %v1222 = vmul.f32 %v1214, %v500
        %1223 = vrot.lane.b32.xlu0 %v1215, 12
        %v1224 = vpop.permute.xlu0 %1223
        %v1225 = vsel %vm625, %v1224, %v1216
        %1226 = vrot.lane.b32.xlu0 %v1217, 12
        %v1227 = vpop.permute.xlu0 %1226
        %v1228 = vsel %vm625, %v1227, %v1218
        %1229 = vrot.lane.b32.xlu0 %v1219, 12
        %v1230 = vpop.permute.xlu0 %1229
        %v1231 = vsel %vm625, %v1230, %v1220
        %1232 = vrot.lane.b32.xlu0 %v1221, 12
        %v1233 = vpop.permute.xlu0 %1232
        %v1234 = vsel %vm625, %v1233, %v1222
        %1235 = vrot.lane.b32.xlu0 %v1225, 12
        %v1236 = vpop.permute.xlu0 %1235
        %1237 = vrot.lane.b32.xlu0 %v1228, 12
        %v1238 = vpop.permute.xlu0 %1237
        %1239 = vrot.lane.b32.xlu0 %v1231, 12
        %v1240 = vpop.permute.xlu0 %1239
        %1241 = vrot.lane.b32.xlu0 %v1234, 12
        %v1242 = vpop.permute.xlu0 %1241
        %v1243 = vsel %vm625, %v1236, %v1224
        %v1244 = vsel %vm625, %v1238, %v1227
        %v1245 = vsel %vm625, %v1240, %v1230
        %v1246 = vsel %vm625, %v1242, %v1233
        %1255 = vrot.lane.b32.xlu0 %v1225, 118
        %v1256 = vpop.permute.xlu0 %1255
        %1257 = vrot.lane.b32.xlu0 %v1243, 118
        %v1258 = vpop.permute.xlu0 %1257
        %1259 = vrot.lane.b32.xlu0 %v1228, 118
        %v1260 = vpop.permute.xlu0 %1259
        %1261 = vrot.lane.b32.xlu0 %v1244, 118
        %v1262 = vpop.permute.xlu0 %1261
        %1263 = vrot.lane.b32.xlu0 %v1231, 118
        %v1264 = vpop.permute.xlu0 %1263
        %1265 = vrot.lane.b32.xlu0 %v1245, 118
        %v1266 = vpop.permute.xlu0 %1265
        %1267 = vrot.lane.b32.xlu0 %v1234, 118
        %v1268 = vpop.permute.xlu0 %1267
        %1269 = vrot.lane.b32.xlu0 %v1246, 118
        %v1270 = vpop.permute.xlu0 %1269
        %v1271 = vsel %vm678, %v1256, %v1258
        %v1272 = vsel %vm678, %v1260, %v1262
        %v1273 = vsel %vm678, %v1264, %v1266
        %v1274 = vsel %vm678, %v1268, %v1270
        %v1283 = vsel %vm652, %v1271, 0.0
        %v1284 = vsel %vm653, %v1258, 0.0
        %v1285 = vsel %vm652, %v1272, 0.0
        %v1286 = vsel %vm653, %v1262, 0.0
        %v1287 = vsel %vm652, %v1273, 0.0
        %v1288 = vsel %vm653, %v1266, 0.0
        %v1289 = vsel %vm652, %v1274, 0.0
        %v1290 = vsel %vm653, %v1270, 0.0
        %1295 = vrot.lane.b32.xlu0 %v1215, 126
        %v1296 = vpop.permute.xlu0 %1295
        %1297 = vrot.lane.b32.xlu0 %v1225, 126
        %v1298 = vpop.permute.xlu0 %1297
        %1299 = vrot.lane.b32.xlu0 %v1217, 126
        %v1300 = vpop.permute.xlu0 %1299
        %1301 = vrot.lane.b32.xlu0 %v1228, 126
        %v1302 = vpop.permute.xlu0 %1301
        %1303 = vrot.lane.b32.xlu0 %v1219, 126
        %v1304 = vpop.permute.xlu0 %1303
        %1305 = vrot.lane.b32.xlu0 %v1231, 126
        %v1306 = vpop.permute.xlu0 %1305
        %1307 = vrot.lane.b32.xlu0 %v1221, 126
        %v1308 = vpop.permute.xlu0 %1307
        %1309 = vrot.lane.b32.xlu0 %v1234, 126
        %v1310 = vpop.permute.xlu0 %1309
        %v1311 = vsel %vm723, %v1296, %v1298
        %v1312 = vsel %vm723, %v1300, %v1302
        %v1313 = vsel %vm723, %v1304, %v1306
        %v1314 = vsel %vm723, %v1308, %v1310
        %v1323 = vsel %vm701, %v1311, 0.0
        %v1324 = vsel %vm702, %v1298, 0.0
        %v1325 = vsel %vm701, %v1312, 0.0
        %v1326 = vsel %vm702, %v1302, 0.0
        %v1327 = vsel %vm701, %v1313, 0.0
        %v1328 = vsel %vm702, %v1306, 0.0
        %v1329 = vsel %vm701, %v1314, 0.0
        %v1330 = vsel %vm702, %v1310, 0.0
        %s1331 = scalar_lea.vmem %s4, 48
        %v1332 = vld [vmem:[%s1331] sm:$0xf]
        %v1333 = vld [vmem:[%s1331 + $0x4] sm:$0xf]
        %v1334 = vld [vmem:[%s1331 + $0x8] sm:$0xf]
        %v1335 = vld [vmem:[%s1331 + $0xc] sm:$0xf]
        %v1336 = vpack.c.bf16 %v1285, %v1283
        %v1337 = vpack.c.bf16 %v1286, %v1284
        %v1338 = vpack.c.bf16 %v1289, %v1287
        %v1339 = vpack.c.bf16 %v1290, %v1288
        %s1340 = scalar_lea.vmem %s4, 64
        %v1341 = vld [vmem:[%s1340] sm:$0xf]
        %v1342 = vld [vmem:[%s1340 + $0x4] sm:$0xf]
        %v1343 = vld [vmem:[%s1340 + $0x8] sm:$0xf]
        %v1344 = vld [vmem:[%s1340 + $0xc] sm:$0xf]
        %v1345 = vpack.c.bf16 %v1217, %v1215
        %v1346 = vpack.c.bf16 %v1218, %v1216
        %v1347 = vpack.c.bf16 %v1221, %v1219
        %v1348 = vpack.c.bf16 %v1222, %v1220
        %v1353 = vunpack.c.l.b16 %v1341
        %v1354 = vunpack.c.l.b16 %v1342
        %v1355 = vunpack.c.l.b16 %v1343
        %v1356 = vunpack.c.l.b16 %v1344
        %v1357 = vpack.c.b16 %v1354, %v1353
        %v1358 = vpack.c.b16 %v1356, %v1355
        %v1360 = vsel %vm771, %v1357, 0
        %v1363 = vsel %vm771, %v1358, 0
        %1365 = vmatprep.subr.bf16.mxu0 %v1346
        %1366 = vmatpush1.bf16.msra.mxu0 %v1345
        %1367 = vmatprep.subr.bf16.mxu0 %v1348
        %1368 = vmatpush1.bf16.msra.mxu0 %v1347
        %1369 = vmatprep.subr.bf16.mxu0 0
        %1370 = vmatpush1.bf16.msra.mxu0 0
        %1371 = vmatprep.subr.bf16.mxu0 0
        %1372 = vmatpush1.bf16.msra.mxu0 0
        %1373 = vmatprep.subr.bf16.mxu0 0
        %1374 = vmatpush1.bf16.msra.mxu0 0
        %1375 = vmatprep.subr.bf16.mxu0 0
        %1376 = vmatpush1.bf16.msra.mxu0 0
        %1377 = vmatprep.subr.bf16.mxu0 0
        %1378 = vmatpush1.bf16.msra.mxu0 0
        %1379 = vmatprep.subr.bf16.mxu0 0
        %1380 = vmatpush1.bf16.msra.mxu0 0
        %1381 = vmatprep.subr.bf16.mxu0 0
        %1382 = vmatpush1.bf16.msra.mxu0 0
        %1383 = vmatprep.subr.bf16.mxu0 0
        %1384 = vmatpush1.bf16.msra.mxu0 0
        %1385 = vmatprep.subr.bf16.mxu0 0
        %1386 = vmatpush1.bf16.msra.mxu0 0
        %1387 = vmatprep.subr.bf16.mxu0 0
        %1388 = vmatpush1.bf16.msra.mxu0 0
        %1389 = vmatprep.subr.bf16.mxu0 0
        %1390 = vmatpush1.bf16.msra.mxu0 0
        %1391 = vmatprep.subr.bf16.mxu0 0
        %1392 = vmatpush1.bf16.msra.mxu0 0
        %1393 = vmatprep.subr.bf16.mxu0 0
        %1394 = vmatpush1.bf16.msra.mxu0 0
        %1395 = vmatprep.subr.bf16.mxu0 0
        %1396 = vmatpush1.bf16.msra.mxu0 0
        %1397 = vmatprep.mubr.bf16.mxu0 0
        %1398 = vmatmul.mubr.bf16.gmra.mrb[0].mxu0 %v1360
        %v1399 = vpop.f32.mrb[0].mxu0
        %v1400 = vadd.f32 0.0, %v1399
        %v1401 = vpop.f32.mrb[0].mxu0
        %v1402 = vadd.f32 0.0, %v1401
        %v1403 = vpop.f32.mrb[0].mxu0
        %v1404 = vadd.f32 0.0, %v1403
        %v1405 = vpop.f32.mrb[0].mxu0
        %v1406 = vadd.f32 0.0, %v1405
        %1407 = vmatprep.mubr.bf16.mxu0 0
        %1408 = vmatmul.mubr.bf16.gmra.mrb[0].mxu0 %v1363
        %v1409 = vpop.f32.mrb[0].mxu0
        %v1410 = vadd.f32 0.0, %v1409
        %v1411 = vpop.f32.mrb[0].mxu0
        %v1412 = vadd.f32 0.0, %v1411
        %v1413 = vpop.f32.mrb[0].mxu0
        %v1414 = vadd.f32 0.0, %v1413
        %v1415 = vpop.f32.mrb[0].mxu0
        %v1416 = vadd.f32 0.0, %v1415
        %1417 = vdwg.mxu0
        %v1422 = vunpack.c.l.b16 %v1332
        %v1423 = vunpack.c.l.b16 %v1333
        %v1424 = vunpack.c.l.b16 %v1334
        %v1425 = vunpack.c.l.b16 %v1335
        %v1426 = vpack.c.b16 %v1423, %v1422
        %v1427 = vpack.c.b16 %v1425, %v1424
        %v1429 = vsel %vm771, %v1426, 0
        %v1432 = vsel %vm771, %v1427, 0
        %1434 = vmatprep.subr.bf16.mxu0 %v1337
        %1435 = vmatpush1.bf16.msra.mxu0 %v1336
        %1436 = vmatprep.subr.bf16.mxu0 %v1339
        %1437 = vmatpush1.bf16.msra.mxu0 %v1338
        %1438 = vmatprep.subr.bf16.mxu0 0
        %1439 = vmatpush1.bf16.msra.mxu0 0
        %1440 = vmatprep.subr.bf16.mxu0 0
        %1441 = vmatpush1.bf16.msra.mxu0 0
        %1442 = vmatprep.subr.bf16.mxu0 0
        %1443 = vmatpush1.bf16.msra.mxu0 0
        %1444 = vmatprep.subr.bf16.mxu0 0
        %1445 = vmatpush1.bf16.msra.mxu0 0
        %1446 = vmatprep.subr.bf16.mxu0 0
        %1447 = vmatpush1.bf16.msra.mxu0 0
        %1448 = vmatprep.subr.bf16.mxu0 0
        %1449 = vmatpush1.bf16.msra.mxu0 0
        %1450 = vmatprep.subr.bf16.mxu0 0
        %1451 = vmatpush1.bf16.msra.mxu0 0
        %1452 = vmatprep.subr.bf16.mxu0 0
        %1453 = vmatpush1.bf16.msra.mxu0 0
        %1454 = vmatprep.subr.bf16.mxu0 0
        %1455 = vmatpush1.bf16.msra.mxu0 0
        %1456 = vmatprep.subr.bf16.mxu0 0
        %1457 = vmatpush1.bf16.msra.mxu0 0
        %1458 = vmatprep.subr.bf16.mxu0 0
        %1459 = vmatpush1.bf16.msra.mxu0 0
        %1460 = vmatprep.subr.bf16.mxu0 0
        %1461 = vmatpush1.bf16.msra.mxu0 0
        %1462 = vmatprep.subr.bf16.mxu0 0
        %1463 = vmatpush1.bf16.msra.mxu0 0
        %1464 = vmatprep.subr.bf16.mxu0 0
        %1465 = vmatpush1.bf16.msra.mxu0 0
        %1466 = vmatprep.mubr.bf16.mxu0 0
        %1467 = vmatmul.mubr.bf16.gmra.mrb[0].mxu0 %v1429
        %v1468 = vpop.f32.mrb[0].mxu0
        %v1469 = vadd.f32 %v1400, %v1468
        %v1470 = vpop.f32.mrb[0].mxu0
        %v1471 = vadd.f32 %v1402, %v1470
        %v1472 = vpop.f32.mrb[0].mxu0
        %v1473 = vadd.f32 %v1404, %v1472
        %v1474 = vpop.f32.mrb[0].mxu0
        %v1475 = vadd.f32 %v1406, %v1474
        %1476 = vmatprep.mubr.bf16.mxu0 0
        %1477 = vmatmul.mubr.bf16.gmra.mrb[0].mxu0 %v1432
        %v1478 = vpop.f32.mrb[0].mxu0
        %v1479 = vadd.f32 %v1410, %v1478
        %v1480 = vpop.f32.mrb[0].mxu0
        %v1481 = vadd.f32 %v1412, %v1480
        %v1482 = vpop.f32.mrb[0].mxu0
        %v1483 = vadd.f32 %v1414, %v1482
        %v1484 = vpop.f32.mrb[0].mxu0
        %v1485 = vadd.f32 %v1416, %v1484
        %1486 = vdwg.mxu0
        %s1487 = scalar_lea.vmem %s4, 80
        %v1488 = vld [vmem:[%s1487] sm:$0xf]
        %v1489 = vld [vmem:[%s1487 + $0x4] sm:$0xf]
        %v1490 = vld [vmem:[%s1487 + $0x8] sm:$0xf]
        %v1491 = vld [vmem:[%s1487 + $0xc] sm:$0xf]
        %v1492 = vpack.c.bf16 %v1325, %v1323
        %v1493 = vpack.c.bf16 %v1326, %v1324
        %v1494 = vpack.c.bf16 %v1329, %v1327
        %v1495 = vpack.c.bf16 %v1330, %v1328
        %v1500 = vunpack.c.l.b16 %v1488
        %v1501 = vunpack.c.l.b16 %v1489
        %v1502 = vunpack.c.l.b16 %v1490
        %v1503 = vunpack.c.l.b16 %v1491
        %v1504 = vpack.c.b16 %v1501, %v1500
        %v1505 = vpack.c.b16 %v1503, %v1502
        %v1507 = vsel %vm771, %v1504, 0
        %v1510 = vsel %vm771, %v1505, 0
        %1512 = vmatprep.subr.bf16.mxu0 %v1493
        %1513 = vmatpush1.bf16.msra.mxu0 %v1492
        %1514 = vmatprep.subr.bf16.mxu0 %v1495
        %1515 = vmatpush1.bf16.msra.mxu0 %v1494
        %1516 = vmatprep.subr.bf16.mxu0 0
        %1517 = vmatpush1.bf16.msra.mxu0 0
        %1518 = vmatprep.subr.bf16.mxu0 0
        %1519 = vmatpush1.bf16.msra.mxu0 0
        %1520 = vmatprep.subr.bf16.mxu0 0
        %1521 = vmatpush1.bf16.msra.mxu0 0
        %1522 = vmatprep.subr.bf16.mxu0 0
        %1523 = vmatpush1.bf16.msra.mxu0 0
        %1524 = vmatprep.subr.bf16.mxu0 0
        %1525 = vmatpush1.bf16.msra.mxu0 0
        %1526 = vmatprep.subr.bf16.mxu0 0
        %1527 = vmatpush1.bf16.msra.mxu0 0
        %1528 = vmatprep.subr.bf16.mxu0 0
        %1529 = vmatpush1.bf16.msra.mxu0 0
        %1530 = vmatprep.subr.bf16.mxu0 0
        %1531 = vmatpush1.bf16.msra.mxu0 0
        %1532 = vmatprep.subr.bf16.mxu0 0
        %1533 = vmatpush1.bf16.msra.mxu0 0
        %1534 = vmatprep.subr.bf16.mxu0 0
        %1535 = vmatpush1.bf16.msra.mxu0 0
        %1536 = vmatprep.subr.bf16.mxu0 0
        %1537 = vmatpush1.bf16.msra.mxu0 0
        %1538 = vmatprep.subr.bf16.mxu0 0
        %1539 = vmatpush1.bf16.msra.mxu0 0
        %1540 = vmatprep.subr.bf16.mxu0 0
        %1541 = vmatpush1.bf16.msra.mxu0 0
        %1542 = vmatprep.subr.bf16.mxu0 0
        %1543 = vmatpush1.bf16.msra.mxu0 0
        %1544 = vmatprep.mubr.bf16.mxu0 0
        %1545 = vmatmul.mubr.bf16.gmra.mrb[0].mxu0 %v1507
        %v1546 = vpop.f32.mrb[0].mxu0
        %v1547 = vadd.f32 0.0, %v1546
        %v1548 = vpop.f32.mrb[0].mxu0
        %v1549 = vadd.f32 0.0, %v1548
        %v1550 = vpop.f32.mrb[0].mxu0
        %v1551 = vadd.f32 0.0, %v1550
        %v1552 = vpop.f32.mrb[0].mxu0
        %v1553 = vadd.f32 0.0, %v1552
        %1554 = vmatprep.mubr.bf16.mxu0 0
        %1555 = vmatmul.mubr.bf16.gmra.mrb[0].mxu0 %v1510
        %v1556 = vpop.f32.mrb[0].mxu0
        %v1557 = vadd.f32 0.0, %v1556
        %v1558 = vpop.f32.mrb[0].mxu0
        %v1559 = vadd.f32 0.0, %v1558
        %v1560 = vpop.f32.mrb[0].mxu0
        %v1561 = vadd.f32 0.0, %v1560
        %v1562 = vpop.f32.mrb[0].mxu0
        %v1563 = vadd.f32 0.0, %v1562
        %1564 = vdwg.mxu0
        %v1565 = vadd.f32 %v1469, %v1547
        %v1566 = vadd.f32 %v1471, %v1549
        %v1567 = vadd.f32 %v1473, %v1551
        %v1568 = vadd.f32 %v1475, %v1553
        %v1569 = vadd.f32 %v1479, %v1557
        %v1570 = vadd.f32 %v1481, %v1559
        %v1571 = vadd.f32 %v1483, %v1561
        %v1572 = vadd.f32 %v1485, %v1563
        %s1573 = scalar_lea.vmem %s5, 32
        %v1574 = vld [vmem:[%s1573] sm:$0xff]
        %v1575 = vld [vmem:[%s1573 + $0x8] sm:$0xff]
        %v1576 = vld [vmem:[%s1573 + $0x10] sm:$0xff]
        %v1577 = vld [vmem:[%s1573 + $0x18] sm:$0xff]
        %1579 = vset.pattern.permute.xlu0 0
        %1580 = vperm.xlu0 %1579, %v1574
        %v1581 = vpop.permute.xlu0 %1580
        %1584 = vset.pattern.permute.xlu0 0
        %1585 = vperm.xlu0 %1584, %v1575
        %v1586 = vpop.permute.xlu0 %1585
        %1589 = vset.pattern.permute.xlu0 0
        %1590 = vperm.xlu0 %1589, %v1576
        %v1591 = vpop.permute.xlu0 %1590
        %1594 = vset.pattern.permute.xlu0 0
        %1595 = vperm.xlu0 %1594, %v1577
        %v1596 = vpop.permute.xlu0 %1595
        %v1598 = vadd.f32 %v1565, %v1581
        %v1599 = vadd.f32 %v1566, %v1581
        %v1600 = vadd.f32 %v1567, %v1586
        %v1601 = vadd.f32 %v1568, %v1586
        %v1602 = vadd.f32 %v1569, %v1591
        %v1603 = vadd.f32 %v1570, %v1591
        %v1604 = vadd.f32 %v1571, %v1596
        %v1605 = vadd.f32 %v1572, %v1596
        %v1606 = vmax.f32 %v1598, 0.0
        %v1607 = vmax.f32 %v1599, 0.0
        %v1608 = vmax.f32 %v1600, 0.0
        %v1609 = vmax.f32 %v1601, 0.0
        %v1610 = vmax.f32 %v1602, 0.0
        %v1611 = vmax.f32 %v1603, 0.0
        %v1612 = vmax.f32 %v1604, 0.0
        %v1613 = vmax.f32 %v1605, 0.0
        %s1614 = scalar_lea.vmem %s6, 16
        %v1615 = vld [vmem:[%s1614] sm:$0xf]
        %v1616 = vld [vmem:[%s1614 + $0x4] sm:$0xf]
        %v1617 = vld [vmem:[%s1614 + $0x8] sm:$0xf]
        %v1618 = vld [vmem:[%s1614 + $0xc] sm:$0xf]
        %v1619 = vpack.c.bf16 %v1608, %v1606
        %v1620 = vpack.c.bf16 %v1609, %v1607
        %v1621 = vpack.c.bf16 %v1612, %v1610
        %v1622 = vpack.c.bf16 %v1613, %v1611
        %s1623 = scalar_lea.vmem %s7, 32
        %v1624 = vld [vmem:[%s1623] sm:$0xff]
        %v1625 = vld [vmem:[%s1623 + $0x8] sm:$0xff]
        %v1626 = vld [vmem:[%s1623 + $0x10] sm:$0xff]
        %v1627 = vld [vmem:[%s1623 + $0x18] sm:$0xff]
        %1629 = vset.pattern.permute.xlu0 0
        %1630 = vperm.xlu0 %1629, %v1624
        %v1631 = vpop.permute.xlu0 %1630
        %1634 = vset.pattern.permute.xlu0 0
        %1635 = vperm.xlu0 %1634, %v1625
        %v1636 = vpop.permute.xlu0 %1635
        %1639 = vset.pattern.permute.xlu0 0
        %1640 = vperm.xlu0 %1639, %v1626
        %v1641 = vpop.permute.xlu0 %1640
        %1644 = vset.pattern.permute.xlu0 0
        %1645 = vperm.xlu0 %1644, %v1627
        %v1646 = vpop.permute.xlu0 %1645
        %v1652 = vunpack.c.l.b16 %v1615
        %v1653 = vunpack.c.l.b16 %v1616
        %v1654 = vunpack.c.l.b16 %v1617
        %v1655 = vunpack.c.l.b16 %v1618
        %v1656 = vpack.c.b16 %v1653, %v1652
        %v1657 = vpack.c.b16 %v1655, %v1654
        %v1659 = vsel %vm771, %v1656, 0
        %v1662 = vsel %vm771, %v1657, 0
        %1664 = vmatprep.subr.bf16.mxu0 %v1620
        %1665 = vmatpush1.bf16.msra.mxu0 %v1619
        %1666 = vmatprep.subr.bf16.mxu0 %v1622
        %1667 = vmatpush1.bf16.msra.mxu0 %v1621
        %1668 = vmatprep.subr.bf16.mxu0 0
        %1669 = vmatpush1.bf16.msra.mxu0 0
        %1670 = vmatprep.subr.bf16.mxu0 0
        %1671 = vmatpush1.bf16.msra.mxu0 0
        %1672 = vmatprep.subr.bf16.mxu0 0
        %1673 = vmatpush1.bf16.msra.mxu0 0
        %1674 = vmatprep.subr.bf16.mxu0 0
        %1675 = vmatpush1.bf16.msra.mxu0 0
        %1676 = vmatprep.subr.bf16.mxu0 0
        %1677 = vmatpush1.bf16.msra.mxu0 0
        %1678 = vmatprep.subr.bf16.mxu0 0
        %1679 = vmatpush1.bf16.msra.mxu0 0
        %1680 = vmatprep.subr.bf16.mxu0 0
        %1681 = vmatpush1.bf16.msra.mxu0 0
        %1682 = vmatprep.subr.bf16.mxu0 0
        %1683 = vmatpush1.bf16.msra.mxu0 0
        %1684 = vmatprep.subr.bf16.mxu0 0
        %1685 = vmatpush1.bf16.msra.mxu0 0
        %1686 = vmatprep.subr.bf16.mxu0 0
        %1687 = vmatpush1.bf16.msra.mxu0 0
        %1688 = vmatprep.subr.bf16.mxu0 0
        %1689 = vmatpush1.bf16.msra.mxu0 0
        %1690 = vmatprep.subr.bf16.mxu0 0
        %1691 = vmatpush1.bf16.msra.mxu0 0
        %1692 = vmatprep.subr.bf16.mxu0 0
        %1693 = vmatpush1.bf16.msra.mxu0 0
        %1694 = vmatprep.subr.bf16.mxu0 0
        %1695 = vmatpush1.bf16.msra.mxu0 0
        %1696 = vmatprep.mubr.bf16.mxu0 0
        %1697 = vmatmul.mubr.bf16.gmra.mrb[0].mxu0 %v1659
        %v1698 = vpop.f32.mrb[0].mxu0
        %v1699 = vadd.f32 %v1631, %v1698
        %v1700 = vpop.f32.mrb[0].mxu0
        %v1701 = vadd.f32 %v1631, %v1700
        %v1702 = vpop.f32.mrb[0].mxu0
        %v1703 = vadd.f32 %v1636, %v1702
        %v1704 = vpop.f32.mrb[0].mxu0
        %v1705 = vadd.f32 %v1636, %v1704
        %1706 = vmatprep.mubr.bf16.mxu0 0
        %1707 = vmatmul.mubr.bf16.gmra.mrb[0].mxu0 %v1662
        %v1708 = vpop.f32.mrb[0].mxu0
        %v1709 = vadd.f32 %v1641, %v1708
        %v1710 = vpop.f32.mrb[0].mxu0
        %v1711 = vadd.f32 %v1641, %v1710
        %v1712 = vpop.f32.mrb[0].mxu0
        %v1713 = vadd.f32 %v1646, %v1712
        %v1714 = vpop.f32.mrb[0].mxu0
        %v1715 = vadd.f32 %v1646, %v1714
        %1716 = vdwg.mxu0
        %v1717 = vmul.f32 %v1699, 0.2
        %v1718 = vmul.f32 %v1701, 0.2
        %v1719 = vmul.f32 %v1703, 0.2
        %v1720 = vmul.f32 %v1705, 0.2
        %v1721 = vmul.f32 %v1709, 0.2
        %v1722 = vmul.f32 %v1711, 0.2
        %v1723 = vmul.f32 %v1713, 0.2
        %v1724 = vmul.f32 %v1715, 0.2
        %v1725 = vmax.f32 %v1699, %v1717
        %v1726 = vmax.f32 %v1701, %v1718
        %v1727 = vmax.f32 %v1703, %v1719
        %v1728 = vmax.f32 %v1705, %v1720
        %v1729 = vmax.f32 %v1709, %v1721
        %v1730 = vmax.f32 %v1711, %v1722
        %v1731 = vmax.f32 %v1713, %v1723
        %v1732 = vmax.f32 %v1715, %v1724
        %s1733 = scalar_lea.vmem %s8, 32
        %v1734 = vld [vmem:[%s1733] sm:$0xff]
        %v1735 = vld [vmem:[%s1733 + $0x8] sm:$0xff]
        %v1736 = vld [vmem:[%s1733 + $0x10] sm:$0xff]
        %v1737 = vld [vmem:[%s1733 + $0x18] sm:$0xff]
        %1739 = vset.pattern.permute.xlu0 0
        %1740 = vperm.xlu0 %1739, %v1734
        %v1741 = vpop.permute.xlu0 %1740
        %1744 = vset.pattern.permute.xlu0 0
        %1745 = vperm.xlu0 %1744, %v1735
        %v1746 = vpop.permute.xlu0 %1745
        %1749 = vset.pattern.permute.xlu0 0
        %1750 = vperm.xlu0 %1749, %v1736
        %v1751 = vpop.permute.xlu0 %1750
        %1754 = vset.pattern.permute.xlu0 0
        %1755 = vperm.xlu0 %1754, %v1737
        %v1756 = vpop.permute.xlu0 %1755
        %v1758 = vmul.f32 %v1725, %v1741
        %v1759 = vmul.f32 %v1726, %v1741
        %v1760 = vmul.f32 %v1727, %v1746
        %v1761 = vmul.f32 %v1728, %v1746
        %v1762 = vmul.f32 %v1729, %v1751
        %v1763 = vmul.f32 %v1730, %v1751
        %v1764 = vmul.f32 %v1731, %v1756
        %v1765 = vmul.f32 %v1732, %v1756
        %s1766 = scalar_lea.vmem %s9, 32
        %v1767 = vld [vmem:[%s1766] sm:$0xff]
        %v1768 = vld [vmem:[%s1766 + $0x8] sm:$0xff]
        %v1769 = vld [vmem:[%s1766 + $0x10] sm:$0xff]
        %v1770 = vld [vmem:[%s1766 + $0x18] sm:$0xff]
        %1772 = vset.pattern.permute.xlu0 0
        %1773 = vperm.xlu0 %1772, %v1767
        %v1774 = vpop.permute.xlu0 %1773
        %1777 = vset.pattern.permute.xlu0 0
        %1778 = vperm.xlu0 %1777, %v1768
        %v1779 = vpop.permute.xlu0 %1778
        %1782 = vset.pattern.permute.xlu0 0
        %1783 = vperm.xlu0 %1782, %v1769
        %v1784 = vpop.permute.xlu0 %1783
        %1787 = vset.pattern.permute.xlu0 0
        %1788 = vperm.xlu0 %1787, %v1770
        %v1789 = vpop.permute.xlu0 %1788
        %v1791 = vadd.f32 %v1758, %v1774
        %v1792 = vadd.f32 %v1759, %v1774
        %v1793 = vadd.f32 %v1760, %v1779
        %v1794 = vadd.f32 %v1761, %v1779
        %v1795 = vadd.f32 %v1762, %v1784
        %v1796 = vadd.f32 %v1763, %v1784
        %v1797 = vadd.f32 %v1764, %v1789
        %v1798 = vadd.f32 %v1765, %v1789
        %v1799 = vadd.f32 %v1215, %v1791
        %v1800 = vadd.f32 %v1216, %v1792
        %v1801 = vadd.f32 %v1217, %v1793
        %v1802 = vadd.f32 %v1218, %v1794
        %v1803 = vadd.f32 %v1219, %v1795
        %v1804 = vadd.f32 %v1220, %v1796
        %v1805 = vadd.f32 %v1221, %v1797
        %v1806 = vadd.f32 %v1222, %v1798
        %v1807 = vmul.f32 %v1799, %v496
        %v1808 = vmul.f32 %v1800, %v500
        %v1809 = vmul.f32 %v1801, %v496
        %v1810 = vmul.f32 %v1802, %v500
        %v1811 = vmul.f32 %v1803, %v496
        %v1812 = vmul.f32 %v1804, %v500
        %v1813 = vmul.f32 %v1805, %v496
        %v1814 = vmul.f32 %v1806, %v500
        %1815 = vrot.lane.b32.xlu0 %v1807, 12
        %v1816 = vpop.permute.xlu0 %1815
        %v1817 = vsel %vm625, %v1816, %v1808
        %1818 = vrot.lane.b32.xlu0 %v1809, 12
        %v1819 = vpop.permute.xlu0 %1818
        %v1820 = vsel %vm625, %v1819, %v1810
        %1821 = vrot.lane.b32.xlu0 %v1811, 12
        %v1822 = vpop.permute.xlu0 %1821
        %v1823 = vsel %vm625, %v1822, %v1812
        %1824 = vrot.lane.b32.xlu0 %v1813, 12
        %v1825 = vpop.permute.xlu0 %1824
        %v1826 = vsel %vm625, %v1825, %v1814
        %1827 = vrot.lane.b32.xlu0 %v1817, 12
        %v1828 = vpop.permute.xlu0 %1827
        %1829 = vrot.lane.b32.xlu0 %v1820, 12
        %v1830 = vpop.permute.xlu0 %1829
        %1831 = vrot.lane.b32.xlu0 %v1823, 12
        %v1832 = vpop.permute.xlu0 %1831
        %1833 = vrot.lane.b32.xlu0 %v1826, 12
        %v1834 = vpop.permute.xlu0 %1833
        %v1835 = vsel %vm625, %v1828, %v1816
        %v1836 = vsel %vm625, %v1830, %v1819
        %v1837 = vsel %vm625, %v1832, %v1822
        %v1838 = vsel %vm625, %v1834, %v1825
        %1847 = vrot.lane.b32.xlu0 %v1817, 118
        %v1848 = vpop.permute.xlu0 %1847
        %1849 = vrot.lane.b32.xlu0 %v1835, 118
        %v1850 = vpop.permute.xlu0 %1849
        %1851 = vrot.lane.b32.xlu0 %v1820, 118
        %v1852 = vpop.permute.xlu0 %1851
        %1853 = vrot.lane.b32.xlu0 %v1836, 118
        %v1854 = vpop.permute.xlu0 %1853
        %1855 = vrot.lane.b32.xlu0 %v1823, 118
        %v1856 = vpop.permute.xlu0 %1855
        %1857 = vrot.lane.b32.xlu0 %v1837, 118
        %v1858 = vpop.permute.xlu0 %1857
        %1859 = vrot.lane.b32.xlu0 %v1826, 118
        %v1860 = vpop.permute.xlu0 %1859
        %1861 = vrot.lane.b32.xlu0 %v1838, 118
        %v1862 = vpop.permute.xlu0 %1861
        %v1863 = vsel %vm678, %v1848, %v1850
        %v1864 = vsel %vm678, %v1852, %v1854
        %v1865 = vsel %vm678, %v1856, %v1858
        %v1866 = vsel %vm678, %v1860, %v1862
        %v1875 = vsel %vm652, %v1863, 0.0
        %v1876 = vsel %vm653, %v1850, 0.0
        %v1877 = vsel %vm652, %v1864, 0.0
        %v1878 = vsel %vm653, %v1854, 0.0
        %v1879 = vsel %vm652, %v1865, 0.0
        %v1880 = vsel %vm653, %v1858, 0.0
        %v1881 = vsel %vm652, %v1866, 0.0
        %v1882 = vsel %vm653, %v1862, 0.0
        %1887 = vrot.lane.b32.xlu0 %v1807, 126
        %v1888 = vpop.permute.xlu0 %1887
        %1889 = vrot.lane.b32.xlu0 %v1817, 126
        %v1890 = vpop.permute.xlu0 %1889
        %1891 = vrot.lane.b32.xlu0 %v1809, 126
        %v1892 = vpop.permute.xlu0 %1891
        %1893 = vrot.lane.b32.xlu0 %v1820, 126
        %v1894 = vpop.permute.xlu0 %1893
        %1895 = vrot.lane.b32.xlu0 %v1811, 126
        %v1896 = vpop.permute.xlu0 %1895
        %1897 = vrot.lane.b32.xlu0 %v1823, 126
        %v1898 = vpop.permute.xlu0 %1897
        %1899 = vrot.lane.b32.xlu0 %v1813, 126
        %v1900 = vpop.permute.xlu0 %1899
        %1901 = vrot.lane.b32.xlu0 %v1826, 126
        %v1902 = vpop.permute.xlu0 %1901
        %v1903 = vsel %vm723, %v1888, %v1890
        %v1904 = vsel %vm723, %v1892, %v1894
        %v1905 = vsel %vm723, %v1896, %v1898
        %v1906 = vsel %vm723, %v1900, %v1902
        %v1915 = vsel %vm701, %v1903, 0.0
        %v1916 = vsel %vm702, %v1890, 0.0
        %v1917 = vsel %vm701, %v1904, 0.0
        %v1918 = vsel %vm702, %v1894, 0.0
        %v1919 = vsel %vm701, %v1905, 0.0
        %v1920 = vsel %vm702, %v1898, 0.0
        %v1921 = vsel %vm701, %v1906, 0.0
        %v1922 = vsel %vm702, %v1902, 0.0
        %s1923 = scalar_lea.vmem %s4, 96
        %v1924 = vld [vmem:[%s1923] sm:$0xf]
        %v1925 = vld [vmem:[%s1923 + $0x4] sm:$0xf]
        %v1926 = vld [vmem:[%s1923 + $0x8] sm:$0xf]
        %v1927 = vld [vmem:[%s1923 + $0xc] sm:$0xf]
        %v1928 = vpack.c.bf16 %v1877, %v1875
        %v1929 = vpack.c.bf16 %v1878, %v1876
        %v1930 = vpack.c.bf16 %v1881, %v1879
        %v1931 = vpack.c.bf16 %v1882, %v1880
        %s1932 = scalar_lea.vmem %s4, 112
        %v1933 = vld [vmem:[%s1932] sm:$0xf]
        %v1934 = vld [vmem:[%s1932 + $0x4] sm:$0xf]
        %v1935 = vld [vmem:[%s1932 + $0x8] sm:$0xf]
        %v1936 = vld [vmem:[%s1932 + $0xc] sm:$0xf]
        %v1937 = vpack.c.bf16 %v1809, %v1807
        %v1938 = vpack.c.bf16 %v1810, %v1808
        %v1939 = vpack.c.bf16 %v1813, %v1811
        %v1940 = vpack.c.bf16 %v1814, %v1812
        %v1945 = vunpack.c.l.b16 %v1933
        %v1946 = vunpack.c.l.b16 %v1934
        %v1947 = vunpack.c.l.b16 %v1935
        %v1948 = vunpack.c.l.b16 %v1936
        %v1949 = vpack.c.b16 %v1946, %v1945
        %v1950 = vpack.c.b16 %v1948, %v1947
        %v1952 = vsel %vm771, %v1949, 0
        %v1955 = vsel %vm771, %v1950, 0
        %1957 = vmatprep.subr.bf16.mxu0 %v1938
        %1958 = vmatpush1.bf16.msra.mxu0 %v1937
        %1959 = vmatprep.subr.bf16.mxu0 %v1940
        %1960 = vmatpush1.bf16.msra.mxu0 %v1939
        %1961 = vmatprep.subr.bf16.mxu0 0
        %1962 = vmatpush1.bf16.msra.mxu0 0
        %1963 = vmatprep.subr.bf16.mxu0 0
        %1964 = vmatpush1.bf16.msra.mxu0 0
        %1965 = vmatprep.subr.bf16.mxu0 0
        %1966 = vmatpush1.bf16.msra.mxu0 0
        %1967 = vmatprep.subr.bf16.mxu0 0
        %1968 = vmatpush1.bf16.msra.mxu0 0
        %1969 = vmatprep.subr.bf16.mxu0 0
        %1970 = vmatpush1.bf16.msra.mxu0 0
        %1971 = vmatprep.subr.bf16.mxu0 0
        %1972 = vmatpush1.bf16.msra.mxu0 0
        %1973 = vmatprep.subr.bf16.mxu0 0
        %1974 = vmatpush1.bf16.msra.mxu0 0
        %1975 = vmatprep.subr.bf16.mxu0 0
        %1976 = vmatpush1.bf16.msra.mxu0 0
        %1977 = vmatprep.subr.bf16.mxu0 0
        %1978 = vmatpush1.bf16.msra.mxu0 0
        %1979 = vmatprep.subr.bf16.mxu0 0
        %1980 = vmatpush1.bf16.msra.mxu0 0
        %1981 = vmatprep.subr.bf16.mxu0 0
        %1982 = vmatpush1.bf16.msra.mxu0 0
        %1983 = vmatprep.subr.bf16.mxu0 0
        %1984 = vmatpush1.bf16.msra.mxu0 0
        %1985 = vmatprep.subr.bf16.mxu0 0
        %1986 = vmatpush1.bf16.msra.mxu0 0
        %1987 = vmatprep.subr.bf16.mxu0 0
        %1988 = vmatpush1.bf16.msra.mxu0 0
        %1989 = vmatprep.mubr.bf16.mxu0 0
        %1990 = vmatmul.mubr.bf16.gmra.mrb[0].mxu0 %v1952
        %v1991 = vpop.f32.mrb[0].mxu0
        %v1992 = vadd.f32 0.0, %v1991
        %v1993 = vpop.f32.mrb[0].mxu0
        %v1994 = vadd.f32 0.0, %v1993
        %v1995 = vpop.f32.mrb[0].mxu0
        %v1996 = vadd.f32 0.0, %v1995
        %v1997 = vpop.f32.mrb[0].mxu0
        %v1998 = vadd.f32 0.0, %v1997
        %1999 = vmatprep.mubr.bf16.mxu0 0
        %2000 = vmatmul.mubr.bf16.gmra.mrb[0].mxu0 %v1955
        %v2001 = vpop.f32.mrb[0].mxu0
        %v2002 = vadd.f32 0.0, %v2001
        %v2003 = vpop.f32.mrb[0].mxu0
        %v2004 = vadd.f32 0.0, %v2003
        %v2005 = vpop.f32.mrb[0].mxu0
        %v2006 = vadd.f32 0.0, %v2005
        %v2007 = vpop.f32.mrb[0].mxu0
        %v2008 = vadd.f32 0.0, %v2007
        %2009 = vdwg.mxu0
        %v2014 = vunpack.c.l.b16 %v1924
        %v2015 = vunpack.c.l.b16 %v1925
        %v2016 = vunpack.c.l.b16 %v1926
        %v2017 = vunpack.c.l.b16 %v1927
        %v2018 = vpack.c.b16 %v2015, %v2014
        %v2019 = vpack.c.b16 %v2017, %v2016
        %v2021 = vsel %vm771, %v2018, 0
        %v2024 = vsel %vm771, %v2019, 0
        %2026 = vmatprep.subr.bf16.mxu0 %v1929
        %2027 = vmatpush1.bf16.msra.mxu0 %v1928
        %2028 = vmatprep.subr.bf16.mxu0 %v1931
        %2029 = vmatpush1.bf16.msra.mxu0 %v1930
        %2030 = vmatprep.subr.bf16.mxu0 0
        %2031 = vmatpush1.bf16.msra.mxu0 0
        %2032 = vmatprep.subr.bf16.mxu0 0
        %2033 = vmatpush1.bf16.msra.mxu0 0
        %2034 = vmatprep.subr.bf16.mxu0 0
        %2035 = vmatpush1.bf16.msra.mxu0 0
        %2036 = vmatprep.subr.bf16.mxu0 0
        %2037 = vmatpush1.bf16.msra.mxu0 0
        %2038 = vmatprep.subr.bf16.mxu0 0
        %2039 = vmatpush1.bf16.msra.mxu0 0
        %2040 = vmatprep.subr.bf16.mxu0 0
        %2041 = vmatpush1.bf16.msra.mxu0 0
        %2042 = vmatprep.subr.bf16.mxu0 0
        %2043 = vmatpush1.bf16.msra.mxu0 0
        %2044 = vmatprep.subr.bf16.mxu0 0
        %2045 = vmatpush1.bf16.msra.mxu0 0
        %2046 = vmatprep.subr.bf16.mxu0 0
        %2047 = vmatpush1.bf16.msra.mxu0 0
        %2048 = vmatprep.subr.bf16.mxu0 0
        %2049 = vmatpush1.bf16.msra.mxu0 0
        %2050 = vmatprep.subr.bf16.mxu0 0
        %2051 = vmatpush1.bf16.msra.mxu0 0
        %2052 = vmatprep.subr.bf16.mxu0 0
        %2053 = vmatpush1.bf16.msra.mxu0 0
        %2054 = vmatprep.subr.bf16.mxu0 0
        %2055 = vmatpush1.bf16.msra.mxu0 0
        %2056 = vmatprep.subr.bf16.mxu0 0
        %2057 = vmatpush1.bf16.msra.mxu0 0
        %2058 = vmatprep.mubr.bf16.mxu0 0
        %2059 = vmatmul.mubr.bf16.gmra.mrb[0].mxu0 %v2021
        %v2060 = vpop.f32.mrb[0].mxu0
        %v2061 = vadd.f32 %v1992, %v2060
        %v2062 = vpop.f32.mrb[0].mxu0
        %v2063 = vadd.f32 %v1994, %v2062
        %v2064 = vpop.f32.mrb[0].mxu0
        %v2065 = vadd.f32 %v1996, %v2064
        %v2066 = vpop.f32.mrb[0].mxu0
        %v2067 = vadd.f32 %v1998, %v2066
        %2068 = vmatprep.mubr.bf16.mxu0 0
        %2069 = vmatmul.mubr.bf16.gmra.mrb[0].mxu0 %v2024
        %v2070 = vpop.f32.mrb[0].mxu0
        %v2071 = vadd.f32 %v2002, %v2070
        %v2072 = vpop.f32.mrb[0].mxu0
        %v2073 = vadd.f32 %v2004, %v2072
        %v2074 = vpop.f32.mrb[0].mxu0
        %v2075 = vadd.f32 %v2006, %v2074
        %v2076 = vpop.f32.mrb[0].mxu0
        %v2077 = vadd.f32 %v2008, %v2076
        %2078 = vdwg.mxu0
        %s2079 = scalar_lea.vmem %s4, 128
        %v2080 = vld [vmem:[%s2079] sm:$0xf]
        %v2081 = vld [vmem:[%s2079 + $0x4] sm:$0xf]
        %v2082 = vld [vmem:[%s2079 + $0x8] sm:$0xf]
        %v2083 = vld [vmem:[%s2079 + $0xc] sm:$0xf]
        %v2084 = vpack.c.bf16 %v1917, %v1915
        %v2085 = vpack.c.bf16 %v1918, %v1916
        %v2086 = vpack.c.bf16 %v1921, %v1919
        %v2087 = vpack.c.bf16 %v1922, %v1920
        %v2092 = vunpack.c.l.b16 %v2080
        %v2093 = vunpack.c.l.b16 %v2081
        %v2094 = vunpack.c.l.b16 %v2082
        %v2095 = vunpack.c.l.b16 %v2083
        %v2096 = vpack.c.b16 %v2093, %v2092
        %v2097 = vpack.c.b16 %v2095, %v2094
        %v2099 = vsel %vm771, %v2096, 0
        %v2102 = vsel %vm771, %v2097, 0
        %2104 = vmatprep.subr.bf16.mxu0 %v2085
        %2105 = vmatpush1.bf16.msra.mxu0 %v2084
        %2106 = vmatprep.subr.bf16.mxu0 %v2087
        %2107 = vmatpush1.bf16.msra.mxu0 %v2086
        %2108 = vmatprep.subr.bf16.mxu0 0
        %2109 = vmatpush1.bf16.msra.mxu0 0
        %2110 = vmatprep.subr.bf16.mxu0 0
        %2111 = vmatpush1.bf16.msra.mxu0 0
        %2112 = vmatprep.subr.bf16.mxu0 0
        %2113 = vmatpush1.bf16.msra.mxu0 0
        %2114 = vmatprep.subr.bf16.mxu0 0
        %2115 = vmatpush1.bf16.msra.mxu0 0
        %2116 = vmatprep.subr.bf16.mxu0 0
        %2117 = vmatpush1.bf16.msra.mxu0 0
        %2118 = vmatprep.subr.bf16.mxu0 0
        %2119 = vmatpush1.bf16.msra.mxu0 0
        %2120 = vmatprep.subr.bf16.mxu0 0
        %2121 = vmatpush1.bf16.msra.mxu0 0
        %2122 = vmatprep.subr.bf16.mxu0 0
        %2123 = vmatpush1.bf16.msra.mxu0 0
        %2124 = vmatprep.subr.bf16.mxu0 0
        %2125 = vmatpush1.bf16.msra.mxu0 0
        %2126 = vmatprep.subr.bf16.mxu0 0
        %2127 = vmatpush1.bf16.msra.mxu0 0
        %2128 = vmatprep.subr.bf16.mxu0 0
        %2129 = vmatpush1.bf16.msra.mxu0 0
        %2130 = vmatprep.subr.bf16.mxu0 0
        %2131 = vmatpush1.bf16.msra.mxu0 0
        %2132 = vmatprep.subr.bf16.mxu0 0
        %2133 = vmatpush1.bf16.msra.mxu0 0
        %2134 = vmatprep.subr.bf16.mxu0 0
        %2135 = vmatpush1.bf16.msra.mxu0 0
        %2136 = vmatprep.mubr.bf16.mxu0 0
        %2137 = vmatmul.mubr.bf16.gmra.mrb[0].mxu0 %v2099
        %v2138 = vpop.f32.mrb[0].mxu0
        %v2139 = vadd.f32 0.0, %v2138
        %v2140 = vpop.f32.mrb[0].mxu0
        %v2141 = vadd.f32 0.0, %v2140
        %v2142 = vpop.f32.mrb[0].mxu0
        %v2143 = vadd.f32 0.0, %v2142
        %v2144 = vpop.f32.mrb[0].mxu0
        %v2145 = vadd.f32 0.0, %v2144
        %2146 = vmatprep.mubr.bf16.mxu0 0
        %2147 = vmatmul.mubr.bf16.gmra.mrb[0].mxu0 %v2102
        %v2148 = vpop.f32.mrb[0].mxu0
        %v2149 = vadd.f32 0.0, %v2148
        %v2150 = vpop.f32.mrb[0].mxu0
        %v2151 = vadd.f32 0.0, %v2150
        %v2152 = vpop.f32.mrb[0].mxu0
        %v2153 = vadd.f32 0.0, %v2152
        %v2154 = vpop.f32.mrb[0].mxu0
        %v2155 = vadd.f32 0.0, %v2154
        %2156 = vdwg.mxu0
        %v2157 = vadd.f32 %v2061, %v2139
        %v2158 = vadd.f32 %v2063, %v2141
        %v2159 = vadd.f32 %v2065, %v2143
        %v2160 = vadd.f32 %v2067, %v2145
        %v2161 = vadd.f32 %v2071, %v2149
        %v2162 = vadd.f32 %v2073, %v2151
        %v2163 = vadd.f32 %v2075, %v2153
        %v2164 = vadd.f32 %v2077, %v2155
        %s2165 = scalar_lea.vmem %s5, 64
        %v2166 = vld [vmem:[%s2165] sm:$0xff]
        %v2167 = vld [vmem:[%s2165 + $0x8] sm:$0xff]
        %v2168 = vld [vmem:[%s2165 + $0x10] sm:$0xff]
        %v2169 = vld [vmem:[%s2165 + $0x18] sm:$0xff]
        %2171 = vset.pattern.permute.xlu0 0
        %2172 = vperm.xlu0 %2171, %v2166
        %v2173 = vpop.permute.xlu0 %2172
        %2176 = vset.pattern.permute.xlu0 0
        %2177 = vperm.xlu0 %2176, %v2167
        %v2178 = vpop.permute.xlu0 %2177
        %2181 = vset.pattern.permute.xlu0 0
        %2182 = vperm.xlu0 %2181, %v2168
        %v2183 = vpop.permute.xlu0 %2182
        %2186 = vset.pattern.permute.xlu0 0
        %2187 = vperm.xlu0 %2186, %v2169
        %v2188 = vpop.permute.xlu0 %2187
        %v2190 = vadd.f32 %v2157, %v2173
        %v2191 = vadd.f32 %v2158, %v2173
        %v2192 = vadd.f32 %v2159, %v2178
        %v2193 = vadd.f32 %v2160, %v2178
        %v2194 = vadd.f32 %v2161, %v2183
        %v2195 = vadd.f32 %v2162, %v2183
        %v2196 = vadd.f32 %v2163, %v2188
        %v2197 = vadd.f32 %v2164, %v2188
        %v2198 = vmax.f32 %v2190, 0.0
        %v2199 = vmax.f32 %v2191, 0.0
        %v2200 = vmax.f32 %v2192, 0.0
        %v2201 = vmax.f32 %v2193, 0.0
        %v2202 = vmax.f32 %v2194, 0.0
        %v2203 = vmax.f32 %v2195, 0.0
        %v2204 = vmax.f32 %v2196, 0.0
        %v2205 = vmax.f32 %v2197, 0.0
        %s2206 = scalar_lea.vmem %s6, 32
        %v2207 = vld [vmem:[%s2206] sm:$0xf]
        %v2208 = vld [vmem:[%s2206 + $0x4] sm:$0xf]
        %v2209 = vld [vmem:[%s2206 + $0x8] sm:$0xf]
        %v2210 = vld [vmem:[%s2206 + $0xc] sm:$0xf]
        %v2211 = vpack.c.bf16 %v2200, %v2198
        %v2212 = vpack.c.bf16 %v2201, %v2199
        %v2213 = vpack.c.bf16 %v2204, %v2202
        %v2214 = vpack.c.bf16 %v2205, %v2203
        %s2215 = scalar_lea.vmem %s7, 64
        %v2216 = vld [vmem:[%s2215] sm:$0xff]
        %v2217 = vld [vmem:[%s2215 + $0x8] sm:$0xff]
        %v2218 = vld [vmem:[%s2215 + $0x10] sm:$0xff]
        %v2219 = vld [vmem:[%s2215 + $0x18] sm:$0xff]
        %2221 = vset.pattern.permute.xlu0 0
        %2222 = vperm.xlu0 %2221, %v2216
        %v2223 = vpop.permute.xlu0 %2222
        %2226 = vset.pattern.permute.xlu0 0
        %2227 = vperm.xlu0 %2226, %v2217
        %v2228 = vpop.permute.xlu0 %2227
        %2231 = vset.pattern.permute.xlu0 0
        %2232 = vperm.xlu0 %2231, %v2218
        %v2233 = vpop.permute.xlu0 %2232
        %2236 = vset.pattern.permute.xlu0 0
        %2237 = vperm.xlu0 %2236, %v2219
        %v2238 = vpop.permute.xlu0 %2237
        %v2244 = vunpack.c.l.b16 %v2207
        %v2245 = vunpack.c.l.b16 %v2208
        %v2246 = vunpack.c.l.b16 %v2209
        %v2247 = vunpack.c.l.b16 %v2210
        %v2248 = vpack.c.b16 %v2245, %v2244
        %v2249 = vpack.c.b16 %v2247, %v2246
        %v2251 = vsel %vm771, %v2248, 0
        %v2254 = vsel %vm771, %v2249, 0
        %2256 = vmatprep.subr.bf16.mxu0 %v2212
        %2257 = vmatpush1.bf16.msra.mxu0 %v2211
        %2258 = vmatprep.subr.bf16.mxu0 %v2214
        %2259 = vmatpush1.bf16.msra.mxu0 %v2213
        %2260 = vmatprep.subr.bf16.mxu0 0
        %2261 = vmatpush1.bf16.msra.mxu0 0
        %2262 = vmatprep.subr.bf16.mxu0 0
        %2263 = vmatpush1.bf16.msra.mxu0 0
        %2264 = vmatprep.subr.bf16.mxu0 0
        %2265 = vmatpush1.bf16.msra.mxu0 0
        %2266 = vmatprep.subr.bf16.mxu0 0
        %2267 = vmatpush1.bf16.msra.mxu0 0
        %2268 = vmatprep.subr.bf16.mxu0 0
        %2269 = vmatpush1.bf16.msra.mxu0 0
        %2270 = vmatprep.subr.bf16.mxu0 0
        %2271 = vmatpush1.bf16.msra.mxu0 0
        %2272 = vmatprep.subr.bf16.mxu0 0
        %2273 = vmatpush1.bf16.msra.mxu0 0
        %2274 = vmatprep.subr.bf16.mxu0 0
        %2275 = vmatpush1.bf16.msra.mxu0 0
        %2276 = vmatprep.subr.bf16.mxu0 0
        %2277 = vmatpush1.bf16.msra.mxu0 0
        %2278 = vmatprep.subr.bf16.mxu0 0
        %2279 = vmatpush1.bf16.msra.mxu0 0
        %2280 = vmatprep.subr.bf16.mxu0 0
        %2281 = vmatpush1.bf16.msra.mxu0 0
        %2282 = vmatprep.subr.bf16.mxu0 0
        %2283 = vmatpush1.bf16.msra.mxu0 0
        %2284 = vmatprep.subr.bf16.mxu0 0
        %2285 = vmatpush1.bf16.msra.mxu0 0
        %2286 = vmatprep.subr.bf16.mxu0 0
        %2287 = vmatpush1.bf16.msra.mxu0 0
        %2288 = vmatprep.mubr.bf16.mxu0 0
        %2289 = vmatmul.mubr.bf16.gmra.mrb[0].mxu0 %v2251
        %v2290 = vpop.f32.mrb[0].mxu0
        %v2291 = vadd.f32 %v2223, %v2290
        %v2292 = vpop.f32.mrb[0].mxu0
        %v2293 = vadd.f32 %v2223, %v2292
        %v2294 = vpop.f32.mrb[0].mxu0
        %v2295 = vadd.f32 %v2228, %v2294
        %v2296 = vpop.f32.mrb[0].mxu0
        %v2297 = vadd.f32 %v2228, %v2296
        %2298 = vmatprep.mubr.bf16.mxu0 0
        %2299 = vmatmul.mubr.bf16.gmra.mrb[0].mxu0 %v2254
        %v2300 = vpop.f32.mrb[0].mxu0
        %v2301 = vadd.f32 %v2233, %v2300
        %v2302 = vpop.f32.mrb[0].mxu0
        %v2303 = vadd.f32 %v2233, %v2302
        %v2304 = vpop.f32.mrb[0].mxu0
        %v2305 = vadd.f32 %v2238, %v2304
        %v2306 = vpop.f32.mrb[0].mxu0
        %v2307 = vadd.f32 %v2238, %v2306
        %2308 = vdwg.mxu0
        %v2309 = vmul.f32 %v2291, 0.2
        %v2310 = vmul.f32 %v2293, 0.2
        %v2311 = vmul.f32 %v2295, 0.2
        %v2312 = vmul.f32 %v2297, 0.2
        %v2313 = vmul.f32 %v2301, 0.2
        %v2314 = vmul.f32 %v2303, 0.2
        %v2315 = vmul.f32 %v2305, 0.2
        %v2316 = vmul.f32 %v2307, 0.2
        %v2317 = vmax.f32 %v2291, %v2309
        %v2318 = vmax.f32 %v2293, %v2310
        %v2319 = vmax.f32 %v2295, %v2311
        %v2320 = vmax.f32 %v2297, %v2312
        %v2321 = vmax.f32 %v2301, %v2313
        %v2322 = vmax.f32 %v2303, %v2314
        %v2323 = vmax.f32 %v2305, %v2315
        %v2324 = vmax.f32 %v2307, %v2316
        %s2325 = scalar_lea.vmem %s8, 64
        %v2326 = vld [vmem:[%s2325] sm:$0xff]
        %v2327 = vld [vmem:[%s2325 + $0x8] sm:$0xff]
        %v2328 = vld [vmem:[%s2325 + $0x10] sm:$0xff]
        %v2329 = vld [vmem:[%s2325 + $0x18] sm:$0xff]
        %2331 = vset.pattern.permute.xlu0 0
        %2332 = vperm.xlu0 %2331, %v2326
        %v2333 = vpop.permute.xlu0 %2332
        %2336 = vset.pattern.permute.xlu0 0
        %2337 = vperm.xlu0 %2336, %v2327
        %v2338 = vpop.permute.xlu0 %2337
        %2341 = vset.pattern.permute.xlu0 0
        %2342 = vperm.xlu0 %2341, %v2328
        %v2343 = vpop.permute.xlu0 %2342
        %2346 = vset.pattern.permute.xlu0 0
        %2347 = vperm.xlu0 %2346, %v2329
        %v2348 = vpop.permute.xlu0 %2347
        %v2350 = vmul.f32 %v2317, %v2333
        %v2351 = vmul.f32 %v2318, %v2333
        %v2352 = vmul.f32 %v2319, %v2338
        %v2353 = vmul.f32 %v2320, %v2338
        %v2354 = vmul.f32 %v2321, %v2343
        %v2355 = vmul.f32 %v2322, %v2343
        %v2356 = vmul.f32 %v2323, %v2348
        %v2357 = vmul.f32 %v2324, %v2348
        %s2358 = scalar_lea.vmem %s9, 64
        %v2359 = vld [vmem:[%s2358] sm:$0xff]
        %v2360 = vld [vmem:[%s2358 + $0x8] sm:$0xff]
        %v2361 = vld [vmem:[%s2358 + $0x10] sm:$0xff]
        %v2362 = vld [vmem:[%s2358 + $0x18] sm:$0xff]
        %2364 = vset.pattern.permute.xlu0 0
        %2365 = vperm.xlu0 %2364, %v2359
        %v2366 = vpop.permute.xlu0 %2365
        %2369 = vset.pattern.permute.xlu0 0
        %2370 = vperm.xlu0 %2369, %v2360
        %v2371 = vpop.permute.xlu0 %2370
        %2374 = vset.pattern.permute.xlu0 0
        %2375 = vperm.xlu0 %2374, %v2361
        %v2376 = vpop.permute.xlu0 %2375
        %2379 = vset.pattern.permute.xlu0 0
        %2380 = vperm.xlu0 %2379, %v2362
        %v2381 = vpop.permute.xlu0 %2380
        %v2383 = vadd.f32 %v2350, %v2366
        %v2384 = vadd.f32 %v2351, %v2366
        %v2385 = vadd.f32 %v2352, %v2371
        %v2386 = vadd.f32 %v2353, %v2371
        %v2387 = vadd.f32 %v2354, %v2376
        %v2388 = vadd.f32 %v2355, %v2376
        %v2389 = vadd.f32 %v2356, %v2381
        %v2390 = vadd.f32 %v2357, %v2381
        %v2391 = vadd.f32 %v1807, %v2383
        %v2392 = vadd.f32 %v1808, %v2384
        %v2393 = vadd.f32 %v1809, %v2385
        %v2394 = vadd.f32 %v1810, %v2386
        %v2395 = vadd.f32 %v1811, %v2387
        %v2396 = vadd.f32 %v1812, %v2388
        %v2397 = vadd.f32 %v1813, %v2389
        %v2398 = vadd.f32 %v1814, %v2390
        %v2399 = vmul.f32 %v2391, %v496
        %v2400 = vmul.f32 %v2392, %v500
        %v2401 = vmul.f32 %v2393, %v496
        %v2402 = vmul.f32 %v2394, %v500
        %v2403 = vmul.f32 %v2395, %v496
        %v2404 = vmul.f32 %v2396, %v500
        %v2405 = vmul.f32 %v2397, %v496
        %v2406 = vmul.f32 %v2398, %v500
        %v2407 = vld [vmem:[%s10] sm:$0xf]
        %v2408 = vpack.c.bf16 %v2401, %v2399
        %v2409 = vpack.c.bf16 %v2402, %v2400
        %v2410 = vpack.c.bf16 %v2405, %v2403
        %v2411 = vpack.c.bf16 %v2406, %v2404
        %v2412 = vld [vmem:[%s11] sm:$0xff]
        %2414 = vset.pattern.permute.xlu0 0
        %2415 = vperm.xlu0 %2414, %v2412
        %v2416 = vpop.permute.xlu0 %2415
        %v2419 = vsel %vm771, %v2407, 0
        %2421 = vmatprep.subr.bf16.mxu0 %v2409
        %2422 = vmatpush1.bf16.msra.mxu0 %v2408
        %2423 = vmatprep.subr.bf16.mxu0 %v2411
        %2424 = vmatpush1.bf16.msra.mxu0 %v2410
        %2425 = vmatprep.subr.bf16.mxu0 0
        %2426 = vmatpush1.bf16.msra.mxu0 0
        %2427 = vmatprep.subr.bf16.mxu0 0
        %2428 = vmatpush1.bf16.msra.mxu0 0
        %2429 = vmatprep.subr.bf16.mxu0 0
        %2430 = vmatpush1.bf16.msra.mxu0 0
        %2431 = vmatprep.subr.bf16.mxu0 0
        %2432 = vmatpush1.bf16.msra.mxu0 0
        %2433 = vmatprep.subr.bf16.mxu0 0
        %2434 = vmatpush1.bf16.msra.mxu0 0
        %2435 = vmatprep.subr.bf16.mxu0 0
        %2436 = vmatpush1.bf16.msra.mxu0 0
        %2437 = vmatprep.subr.bf16.mxu0 0
        %2438 = vmatpush1.bf16.msra.mxu0 0
        %2439 = vmatprep.subr.bf16.mxu0 0
        %2440 = vmatpush1.bf16.msra.mxu0 0
        %2441 = vmatprep.subr.bf16.mxu0 0
        %2442 = vmatpush1.bf16.msra.mxu0 0
        %2443 = vmatprep.subr.bf16.mxu0 0
        %2444 = vmatpush1.bf16.msra.mxu0 0
        %2445 = vmatprep.subr.bf16.mxu0 0
        %2446 = vmatpush1.bf16.msra.mxu0 0
        %2447 = vmatprep.subr.bf16.mxu0 0
        %2448 = vmatpush1.bf16.msra.mxu0 0
        %2449 = vmatprep.subr.bf16.mxu0 0
        %2450 = vmatpush1.bf16.msra.mxu0 0
        %2451 = vmatprep.subr.bf16.mxu0 0
        %2452 = vmatpush1.bf16.msra.mxu0 0
        %2453 = vmatprep.mubr.bf16.mxu0 0
        %2454 = vmatmul.mubr.bf16.gmra.mrb[0].mxu0 %v2419
        %v2455 = vpop.f32.mrb[0].mxu0
        %v2456 = vadd.f32 %v2416, %v2455
        %v2457 = vpop.f32.mrb[0].mxu0
        %v2458 = vadd.f32 %v2416, %v2457
        %v2459 = vpop.f32.mrb[0].mxu0
        %v2460 = vpop.f32.mrb[0].mxu0
        %2461 = vdwg.mxu0
        %v2462 = vmul.f32 %v2456, %v496
        %v2463 = vmul.f32 %v2458, %v500
        %2466 = vrot.lane.b32.xlu0 %v2462, 122
        %v2467 = vpop.permute.xlu0 %2466
        %2468 = vrot.lane.b32.xlu0 %v2463, 122
        %v2469 = vpop.permute.xlu0 %2468
        %vm2470 = vcmask 998400
        %v2471 = vsel %vm2470, %v2467, %v2469
        %2473 = vst [vmem:[%s453] sm:$0xff] %v2471
        %s2474 = sand.u32 %s314, 1
        %s2475 = scalar_lea.sflag [#allocation3], %s2474
        %s2476 = sand.u32 %s314, 1
        %s2477 = smul.addr %s2476, 8
        %s2478 = scalar_lea.vmem [#allocation2], %s2477
        // Predicated region
        $region69: #{tpu_custom_call.1} parent=67 // pred_check
          %p2479 = pneg %p324
        $region70: #{tpu_custom_call.1} parent=67 // pred_check_branch
          %2481 = sbr.rel (%p2479) target = $region72
        $region71: #{tpu_custom_call.1} parent=67 // pred_region
          %s2483 = ssub.s32 128, 128
          %2484 = vsyncadd %s2475, %s2483
          %s2485 = sadd.s32 %s31, %s30
          %s2486 = smul.addr %s2485, 128
          %s2487 = scalar_lea.hbm %s12, %s2486
          %s2489 = sshll.u32 %s2478, 4
          %s2490 = int_to_ptr.vmem [resolvable:$true] %s2489
          %2492 = dma.vmem_to_hbm [thread:$0]  %s2490, 128, %s2487, %s2475
        $region72: #{tpu_custom_call.1} parent=67 // pred_fallthru
          _
      $region68: #{tpu_custom_call.1} parent=5 // pred_fallthru
        _
      %p2493 = scmp.le.s32.totalorder 2, %s21
      // Predicated region
      $region73: #{tpu_custom_call.1} parent=5 // pred_check
        %p2494 = pneg %p2493
      $region74: #{tpu_custom_call.1} parent=5 // pred_check_branch
        %2496 = sbr.rel (%p2494) target = $region76
      $region75: #{tpu_custom_call.1} parent=5 // pred_region
        %s2497 = ssub.s32 %s21, 2
        // Predicated region
        $region77: #{tpu_custom_call.1} parent=75 // pred_check
          %p2498 = pneg %p330
        $region78: #{tpu_custom_call.1} parent=75 // pred_check_branch
          %2500 = sbr.rel (%p2498) target = $region80
        $region79: #{tpu_custom_call.1} parent=75 // pred_region
          %s2501 = sand.u32 %s315, 1
          %s2502 = scalar_lea.sflag [#allocation3], %s2501
          %s2503 = sand.u32 %s315, 1
          %s2504 = smul.addr %s2503, 8
          %s2505 = scalar_lea.vmem [#allocation2], %s2504
          %2506 = dma.done %s2502, 128
        $region80: #{tpu_custom_call.1} parent=75 // pred_fallthru
          _
      $region76: #{tpu_custom_call.1} parent=5 // pred_fallthru
        _
    $region6: #{tpu_custom_call.1} parent=1 // loop_footer
      %s25 = sadd.s32 1, %s21
    $region7: #{tpu_custom_call.1} parent=1 // loop_footer_branch
      %20 = sbr.rel target = $region3
    $region8: #{tpu_custom_call.1} parent=1 // loop_exit
      _
    %2507 = vsyncpa [#allocation3], 1
    %s2508 = scalar_lea.sflag [#allocation3], 1
    %2509 = vsyncpa %s2508, 1

// kernel: tpu_custom_call.1
$region0: #{tpu_custom_call.1}
  #allocation0 [shape = 'u32[]', space=smem, size = 0x4, offset = 0x4, fixed_abs, tag = 'smem constant byte address 0x4 - core index']
  #allocation1 [shape = 'u32[144,128]{1,0:T(1,128)}', space=vmem, size = 0x12000, scoped, tag = 'internal scratch']
  %s0 = inlined_call_operand.vmem [shape: bf16[2,1,8,140], index: 0, kind: input, shape index: {}]
  %s1 = inlined_call_operand.vmem [shape: f32[2,1,1,140], index: 1, kind: input, shape index: {}]
  %s2 = inlined_call_operand.vmem [shape: bf16[32,8], index: 2, kind: input, shape index: {}]
  %s3 = inlined_call_operand.vmem [shape: f32[32,1], index: 3, kind: input, shape index: {}]
  %s4 = inlined_call_operand.vmem [shape: bf16[3,3,32,32], index: 4, kind: input, shape index: {}]
  %s5 = inlined_call_operand.vmem [shape: f32[3,32,1], index: 5, kind: input, shape index: {}]
  %s6 = inlined_call_operand.vmem [shape: bf16[3,32,32], index: 6, kind: input, shape index: {}]
  %s7 = inlined_call_operand.vmem [shape: f32[3,32,1], index: 7, kind: input, shape index: {}]
  %s8 = inlined_call_operand.vmem [shape: f32[3,32,1], index: 8, kind: input, shape index: {}]
  %s9 = inlined_call_operand.vmem [shape: f32[3,32,1], index: 9, kind: input, shape index: {}]
  %s10 = inlined_call_operand.vmem [shape: bf16[8,32], index: 10, kind: input, shape index: {}]
  %s11 = inlined_call_operand.vmem [shape: f32[8,1], index: 11, kind: input, shape index: {}]
  %s12 = inlined_call_operand.hbm [shape: f32[2,8,128], index: 12, kind: output, shape index: {}]
  %s13 = sld [smem:[#allocation0]]
  $region81: #{tpu_custom_call.1} parent=0
    _
  %s15 = ssub.s32 1, %s13
  %s16 = scalar_select 0, %s15, %s13
  $region1: #{tpu_custom_call.1} parent=0
    #allocation2 [shape = 'u8[8192]{0}', space=vmem, size = 0x2000, scoped, tag = 'output window, operand 0']
    #allocation3 [shape = 's32[2]{0}', space=sflag, size = 0x8, scoped, tag = 'scoped memory for tpu_custom_call.1']
    %17 = vsyncpa [#allocation3], 0
    %s18 = scalar_lea.sflag [#allocation3], 1
    %19 = vsyncpa %s18, 0
    loop: start=0, step=1, limit=4
    $region2: #{tpu_custom_call.1} parent=1 // loop_pre_header
      _
    $region3: #{tpu_custom_call.1} parent=1 // loop_header
      %s21 = sphi 0, %s25
      %p22 = scmp.ge.s32.totalorder %s21, 4
      %s28 = sphi 0, %s40
      %s29 = sphi 0, %s36
      %s30 = sphi 0, %s28
      %s31 = sphi 0, %s29
      %s32 = sphi 0, %s30
      %s33 = sphi 0, %s31
      %s45 = sphi 0, %s47
      %s48 = sphi 0, %s45
      %s49 = sphi 0, %s48
      %s65 = sphi 0, %s49
      %s73 = sphi 0, %s75
      %s76 = sphi 0, %s73
      %s77 = sphi 0, %s76
      %s93 = sphi 0, %s77
      %s97 = sphi 0, %s97
      %s99 = sphi 0, %s97
      %s100 = sphi 0, %s99
      %s114 = sphi 0, %s100
      %s118 = sphi 0, %s118
      %s120 = sphi 0, %s118
      %s121 = sphi 0, %s120
      %s135 = sphi 0, %s121
      %s139 = sphi 0, %s139
      %s141 = sphi 0, %s139
      %s142 = sphi 0, %s141
      %s156 = sphi 0, %s142
      %s160 = sphi 0, %s160
      %s162 = sphi 0, %s160
      %s163 = sphi 0, %s162
      %s177 = sphi 0, %s163
      %s181 = sphi 0, %s181
      %s183 = sphi 0, %s181
      %s184 = sphi 0, %s183
      %s198 = sphi 0, %s184
      %s202 = sphi 0, %s202
      %s204 = sphi 0, %s202
      %s205 = sphi 0, %s204
      %s219 = sphi 0, %s205
      %s223 = sphi 0, %s223
      %s225 = sphi 0, %s223
      %s226 = sphi 0, %s225
      %s240 = sphi 0, %s226
      %s244 = sphi 0, %s244
      %s246 = sphi 0, %s244
      %s247 = sphi 0, %s246
      %s261 = sphi 0, %s247
      %s265 = sphi 0, %s265
      %s267 = sphi 0, %s265
      %s268 = sphi 0, %s267
      %s282 = sphi 0, %s268
      %s286 = sphi 0, %s286
      %s288 = sphi 0, %s286
      %s289 = sphi 0, %s288
      %s303 = sphi 0, %s289
      %s311 = sphi 0, %s313
      %s314 = sphi 0, %s311
      %s315 = sphi 0, %s314
      %s331 = sphi 0, %s315
    $region4: #{tpu_custom_call.1} parent=1 // loop_header_branch
      %24 = sbr.rel (%p22) target = $region8
    $region5: #{tpu_custom_call.1} parent=1 // loop_body
      %s26 = ssub.s32 %s21, 1
      %s27 = ssub.s32 %s21, 2
      %s34 = sadd.s32 1, %s29
      %p35 = scmp.ge.s32.totalorder %s34, 1
      %s36 = scalar_select %p35, 0, %s34
      %s37 = sadd.s32 1, %s28
      %s38 = scalar_select %p35, %s37, %s28
      %p39 = scmp.ge.s32.totalorder %s38, 2
      %s40 = scalar_select %p39, 0, %s38
      %s41 = ssub.s32 %s28, %s40
      %s42 = ssub.s32 %s29, %s36
      %s43 = sor.u32 %s41, %s42
      %p44 = scmp.eq.s32.totalorder %s43, 0
      %s46 = sadd.s32 %s45, 1
      %s47 = scalar_select %p44, %s45, %s46
      %p50 = pneg %p44
      %p51 = scmp.eq.s32.totalorder %s21, 1
      %p52 = por %p50, %p51
      %p53 = scmp.ne.s32.totalorder %s45, %s48
      %p54 = scmp.eq.s32.totalorder %s21, 0
      %p55 = por %p53, %p54
      %p56 = scmp.ne.s32.totalorder %s45, %s48
      %p57 = scmp.eq.s32.totalorder %s26, 1
      %p58 = por %p56, %p57
      %p59 = scmp.ne.s32.totalorder %s48, %s49
      %p60 = scmp.eq.s32.totalorder %s26, 0
      %p61 = por %p59, %p60
      %p62 = scmp.ne.s32.totalorder %s48, %s49
      %p63 = scmp.eq.s32.totalorder %s27, 1
      %p64 = por %p62, %p63
      %p66 = scmp.ne.s32.totalorder %s49, %s65
      %p67 = scmp.eq.s32.totalorder %s27, 0
      %p68 = por %p66, %p67
      %s69 = ssub.s32 %s28, %s40
      %s70 = ssub.s32 %s29, %s36
      %s71 = sor.u32 %s69, %s70
      %p72 = scmp.eq.s32.totalorder %s71, 0
      %s74 = sadd.s32 %s73, 1
      %s75 = scalar_select %p72, %s73, %s74
      %p78 = pneg %p72
      %p79 = scmp.eq.s32.totalorder %s21, 1
      %p80 = por %p78, %p79
      %p81 = scmp.ne.s32.totalorder %s73, %s76
      %p82 = scmp.eq.s32.totalorder %s21, 0
      %p83 = por %p81, %p82
      %p84 = scmp.ne.s32.totalorder %s73, %s76
      %p85 = scmp.eq.s32.totalorder %s26, 1
      %p86 = por %p84, %p85
      %p87 = scmp.ne.s32.totalorder %s76, %s77
      %p88 = scmp.eq.s32.totalorder %s26, 0
      %p89 = por %p87, %p88
      %p90 = scmp.ne.s32.totalorder %s76, %s77
      %p91 = scmp.eq.s32.totalorder %s27, 1
      %p92 = por %p90, %p91
      %p94 = scmp.ne.s32.totalorder %s77, %s93
      %p95 = scmp.eq.s32.totalorder %s27, 0
      %p96 = por %p94, %p95
      %s98 = sadd.s32 %s97, 1
      %p101 = scmp.eq.s32.totalorder %s21, 1
      %p102 = scmp.ne.s32.totalorder %s97, %s99
      %p103 = scmp.eq.s32.totalorder %s21, 0
      %p104 = por %p102, %p103
      %p105 = scmp.ne.s32.totalorder %s97, %s99
      %p106 = scmp.eq.s32.totalorder %s26, 1
      %p107 = por %p105, %p106
      %p108 = scmp.ne.s32.totalorder %s99, %s100
      %p109 = scmp.eq.s32.totalorder %s26, 0
      %p110 = por %p108, %p109
      %p111 = scmp.ne.s32.totalorder %s99, %s100
      %p112 = scmp.eq.s32.totalorder %s27, 1
      %p113 = por %p111, %p112
      %p115 = scmp.ne.s32.totalorder %s100, %s114
      %p116 = scmp.eq.s32.totalorder %s27, 0
      %p117 = por %p115, %p116
      %s119 = sadd.s32 %s118, 1
      %p122 = scmp.eq.s32.totalorder %s21, 1
      %p123 = scmp.ne.s32.totalorder %s118, %s120
      %p124 = scmp.eq.s32.totalorder %s21, 0
      %p125 = por %p123, %p124
      %p126 = scmp.ne.s32.totalorder %s118, %s120
      %p127 = scmp.eq.s32.totalorder %s26, 1
      %p128 = por %p126, %p127
      %p129 = scmp.ne.s32.totalorder %s120, %s121
      %p130 = scmp.eq.s32.totalorder %s26, 0
      %p131 = por %p129, %p130
      %p132 = scmp.ne.s32.totalorder %s120, %s121
      %p133 = scmp.eq.s32.totalorder %s27, 1
      %p134 = por %p132, %p133
      %p136 = scmp.ne.s32.totalorder %s121, %s135
      %p137 = scmp.eq.s32.totalorder %s27, 0
      %p138 = por %p136, %p137
      %s140 = sadd.s32 %s139, 1
      %p143 = scmp.eq.s32.totalorder %s21, 1
      %p144 = scmp.ne.s32.totalorder %s139, %s141
      %p145 = scmp.eq.s32.totalorder %s21, 0
      %p146 = por %p144, %p145
      %p147 = scmp.ne.s32.totalorder %s139, %s141
      %p148 = scmp.eq.s32.totalorder %s26, 1
      %p149 = por %p147, %p148
      %p150 = scmp.ne.s32.totalorder %s141, %s142
      %p151 = scmp.eq.s32.totalorder %s26, 0
      %p152 = por %p150, %p151
      %p153 = scmp.ne.s32.totalorder %s141, %s142
      %p154 = scmp.eq.s32.totalorder %s27, 1
      %p155 = por %p153, %p154
      %p157 = scmp.ne.s32.totalorder %s142, %s156
      %p158 = scmp.eq.s32.totalorder %s27, 0
      %p159 = por %p157, %p158
      %s161 = sadd.s32 %s160, 1
      %p164 = scmp.eq.s32.totalorder %s21, 1
      %p165 = scmp.ne.s32.totalorder %s160, %s162
      %p166 = scmp.eq.s32.totalorder %s21, 0
      %p167 = por %p165, %p166
      %p168 = scmp.ne.s32.totalorder %s160, %s162
      %p169 = scmp.eq.s32.totalorder %s26, 1
      %p170 = por %p168, %p169
      %p171 = scmp.ne.s32.totalorder %s162, %s163
      %p172 = scmp.eq.s32.totalorder %s26, 0
      %p173 = por %p171, %p172
      %p174 = scmp.ne.s32.totalorder %s162, %s163
      %p175 = scmp.eq.s32.totalorder %s27, 1
      %p176 = por %p174, %p175
      %p178 = scmp.ne.s32.totalorder %s163, %s177
      %p179 = scmp.eq.s32.totalorder %s27, 0
      %p180 = por %p178, %p179
      %s182 = sadd.s32 %s181, 1
      %p185 = scmp.eq.s32.totalorder %s21, 1
      %p186 = scmp.ne.s32.totalorder %s181, %s183
      %p187 = scmp.eq.s32.totalorder %s21, 0
      %p188 = por %p186, %p187
      %p189 = scmp.ne.s32.totalorder %s181, %s183
      %p190 = scmp.eq.s32.totalorder %s26, 1
      %p191 = por %p189, %p190
      %p192 = scmp.ne.s32.totalorder %s183, %s184
      %p193 = scmp.eq.s32.totalorder %s26, 0
      %p194 = por %p192, %p193
      %p195 = scmp.ne.s32.totalorder %s183, %s184
      %p196 = scmp.eq.s32.totalorder %s27, 1
      %p197 = por %p195, %p196
      %p199 = scmp.ne.s32.totalorder %s184, %s198
      %p200 = scmp.eq.s32.totalorder %s27, 0
      %p201 = por %p199, %p200
      %s203 = sadd.s32 %s202, 1
      %p206 = scmp.eq.s32.totalorder %s21, 1
      %p207 = scmp.ne.s32.totalorder %s202, %s204
      %p208 = scmp.eq.s32.totalorder %s21, 0
      %p209 = por %p207, %p208
      %p210 = scmp.ne.s32.totalorder %s202, %s204
      %p211 = scmp.eq.s32.totalorder %s26, 1
      %p212 = por %p210, %p211
      %p213 = scmp.ne.s32.totalorder %s204, %s205
      %p214 = scmp.eq.s32.totalorder %s26, 0
      %p215 = por %p213, %p214
      %p216 = scmp.ne.s32.totalorder %s204, %s205
      %p217 = scmp.eq.s32.totalorder %s27, 1
      %p218 = por %p216, %p217
      %p220 = scmp.ne.s32.totalorder %s205, %s219
      %p221 = scmp.eq.s32.totalorder %s27, 0
      %p222 = por %p220, %p221
      %s224 = sadd.s32 %s223, 1
      %p227 = scmp.eq.s32.totalorder %s21, 1
      %p228 = scmp.ne.s32.totalorder %s223, %s225
      %p229 = scmp.eq.s32.totalorder %s21, 0
      %p230 = por %p228, %p229
      %p231 = scmp.ne.s32.totalorder %s223, %s225
      %p232 = scmp.eq.s32.totalorder %s26, 1
      %p233 = por %p231, %p232
      %p234 = scmp.ne.s32.totalorder %s225, %s226
      %p235 = scmp.eq.s32.totalorder %s26, 0
      %p236 = por %p234, %p235
      %p237 = scmp.ne.s32.totalorder %s225, %s226
      %p238 = scmp.eq.s32.totalorder %s27, 1
      %p239 = por %p237, %p238
      %p241 = scmp.ne.s32.totalorder %s226, %s240
      %p242 = scmp.eq.s32.totalorder %s27, 0
      %p243 = por %p241, %p242
      %s245 = sadd.s32 %s244, 1
      %p248 = scmp.eq.s32.totalorder %s21, 1
      %p249 = scmp.ne.s32.totalorder %s244, %s246
      %p250 = scmp.eq.s32.totalorder %s21, 0
      %p251 = por %p249, %p250
      %p252 = scmp.ne.s32.totalorder %s244, %s246
      %p253 = scmp.eq.s32.totalorder %s26, 1
      %p254 = por %p252, %p253
      %p255 = scmp.ne.s32.totalorder %s246, %s247
      %p256 = scmp.eq.s32.totalorder %s26, 0
      %p257 = por %p255, %p256
      %p258 = scmp.ne.s32.totalorder %s246, %s247
      %p259 = scmp.eq.s32.totalorder %s27, 1
      %p260 = por %p258, %p259
      %p262 = scmp.ne.s32.totalorder %s247, %s261
      %p263 = scmp.eq.s32.totalorder %s27, 0
      %p264 = por %p262, %p263
      %s266 = sadd.s32 %s265, 1
      %p269 = scmp.eq.s32.totalorder %s21, 1
      %p270 = scmp.ne.s32.totalorder %s265, %s267
      %p271 = scmp.eq.s32.totalorder %s21, 0
      %p272 = por %p270, %p271
      %p273 = scmp.ne.s32.totalorder %s265, %s267
      %p274 = scmp.eq.s32.totalorder %s26, 1
      %p275 = por %p273, %p274
      %p276 = scmp.ne.s32.totalorder %s267, %s268
      %p277 = scmp.eq.s32.totalorder %s26, 0
      %p278 = por %p276, %p277
      %p279 = scmp.ne.s32.totalorder %s267, %s268
      %p280 = scmp.eq.s32.totalorder %s27, 1
      %p281 = por %p279, %p280
      %p283 = scmp.ne.s32.totalorder %s268, %s282
      %p284 = scmp.eq.s32.totalorder %s27, 0
      %p285 = por %p283, %p284
      %s287 = sadd.s32 %s286, 1
      %p290 = scmp.eq.s32.totalorder %s21, 1
      %p291 = scmp.ne.s32.totalorder %s286, %s288
      %p292 = scmp.eq.s32.totalorder %s21, 0
      %p293 = por %p291, %p292
      %p294 = scmp.ne.s32.totalorder %s286, %s288
      %p295 = scmp.eq.s32.totalorder %s26, 1
      %p296 = por %p294, %p295
      %p297 = scmp.ne.s32.totalorder %s288, %s289
      %p298 = scmp.eq.s32.totalorder %s26, 0
      %p299 = por %p297, %p298
      %p300 = scmp.ne.s32.totalorder %s288, %s289
      %p301 = scmp.eq.s32.totalorder %s27, 1
      %p302 = por %p300, %p301
      %p304 = scmp.ne.s32.totalorder %s289, %s303
      %p305 = scmp.eq.s32.totalorder %s27, 0
      %p306 = por %p304, %p305
      %s307 = ssub.s32 %s28, %s40
      %s308 = ssub.s32 %s29, %s36
      %s309 = sor.u32 %s307, %s308
      %p310 = scmp.eq.s32.totalorder %s309, 0
      %s312 = sadd.s32 %s311, 1
      %s313 = scalar_select %p310, %s311, %s312
      %p316 = pneg %p310
      %p317 = scmp.eq.s32.totalorder %s21, 1
      %p318 = por %p316, %p317
      %p319 = scmp.ne.s32.totalorder %s311, %s314
      %p320 = scmp.eq.s32.totalorder %s21, 0
      %p321 = por %p319, %p320
      %p322 = scmp.ne.s32.totalorder %s311, %s314
      %p323 = scmp.eq.s32.totalorder %s26, 1
      %p324 = por %p322, %p323
      %p325 = scmp.ne.s32.totalorder %s314, %s315
      %p326 = scmp.eq.s32.totalorder %s26, 0
      %p327 = por %p325, %p326
      %p328 = scmp.ne.s32.totalorder %s314, %s315
      %p329 = scmp.eq.s32.totalorder %s27, 1
      %p330 = por %p328, %p329
      %p332 = scmp.ne.s32.totalorder %s315, %s331
      %p333 = scmp.eq.s32.totalorder %s27, 0
      %p334 = por %p332, %p333
      %p335 = scmp.le.s32.totalorder 1, %s21
      %p336 = scmp.lt.s32.totalorder %s21, 3
      %p337 = pnand %p335, %p336
      %p338 = pneg %p337
      // Predicated region
      $region9: #{tpu_custom_call.1} parent=5 // pred_check
        _
      $region10: #{tpu_custom_call.1} parent=5 // pred_check_branch
        %340 = sbr.rel (%p337) target = $region12
      $region11: #{tpu_custom_call.1} parent=5 // pred_region
        %s341 = ssub.s32 %s21, 1
        // Predicated region
        $region13: #{tpu_custom_call.1} parent=11 // pred_check
          %p342 = pneg %p110
        $region14: #{tpu_custom_call.1} parent=11 // pred_check_branch
          %344 = sbr.rel (%p342) target = $region16
        $region15: #{tpu_custom_call.1} parent=11 // pred_region
          _
        $region16: #{tpu_custom_call.1} parent=11 // pred_fallthru
          _
        // Predicated region
        $region17: #{tpu_custom_call.1} parent=11 // pred_check
          %p345 = pneg %p131
        $region18: #{tpu_custom_call.1} parent=11 // pred_check_branch
          %347 = sbr.rel (%p345) target = $region20
        $region19: #{tpu_custom_call.1} parent=11 // pred_region
          _
        $region20: #{tpu_custom_call.1} parent=11 // pred_fallthru
          _
        // Predicated region
        $region21: #{tpu_custom_call.1} parent=11 // pred_check
          %p348 = pneg %p152
        $region22: #{tpu_custom_call.1} parent=11 // pred_check_branch
          %350 = sbr.rel (%p348) target = $region24
        $region23: #{tpu_custom_call.1} parent=11 // pred_region
          _
        $region24: #{tpu_custom_call.1} parent=11 // pred_fallthru
          _
        // Predicated region
        $region25: #{tpu_custom_call.1} parent=11 // pred_check
          %p351 = pneg %p173
        $region26: #{tpu_custom_call.1} parent=11 // pred_check_branch
          %353 = sbr.rel (%p351) target = $region28
        $region27: #{tpu_custom_call.1} parent=11 // pred_region
          _
        $region28: #{tpu_custom_call.1} parent=11 // pred_fallthru
          _
        // Predicated region
        $region29: #{tpu_custom_call.1} parent=11 // pred_check
          %p354 = pneg %p194
        $region30: #{tpu_custom_call.1} parent=11 // pred_check_branch
          %356 = sbr.rel (%p354) target = $region32
        $region31: #{tpu_custom_call.1} parent=11 // pred_region
          _
        $region32: #{tpu_custom_call.1} parent=11 // pred_fallthru
          _
        // Predicated region
        $region33: #{tpu_custom_call.1} parent=11 // pred_check
          %p357 = pneg %p215
        $region34: #{tpu_custom_call.1} parent=11 // pred_check_branch
          %359 = sbr.rel (%p357) target = $region36
        $region35: #{tpu_custom_call.1} parent=11 // pred_region
          _
        $region36: #{tpu_custom_call.1} parent=11 // pred_fallthru
          _
        // Predicated region
        $region37: #{tpu_custom_call.1} parent=11 // pred_check
          %p360 = pneg %p236
        $region38: #{tpu_custom_call.1} parent=11 // pred_check_branch
          %362 = sbr.rel (%p360) target = $region40
        $region39: #{tpu_custom_call.1} parent=11 // pred_region
          _
        $region40: #{tpu_custom_call.1} parent=11 // pred_fallthru
          _
        // Predicated region
        $region41: #{tpu_custom_call.1} parent=11 // pred_check
          %p363 = pneg %p257
        $region42: #{tpu_custom_call.1} parent=11 // pred_check_branch
          %365 = sbr.rel (%p363) target = $region44
        $region43: #{tpu_custom_call.1} parent=11 // pred_region
          _
        $region44: #{tpu_custom_call.1} parent=11 // pred_fallthru
          _
        // Predicated region
        $region45: #{tpu_custom_call.1} parent=11 // pred_check
          %p366 = pneg %p278
        $region46: #{tpu_custom_call.1} parent=11 // pred_check_branch
          %368 = sbr.rel (%p366) target = $region48
        $region47: #{tpu_custom_call.1} parent=11 // pred_region
          _
        $region48: #{tpu_custom_call.1} parent=11 // pred_fallthru
          _
        // Predicated region
        $region49: #{tpu_custom_call.1} parent=11 // pred_check
          %p369 = pneg %p299
        $region50: #{tpu_custom_call.1} parent=11 // pred_check_branch
          %371 = sbr.rel (%p369) target = $region52
        $region51: #{tpu_custom_call.1} parent=11 // pred_region
          _
        $region52: #{tpu_custom_call.1} parent=11 // pred_fallthru
          _
      $region12: #{tpu_custom_call.1} parent=5 // pred_fallthru
        _
      %p372 = scmp.lt.s32.totalorder %s21, 2
      // Predicated region
      $region53: #{tpu_custom_call.1} parent=5 // pred_check
        %p373 = pneg %p372
      $region54: #{tpu_custom_call.1} parent=5 // pred_check_branch
        %375 = sbr.rel (%p373) target = $region56
      $region55: #{tpu_custom_call.1} parent=5 // pred_region
        // Predicated region
        $region57: #{tpu_custom_call.1} parent=55 // pred_check
          %p376 = pneg %p55
        $region58: #{tpu_custom_call.1} parent=55 // pred_check_branch
          %378 = sbr.rel (%p376) target = $region60
        $region59: #{tpu_custom_call.1} parent=55 // pred_region
          %p379 = scmp.lt.s32.totalorder %s28, 1
          %s380 = scalar_select %p379, %s28, 1
          %p381 = scmp.lt.s32.totalorder %s29, 0
          %s382 = scalar_select %p381, %s29, 0
          %s383 = smul.addr %s382, 2
          %s384 = smul.addr %s380, 2
          %s385 = sadd.s32 %s383, %s384
          %s386 = smul.addr %s385, 4
          %s387 = scalar_lea.vmem %s0, %s386
        $region60: #{tpu_custom_call.1} parent=55 // pred_fallthru
          _
        // Predicated region
        $region61: #{tpu_custom_call.1} parent=55 // pred_check
          %p388 = pneg %p83
        $region62: #{tpu_custom_call.1} parent=55 // pred_check_branch
          %390 = sbr.rel (%p388) target = $region64
        $region63: #{tpu_custom_call.1} parent=55 // pred_region
          %p391 = scmp.lt.s32.totalorder %s28, 1
          %s392 = scalar_select %p391, %s28, 1
          %p393 = scmp.lt.s32.totalorder %s29, 0
          %s394 = scalar_select %p393, %s29, 0
          %s395 = smul.addr %s394, 2
          %s396 = smul.addr %s392, 2
          %s397 = sadd.s32 %s395, %s396
          %s398 = scalar_lea.vmem %s1, %s397
        $region64: #{tpu_custom_call.1} parent=55 // pred_fallthru
          _
      $region56: #{tpu_custom_call.1} parent=5 // pred_fallthru
        _
      %p399 = scmp.le.s32.totalorder 1, %s21
      %p400 = scmp.lt.s32.totalorder %s21, 3
      %p401 = pnand %p399, %p400
      %p402 = pneg %p401
      // Predicated region
      $region65: #{tpu_custom_call.1} parent=5 // pred_check
        _
      $region66: #{tpu_custom_call.1} parent=5 // pred_check_branch
        %404 = sbr.rel (%p401) target = $region68
      $region67: #{tpu_custom_call.1} parent=5 // pred_region
        %s405 = ssub.s32 %s21, 1
        %p406 = scmp.lt.s32.totalorder %s30, 1
        %s407 = scalar_select %p406, %s30, 1
        %p408 = scmp.lt.s32.totalorder %s31, 0
        %s409 = scalar_select %p408, %s31, 0
        %s410 = smul.addr %s409, 2
        %s411 = smul.addr %s407, 2
        %s412 = sadd.s32 %s410, %s411
        %s413 = smul.addr %s412, 4
        %s414 = scalar_lea.vmem %s0, %s413
        %p415 = pneg %p61
        %p416 = pneg %p58
        %p417 = scmp.lt.s32.totalorder %s30, 1
        %s418 = scalar_select %p417, %s30, 1
        %p419 = scmp.lt.s32.totalorder %s31, 0
        %s420 = scalar_select %p419, %s31, 0
        %s421 = smul.addr %s420, 2
        %s422 = smul.addr %s418, 2
        %s423 = sadd.s32 %s421, %s422
        %s424 = scalar_lea.vmem %s1, %s423
        %p425 = pneg %p89
        %p426 = pneg %p86
        %p427 = pneg %p110
        %p428 = pneg %p107
        %p429 = pneg %p131
        %p430 = pneg %p128
        %p431 = pneg %p152
        %p432 = pneg %p149
        %p433 = pneg %p173
        %p434 = pneg %p170
        %p435 = pneg %p194
        %p436 = pneg %p191
        %p437 = pneg %p215
        %p438 = pneg %p212
        %p439 = pneg %p236
        %p440 = pneg %p233
        %p441 = pneg %p257
        %p442 = pneg %p254
        %p443 = pneg %p278
        %p444 = pneg %p275
        %p445 = pneg %p299
        %p446 = pneg %p296
        %p447 = pneg %p327
        %p448 = pneg %p324
        %s449 = sand.u32 %s314, 1
        %s450 = scalar_lea.sflag [#allocation3], %s449
        %s451 = sand.u32 %s314, 1
        %s452 = smul.addr %s451, 8
        %s453 = scalar_lea.vmem [#allocation2], %s452
        %p454 = scmp.lt.s32.totalorder %s30, 1
        %s455 = scalar_select %p454, %s30, 1
        %p456 = scmp.lt.s32.totalorder %s31, 0
        %s457 = scalar_select %p456, %s31, 0
        %s458 = smul.addr %s457, 2
        %s459 = smul.addr %s455, 2
        %s460 = sadd.s32 %s458, %s459
        %s461 = smul.addr %s460, 4
        %s462 = scalar_lea.vmem %s0, %s461
        %p463 = scmp.lt.s32.totalorder %s30, 1
        %s464 = scalar_select %p463, %s30, 1
        %p465 = scmp.lt.s32.totalorder %s31, 0
        %s466 = scalar_select %p465, %s31, 0
        %s467 = smul.addr %s466, 2
        %s468 = smul.addr %s464, 2
        %s469 = sadd.s32 %s467, %s468
        %s470 = scalar_lea.vmem %s1, %s469
        %v472 = vld [vmem:[%s462] sm:$0xff]
        %v473 = vld [vmem:[%s470] sm:$0x3]
        %v474 = vlaneseq
        %v475 = vand.u32 %v474, 127
        %v476 = vadd.s32 %v475, 128
        %s477 = smul.u32 %s31, 128
        %s478 = ssub.s32 %s477, 6
        %v479 = vstv %s478
        %v480 = vadd.s32 %v479, %v475
        %v481 = vadd.s32 %v479, %v476
        %vm482 = vcmp.ge.s32.totalorder %v480, 0
        %vm483 = vcmp.ge.s32.totalorder %v481, 0
        %vm484 = vcmp.lt.s32.totalorder %v480, 16
        %vm485 = vcmp.lt.s32.totalorder %v481, 16
        %vm486 = vmand %vm482, %vm484
        %vm487 = vmand %vm483, %vm485
        %vm488 = vcmp.ge.s32.totalorder %v475, 2
        %vm489 = vcmp.ge.s32.totalorder %v476, 2
        %vm490 = vcmp.lt.s32.totalorder %v475, 138
        %vm491 = vcmp.lt.s32.totalorder %v476, 138
        %v493 = vlaneseq
        %v494 = vshrl.u32 %v493, 7
        %v495 = vsub.s32 0, %v494
        %v496 = vrot.slane %v473, %v495
        %v497 = vlaneseq
        %v498 = vshrl.u32 %v497, 7
        %v499 = vsub.s32 1, %v498
        %v500 = vrot.slane %v473, %v499
        %v503 = vld [vmem:[%s2] sm:$0xf]
        %v504 = vld [vmem:[%s2 + $0x4] sm:$0xf]
        %v505 = vld [vmem:[%s2 + $0x8] sm:$0xf]
        %v506 = vld [vmem:[%s2 + $0xc] sm:$0xf]
        %v507 = vld [vmem:[%s3] sm:$0xff]
        %v508 = vld [vmem:[%s3 + $0x8] sm:$0xff]
        %v509 = vld [vmem:[%s3 + $0x10] sm:$0xff]
        %v510 = vld [vmem:[%s3 + $0x18] sm:$0xff]
        %512 = vset.pattern.permute.xlu0 0
        %513 = vperm.xlu0 %512, %v507
        %v514 = vpop.permute.xlu0 %513
        %517 = vset.pattern.permute.xlu0 0
        %518 = vperm.xlu0 %517, %v508
        %v519 = vpop.permute.xlu0 %518
        %522 = vset.pattern.permute.xlu0 0
        %523 = vperm.xlu0 %522, %v509
        %v524 = vpop.permute.xlu0 %523
        %527 = vset.pattern.permute.xlu0 0
        %528 = vperm.xlu0 %527, %v510
        %v529 = vpop.permute.xlu0 %528
        %v535 = vunpack.c.l.b16 %v503
        %v536 = vunpack.c.l.b16 %v504
        %v537 = vunpack.c.l.b16 %v505
        %v538 = vunpack.c.l.b16 %v506
        %v539 = vpack.c.b16 %v536, %v535
        %v540 = vpack.c.b16 %v538, %v537
        %v542 = vunpack.c.l.b16 %v472
        %v543 = vunpack.c.h.b16 %v472
        %v544 = vpack.c.b16 %v542, %v542
        %v545 = vpack.c.b16 %v543, %v543
        %vm546 = vcmask 64512
        %v548 = vsel %vm546, %v539, 0
        %v551 = vsel %vm546, %v540, 0
        %vm553 = vcmask 1043456
        %v555 = vsel %vm553, %v544, 0
        %v558 = vsel %vm553, %v545, 0
        %560 = vmatprep.subr.bf16.mxu0 %v558
        %561 = vmatpush1.bf16.msra.mxu0 %v555
        %562 = vmatprep.subr.bf16.mxu0 0
        %563 = vmatpush1.bf16.msra.mxu0 0
        %564 = vmatprep.subr.bf16.mxu0 0
        %565 = vmatpush1.bf16.msra.mxu0 0
        %566 = vmatprep.subr.bf16.mxu0 0
        %567 = vmatpush1.bf16.msra.mxu0 0
        %568 = vmatprep.subr.bf16.mxu0 0
        %569 = vmatpush1.bf16.msra.mxu0 0
        %570 = vmatprep.subr.bf16.mxu0 0
        %571 = vmatpush1.bf16.msra.mxu0 0
        %572 = vmatprep.subr.bf16.mxu0 0
        %573 = vmatpush1.bf16.msra.mxu0 0
        %574 = vmatprep.subr.bf16.mxu0 0
        %575 = vmatpush1.bf16.msra.mxu0 0
        %576 = vmatprep.subr.bf16.mxu0 0
        %577 = vmatpush1.bf16.msra.mxu0 0
        %578 = vmatprep.subr.bf16.mxu0 0
        %579 = vmatpush1.bf16.msra.mxu0 0
        %580 = vmatprep.subr.bf16.mxu0 0
        %581 = vmatpush1.bf16.msra.mxu0 0
        %582 = vmatprep.subr.bf16.mxu0 0
        %583 = vmatpush1.bf16.msra.mxu0 0
        %584 = vmatprep.subr.bf16.mxu0 0
        %585 = vmatpush1.bf16.msra.mxu0 0
        %586 = vmatprep.subr.bf16.mxu0 0
        %587 = vmatpush1.bf16.msra.mxu0 0
        %588 = vmatprep.subr.bf16.mxu0 0
        %589 = vmatpush1.bf16.msra.mxu0 0
        %590 = vmatprep.subr.bf16.mxu0 0
        %591 = vmatpush1.bf16.msra.mxu0 0
        %592 = vmatprep.mubr.bf16.mxu0 0
        %593 = vmatmul.mubr.bf16.gmra.mrb[0].mxu0 %v548
        %v594 = vpop.f32.mrb[0].mxu0
        %v595 = vadd.f32 %v514, %v594
        %v596 = vpop.f32.mrb[0].mxu0
        %v597 = vadd.f32 %v514, %v596
        %v598 = vpop.f32.mrb[0].mxu0
        %v599 = vadd.f32 %v519, %v598
        %v600 = vpop.f32.mrb[0].mxu0
        %v601 = vadd.f32 %v519, %v600
        %602 = vmatprep.mubr.bf16.mxu0 0
        %603 = vmatmul.mubr.bf16.gmra.mrb[0].mxu0 %v551
        %v604 = vpop.f32.mrb[0].mxu0
        %v605 = vadd.f32 %v524, %v604
        %v606 = vpop.f32.mrb[0].mxu0
        %v607 = vadd.f32 %v524, %v606
        %v608 = vpop.f32.mrb[0].mxu0
        %v609 = vadd.f32 %v529, %v608
        %v610 = vpop.f32.mrb[0].mxu0
        %v611 = vadd.f32 %v529, %v610
        %612 = vdwg.mxu0
        %v613 = vsel %vm486, 1, 0
        %v614 = vsel %vm487, 1, 0
        %vm615 = vcmp.eq.s32.totalorder %v613, 1
        %vm616 = vcmp.eq.s32.totalorder %v614, 1
        %v617 = vsel %vm615, %v595, 0.0
        %v618 = vsel %vm616, %v597, 0.0
        %v619 = vsel %vm615, %v599, 0.0
        %v620 = vsel %vm616, %v601, 0.0
        %v621 = vsel %vm615, %v605, 0.0
        %v622 = vsel %vm616, %v607, 0.0
        %v623 = vsel %vm615, %v609, 0.0
        %v624 = vsel %vm616, %v611, 0.0
        %vm625 = vcmask 1047648
        %626 = vrot.lane.b32.xlu0 %v617, 12
        %v627 = vpop.permute.xlu0 %626
        %v628 = vsel %vm625, %v627, %v618
        %629 = vrot.lane.b32.xlu0 %v619, 12
        %v630 = vpop.permute.xlu0 %629
        %v631 = vsel %vm625, %v630, %v620
        %632 = vrot.lane.b32.xlu0 %v621, 12
        %v633 = vpop.permute.xlu0 %632
        %v634 = vsel %vm625, %v633, %v622
        %635 = vrot.lane.b32.xlu0 %v623, 12
        %v636 = vpop.permute.xlu0 %635
        %v637 = vsel %vm625, %v636, %v624
        %638 = vrot.lane.b32.xlu0 %v628, 12
        %v639 = vpop.permute.xlu0 %638
        %640 = vrot.lane.b32.xlu0 %v631, 12
        %v641 = vpop.permute.xlu0 %640
        %642 = vrot.lane.b32.xlu0 %v634, 12
        %v643 = vpop.permute.xlu0 %642
        %644 = vrot.lane.b32.xlu0 %v637, 12
        %v645 = vpop.permute.xlu0 %644
        %v646 = vsel %vm625, %v639, %v627
        %v647 = vsel %vm625, %v641, %v630
        %v648 = vsel %vm625, %v643, %v633
        %v649 = vsel %vm625, %v645, %v636
        %v650 = vsel %vm488, 1, 0
        %v651 = vsel %vm489, 1, 0
        %vm652 = vcmp.eq.s32.totalorder %v650, 1
        %vm653 = vcmp.eq.s32.totalorder %v651, 1
        %662 = vrot.lane.b32.xlu0 %v628, 118
        %v663 = vpop.permute.xlu0 %662
        %664 = vrot.lane.b32.xlu0 %v646, 118
        %v665 = vpop.permute.xlu0 %664
        %666 = vrot.lane.b32.xlu0 %v631, 118
        %v667 = vpop.permute.xlu0 %666
        %668 = vrot.lane.b32.xlu0 %v647, 118
        %v669 = vpop.permute.xlu0 %668
        %670 = vrot.lane.b32.xlu0 %v634, 118
        %v671 = vpop.permute.xlu0 %670
        %672 = vrot.lane.b32.xlu0 %v648, 118
        %v673 = vpop.permute.xlu0 %672
        %674 = vrot.lane.b32.xlu0 %v637, 118
        %v675 = vpop.permute.xlu0 %674
        %676 = vrot.lane.b32.xlu0 %v649, 118
        %v677 = vpop.permute.xlu0 %676
        %vm678 = vcmask 965632
        %v679 = vsel %vm678, %v663, %v665
        %v680 = vsel %vm678, %v667, %v669
        %v681 = vsel %vm678, %v671, %v673
        %v682 = vsel %vm678, %v675, %v677
        %v691 = vsel %vm652, %v679, 0.0
        %v692 = vsel %vm653, %v665, 0.0
        %v693 = vsel %vm652, %v680, 0.0
        %v694 = vsel %vm653, %v669, 0.0
        %v695 = vsel %vm652, %v681, 0.0
        %v696 = vsel %vm653, %v673, 0.0
        %v697 = vsel %vm652, %v682, 0.0
        %v698 = vsel %vm653, %v677, 0.0
        %v699 = vsel %vm490, 1, 0
        %v700 = vsel %vm491, 1, 0
        %vm701 = vcmp.eq.s32.totalorder %v699, 1
        %vm702 = vcmp.eq.s32.totalorder %v700, 1
        %707 = vrot.lane.b32.xlu0 %v617, 126
        %v708 = vpop.permute.xlu0 %707
        %709 = vrot.lane.b32.xlu0 %v628, 126
        %v710 = vpop.permute.xlu0 %709
        %711 = vrot.lane.b32.xlu0 %v619, 126
        %v712 = vpop.permute.xlu0 %711
        %713 = vrot.lane.b32.xlu0 %v631, 126
        %v714 = vpop.permute.xlu0 %713
        %715 = vrot.lane.b32.xlu0 %v621, 126
        %v716 = vpop.permute.xlu0 %715
        %717 = vrot.lane.b32.xlu0 %v634, 126
        %v718 = vpop.permute.xlu0 %717
        %719 = vrot.lane.b32.xlu0 %v623, 126
        %v720 = vpop.permute.xlu0 %719
        %721 = vrot.lane.b32.xlu0 %v637, 126
        %v722 = vpop.permute.xlu0 %721
        %vm723 = vcmask 1031168
        %v724 = vsel %vm723, %v708, %v710
        %v725 = vsel %vm723, %v712, %v714
        %v726 = vsel %vm723, %v716, %v718
        %v727 = vsel %vm723, %v720, %v722
        %v736 = vsel %vm701, %v724, 0.0
        %v737 = vsel %vm702, %v710, 0.0
        %v738 = vsel %vm701, %v725, 0.0
        %v739 = vsel %vm702, %v714, 0.0
        %v740 = vsel %vm701, %v726, 0.0
        %v741 = vsel %vm702, %v718, 0.0
        %v742 = vsel %vm701, %v727, 0.0
        %v743 = vsel %vm702, %v722, 0.0
        %v744 = vld [vmem:[%s4] sm:$0xf]
        %v745 = vld [vmem:[%s4 + $0x4] sm:$0xf]
        %v746 = vld [vmem:[%s4 + $0x8] sm:$0xf]
        %v747 = vld [vmem:[%s4 + $0xc] sm:$0xf]
        %v748 = vpack.c.bf16 %v693, %v691
        %v749 = vpack.c.bf16 %v694, %v692
        %v750 = vpack.c.bf16 %v697, %v695
        %v751 = vpack.c.bf16 %v698, %v696
        %s752 = scalar_lea.vmem %s4, 16
        %v753 = vld [vmem:[%s752] sm:$0xf]
        %v754 = vld [vmem:[%s752 + $0x4] sm:$0xf]
        %v755 = vld [vmem:[%s752 + $0x8] sm:$0xf]
        %v756 = vld [vmem:[%s752 + $0xc] sm:$0xf]
        %v757 = vpack.c.bf16 %v619, %v617
        %v758 = vpack.c.bf16 %v620, %v618
        %v759 = vpack.c.bf16 %v623, %v621
        %v760 = vpack.c.bf16 %v624, %v622
        %v765 = vunpack.c.l.b16 %v753
        %v766 = vunpack.c.l.b16 %v754
        %v767 = vunpack.c.l.b16 %v755
        %v768 = vunpack.c.l.b16 %v756
        %v769 = vpack.c.b16 %v766, %v765
        %v770 = vpack.c.b16 %v768, %v767
        %vm771 = vcmask 261120
        %v773 = vsel %vm771, %v769, 0
        %v776 = vsel %vm771, %v770, 0
        %778 = vmatprep.subr.bf16.mxu0 %v758
        %779 = vmatpush1.bf16.msra.mxu0 %v757
        %780 = vmatprep.subr.bf16.mxu0 %v760
        %781 = vmatpush1.bf16.msra.mxu0 %v759
        %782 = vmatprep.subr.bf16.mxu0 0
        %783 = vmatpush1.bf16.msra.mxu0 0
        %784 = vmatprep.subr.bf16.mxu0 0
        %785 = vmatpush1.bf16.msra.mxu0 0
        %786 = vmatprep.subr.bf16.mxu0 0
        %787 = vmatpush1.bf16.msra.mxu0 0
        %788 = vmatprep.subr.bf16.mxu0 0
        %789 = vmatpush1.bf16.msra.mxu0 0
        %790 = vmatprep.subr.bf16.mxu0 0
        %791 = vmatpush1.bf16.msra.mxu0 0
        %792 = vmatprep.subr.bf16.mxu0 0
        %793 = vmatpush1.bf16.msra.mxu0 0
        %794 = vmatprep.subr.bf16.mxu0 0
        %795 = vmatpush1.bf16.msra.mxu0 0
        %796 = vmatprep.subr.bf16.mxu0 0
        %797 = vmatpush1.bf16.msra.mxu0 0
        %798 = vmatprep.subr.bf16.mxu0 0
        %799 = vmatpush1.bf16.msra.mxu0 0
        %800 = vmatprep.subr.bf16.mxu0 0
        %801 = vmatpush1.bf16.msra.mxu0 0
        %802 = vmatprep.subr.bf16.mxu0 0
        %803 = vmatpush1.bf16.msra.mxu0 0
        %804 = vmatprep.subr.bf16.mxu0 0
        %805 = vmatpush1.bf16.msra.mxu0 0
        %806 = vmatprep.subr.bf16.mxu0 0
        %807 = vmatpush1.bf16.msra.mxu0 0
        %808 = vmatprep.subr.bf16.mxu0 0
        %809 = vmatpush1.bf16.msra.mxu0 0
        %810 = vmatprep.mubr.bf16.mxu0 0
        %811 = vmatmul.mubr.bf16.gmra.mrb[0].mxu0 %v773
        %v812 = vpop.f32.mrb[0].mxu0
        %v813 = vadd.f32 0.0, %v812
        %v814 = vpop.f32.mrb[0].mxu0
        %v815 = vadd.f32 0.0, %v814
        %v816 = vpop.f32.mrb[0].mxu0
        %v817 = vadd.f32 0.0, %v816
        %v818 = vpop.f32.mrb[0].mxu0
        %v819 = vadd.f32 0.0, %v818
        %820 = vmatprep.mubr.bf16.mxu0 0
        %821 = vmatmul.mubr.bf16.gmra.mrb[0].mxu0 %v776
        %v822 = vpop.f32.mrb[0].mxu0
        %v823 = vadd.f32 0.0, %v822
        %v824 = vpop.f32.mrb[0].mxu0
        %v825 = vadd.f32 0.0, %v824
        %v826 = vpop.f32.mrb[0].mxu0
        %v827 = vadd.f32 0.0, %v826
        %v828 = vpop.f32.mrb[0].mxu0
        %v829 = vadd.f32 0.0, %v828
        %830 = vdwg.mxu0
        %v835 = vunpack.c.l.b16 %v744
        %v836 = vunpack.c.l.b16 %v745
        %v837 = vunpack.c.l.b16 %v746
        %v838 = vunpack.c.l.b16 %v747
        %v839 = vpack.c.b16 %v836, %v835
        %v840 = vpack.c.b16 %v838, %v837
        %v842 = vsel %vm771, %v839, 0
        %v845 = vsel %vm771, %v840, 0
        %847 = vmatprep.subr.bf16.mxu0 %v749
        %848 = vmatpush1.bf16.msra.mxu0 %v748
        %849 = vmatprep.subr.bf16.mxu0 %v751
        %850 = vmatpush1.bf16.msra.mxu0 %v750
        %851 = vmatprep.subr.bf16.mxu0 0
        %852 = vmatpush1.bf16.msra.mxu0 0
        %853 = vmatprep.subr.bf16.mxu0 0
        %854 = vmatpush1.bf16.msra.mxu0 0
        %855 = vmatprep.subr.bf16.mxu0 0
        %856 = vmatpush1.bf16.msra.mxu0 0
        %857 = vmatprep.subr.bf16.mxu0 0
        %858 = vmatpush1.bf16.msra.mxu0 0
        %859 = vmatprep.subr.bf16.mxu0 0
        %860 = vmatpush1.bf16.msra.mxu0 0
        %861 = vmatprep.subr.bf16.mxu0 0
        %862 = vmatpush1.bf16.msra.mxu0 0
        %863 = vmatprep.subr.bf16.mxu0 0
        %864 = vmatpush1.bf16.msra.mxu0 0
        %865 = vmatprep.subr.bf16.mxu0 0
        %866 = vmatpush1.bf16.msra.mxu0 0
        %867 = vmatprep.subr.bf16.mxu0 0
        %868 = vmatpush1.bf16.msra.mxu0 0
        %869 = vmatprep.subr.bf16.mxu0 0
        %870 = vmatpush1.bf16.msra.mxu0 0
        %871 = vmatprep.subr.bf16.mxu0 0
        %872 = vmatpush1.bf16.msra.mxu0 0
        %873 = vmatprep.subr.bf16.mxu0 0
        %874 = vmatpush1.bf16.msra.mxu0 0
        %875 = vmatprep.subr.bf16.mxu0 0
        %876 = vmatpush1.bf16.msra.mxu0 0
        %877 = vmatprep.subr.bf16.mxu0 0
        %878 = vmatpush1.bf16.msra.mxu0 0
        %879 = vmatprep.mubr.bf16.mxu0 0
        %880 = vmatmul.mubr.bf16.gmra.mrb[0].mxu0 %v842
        %v881 = vpop.f32.mrb[0].mxu0
        %v882 = vadd.f32 %v813, %v881
        %v883 = vpop.f32.mrb[0].mxu0
        %v884 = vadd.f32 %v815, %v883
        %v885 = vpop.f32.mrb[0].mxu0
        %v886 = vadd.f32 %v817, %v885
        %v887 = vpop.f32.mrb[0].mxu0
        %v888 = vadd.f32 %v819, %v887
        %889 = vmatprep.mubr.bf16.mxu0 0
        %890 = vmatmul.mubr.bf16.gmra.mrb[0].mxu0 %v845
        %v891 = vpop.f32.mrb[0].mxu0
        %v892 = vadd.f32 %v823, %v891
        %v893 = vpop.f32.mrb[0].mxu0
        %v894 = vadd.f32 %v825, %v893
        %v895 = vpop.f32.mrb[0].mxu0
        %v896 = vadd.f32 %v827, %v895
        %v897 = vpop.f32.mrb[0].mxu0
        %v898 = vadd.f32 %v829, %v897
        %899 = vdwg.mxu0
        %s900 = scalar_lea.vmem %s4, 32
        %v901 = vld [vmem:[%s900] sm:$0xf]
        %v902 = vld [vmem:[%s900 + $0x4] sm:$0xf]
        %v903 = vld [vmem:[%s900 + $0x8] sm:$0xf]
        %v904 = vld [vmem:[%s900 + $0xc] sm:$0xf]
        %v905 = vpack.c.bf16 %v738, %v736
        %v906 = vpack.c.bf16 %v739, %v737
        %v907 = vpack.c.bf16 %v742, %v740
        %v908 = vpack.c.bf16 %v743, %v741
        %v913 = vunpack.c.l.b16 %v901
        %v914 = vunpack.c.l.b16 %v902
        %v915 = vunpack.c.l.b16 %v903
        %v916 = vunpack.c.l.b16 %v904
        %v917 = vpack.c.b16 %v914, %v913
        %v918 = vpack.c.b16 %v916, %v915
        %v920 = vsel %vm771, %v917, 0
        %v923 = vsel %vm771, %v918, 0
        %925 = vmatprep.subr.bf16.mxu0 %v906
        %926 = vmatpush1.bf16.msra.mxu0 %v905
        %927 = vmatprep.subr.bf16.mxu0 %v908
        %928 = vmatpush1.bf16.msra.mxu0 %v907
        %929 = vmatprep.subr.bf16.mxu0 0
        %930 = vmatpush1.bf16.msra.mxu0 0
        %931 = vmatprep.subr.bf16.mxu0 0
        %932 = vmatpush1.bf16.msra.mxu0 0
        %933 = vmatprep.subr.bf16.mxu0 0
        %934 = vmatpush1.bf16.msra.mxu0 0
        %935 = vmatprep.subr.bf16.mxu0 0
        %936 = vmatpush1.bf16.msra.mxu0 0
        %937 = vmatprep.subr.bf16.mxu0 0
        %938 = vmatpush1.bf16.msra.mxu0 0
        %939 = vmatprep.subr.bf16.mxu0 0
        %940 = vmatpush1.bf16.msra.mxu0 0
        %941 = vmatprep.subr.bf16.mxu0 0
        %942 = vmatpush1.bf16.msra.mxu0 0
        %943 = vmatprep.subr.bf16.mxu0 0
        %944 = vmatpush1.bf16.msra.mxu0 0
        %945 = vmatprep.subr.bf16.mxu0 0
        %946 = vmatpush1.bf16.msra.mxu0 0
        %947 = vmatprep.subr.bf16.mxu0 0
        %948 = vmatpush1.bf16.msra.mxu0 0
        %949 = vmatprep.subr.bf16.mxu0 0
        %950 = vmatpush1.bf16.msra.mxu0 0
        %951 = vmatprep.subr.bf16.mxu0 0
        %952 = vmatpush1.bf16.msra.mxu0 0
        %953 = vmatprep.subr.bf16.mxu0 0
        %954 = vmatpush1.bf16.msra.mxu0 0
        %955 = vmatprep.subr.bf16.mxu0 0
        %956 = vmatpush1.bf16.msra.mxu0 0
        %957 = vmatprep.mubr.bf16.mxu0 0
        %958 = vmatmul.mubr.bf16.gmra.mrb[0].mxu0 %v920
        %v959 = vpop.f32.mrb[0].mxu0
        %v960 = vadd.f32 0.0, %v959
        %v961 = vpop.f32.mrb[0].mxu0
        %v962 = vadd.f32 0.0, %v961
        %v963 = vpop.f32.mrb[0].mxu0
        %v964 = vadd.f32 0.0, %v963
        %v965 = vpop.f32.mrb[0].mxu0
        %v966 = vadd.f32 0.0, %v965
        %967 = vmatprep.mubr.bf16.mxu0 0
        %968 = vmatmul.mubr.bf16.gmra.mrb[0].mxu0 %v923
        %v969 = vpop.f32.mrb[0].mxu0
        %v970 = vadd.f32 0.0, %v969
        %v971 = vpop.f32.mrb[0].mxu0
        %v972 = vadd.f32 0.0, %v971
        %v973 = vpop.f32.mrb[0].mxu0
        %v974 = vadd.f32 0.0, %v973
        %v975 = vpop.f32.mrb[0].mxu0
        %v976 = vadd.f32 0.0, %v975
        %977 = vdwg.mxu0
        %v978 = vadd.f32 %v882, %v960
        %v979 = vadd.f32 %v884, %v962
        %v980 = vadd.f32 %v886, %v964
        %v981 = vadd.f32 %v888, %v966
        %v982 = vadd.f32 %v892, %v970
        %v983 = vadd.f32 %v894, %v972
        %v984 = vadd.f32 %v896, %v974
        %v985 = vadd.f32 %v898, %v976
        %v986 = vld [vmem:[%s5] sm:$0xff]
        %v987 = vld [vmem:[%s5 + $0x8] sm:$0xff]
        %v988 = vld [vmem:[%s5 + $0x10] sm:$0xff]
        %v989 = vld [vmem:[%s5 + $0x18] sm:$0xff]
        %991 = vset.pattern.permute.xlu0 0
        %992 = vperm.xlu0 %991, %v986
        %v993 = vpop.permute.xlu0 %992
        %996 = vset.pattern.permute.xlu0 0
        %997 = vperm.xlu0 %996, %v987
        %v998 = vpop.permute.xlu0 %997
        %1001 = vset.pattern.permute.xlu0 0
        %1002 = vperm.xlu0 %1001, %v988
        %v1003 = vpop.permute.xlu0 %1002
        %1006 = vset.pattern.permute.xlu0 0
        %1007 = vperm.xlu0 %1006, %v989
        %v1008 = vpop.permute.xlu0 %1007
        %v1010 = vadd.f32 %v978, %v993
        %v1011 = vadd.f32 %v979, %v993
        %v1012 = vadd.f32 %v980, %v998
        %v1013 = vadd.f32 %v981, %v998
        %v1014 = vadd.f32 %v982, %v1003
        %v1015 = vadd.f32 %v983, %v1003
        %v1016 = vadd.f32 %v984, %v1008
        %v1017 = vadd.f32 %v985, %v1008
        %v1018 = vmax.f32 %v1010, 0.0
        %v1019 = vmax.f32 %v1011, 0.0
        %v1020 = vmax.f32 %v1012, 0.0
        %v1021 = vmax.f32 %v1013, 0.0
        %v1022 = vmax.f32 %v1014, 0.0
        %v1023 = vmax.f32 %v1015, 0.0
        %v1024 = vmax.f32 %v1016, 0.0
        %v1025 = vmax.f32 %v1017, 0.0
        %v1026 = vld [vmem:[%s6] sm:$0xf]
        %v1027 = vld [vmem:[%s6 + $0x4] sm:$0xf]
        %v1028 = vld [vmem:[%s6 + $0x8] sm:$0xf]
        %v1029 = vld [vmem:[%s6 + $0xc] sm:$0xf]
        %v1030 = vpack.c.bf16 %v1020, %v1018
        %v1031 = vpack.c.bf16 %v1021, %v1019
        %v1032 = vpack.c.bf16 %v1024, %v1022
        %v1033 = vpack.c.bf16 %v1025, %v1023
        %v1034 = vld [vmem:[%s7] sm:$0xff]
        %v1035 = vld [vmem:[%s7 + $0x8] sm:$0xff]
        %v1036 = vld [vmem:[%s7 + $0x10] sm:$0xff]
        %v1037 = vld [vmem:[%s7 + $0x18] sm:$0xff]
        %1039 = vset.pattern.permute.xlu0 0
        %1040 = vperm.xlu0 %1039, %v1034
        %v1041 = vpop.permute.xlu0 %1040
        %1044 = vset.pattern.permute.xlu0 0
        %1045 = vperm.xlu0 %1044, %v1035
        %v1046 = vpop.permute.xlu0 %1045
        %1049 = vset.pattern.permute.xlu0 0
        %1050 = vperm.xlu0 %1049, %v1036
        %v1051 = vpop.permute.xlu0 %1050
        %1054 = vset.pattern.permute.xlu0 0
        %1055 = vperm.xlu0 %1054, %v1037
        %v1056 = vpop.permute.xlu0 %1055
        %v1062 = vunpack.c.l.b16 %v1026
        %v1063 = vunpack.c.l.b16 %v1027
        %v1064 = vunpack.c.l.b16 %v1028
        %v1065 = vunpack.c.l.b16 %v1029
        %v1066 = vpack.c.b16 %v1063, %v1062
        %v1067 = vpack.c.b16 %v1065, %v1064
        %v1069 = vsel %vm771, %v1066, 0
        %v1072 = vsel %vm771, %v1067, 0
        %1074 = vmatprep.subr.bf16.mxu0 %v1031
        %1075 = vmatpush1.bf16.msra.mxu0 %v1030
        %1076 = vmatprep.subr.bf16.mxu0 %v1033
        %1077 = vmatpush1.bf16.msra.mxu0 %v1032
        %1078 = vmatprep.subr.bf16.mxu0 0
        %1079 = vmatpush1.bf16.msra.mxu0 0
        %1080 = vmatprep.subr.bf16.mxu0 0
        %1081 = vmatpush1.bf16.msra.mxu0 0
        %1082 = vmatprep.subr.bf16.mxu0 0
        %1083 = vmatpush1.bf16.msra.mxu0 0
        %1084 = vmatprep.subr.bf16.mxu0 0
        %1085 = vmatpush1.bf16.msra.mxu0 0
        %1086 = vmatprep.subr.bf16.mxu0 0
        %1087 = vmatpush1.bf16.msra.mxu0 0
        %1088 = vmatprep.subr.bf16.mxu0 0
        %1089 = vmatpush1.bf16.msra.mxu0 0
        %1090 = vmatprep.subr.bf16.mxu0 0
        %1091 = vmatpush1.bf16.msra.mxu0 0
        %1092 = vmatprep.subr.bf16.mxu0 0
        %1093 = vmatpush1.bf16.msra.mxu0 0
        %1094 = vmatprep.subr.bf16.mxu0 0
        %1095 = vmatpush1.bf16.msra.mxu0 0
        %1096 = vmatprep.subr.bf16.mxu0 0
        %1097 = vmatpush1.bf16.msra.mxu0 0
        %1098 = vmatprep.subr.bf16.mxu0 0
        %1099 = vmatpush1.bf16.msra.mxu0 0
        %1100 = vmatprep.subr.bf16.mxu0 0
        %1101 = vmatpush1.bf16.msra.mxu0 0
        %1102 = vmatprep.subr.bf16.mxu0 0
        %1103 = vmatpush1.bf16.msra.mxu0 0
        %1104 = vmatprep.subr.bf16.mxu0 0
        %1105 = vmatpush1.bf16.msra.mxu0 0
        %1106 = vmatprep.mubr.bf16.mxu0 0
        %1107 = vmatmul.mubr.bf16.gmra.mrb[0].mxu0 %v1069
        %v1108 = vpop.f32.mrb[0].mxu0
        %v1109 = vadd.f32 %v1041, %v1108
        %v1110 = vpop.f32.mrb[0].mxu0
        %v1111 = vadd.f32 %v1041, %v1110
        %v1112 = vpop.f32.mrb[0].mxu0
        %v1113 = vadd.f32 %v1046, %v1112
        %v1114 = vpop.f32.mrb[0].mxu0
        %v1115 = vadd.f32 %v1046, %v1114
        %1116 = vmatprep.mubr.bf16.mxu0 0
        %1117 = vmatmul.mubr.bf16.gmra.mrb[0].mxu0 %v1072
        %v1118 = vpop.f32.mrb[0].mxu0
        %v1119 = vadd.f32 %v1051, %v1118
        %v1120 = vpop.f32.mrb[0].mxu0
        %v1121 = vadd.f32 %v1051, %v1120
        %v1122 = vpop.f32.mrb[0].mxu0
        %v1123 = vadd.f32 %v1056, %v1122
        %v1124 = vpop.f32.mrb[0].mxu0
        %v1125 = vadd.f32 %v1056, %v1124
        %1126 = vdwg.mxu0
        %v1127 = vmul.f32 %v1109, 0.2
        %v1128 = vmul.f32 %v1111, 0.2
        %v1129 = vmul.f32 %v1113, 0.2
        %v1130 = vmul.f32 %v1115, 0.2
        %v1131 = vmul.f32 %v1119, 0.2
        %v1132 = vmul.f32 %v1121, 0.2
        %v1133 = vmul.f32 %v1123, 0.2
        %v1134 = vmul.f32 %v1125, 0.2
        %v1135 = vmax.f32 %v1109, %v1127
        %v1136 = vmax.f32 %v1111, %v1128
        %v1137 = vmax.f32 %v1113, %v1129
        %v1138 = vmax.f32 %v1115, %v1130
        %v1139 = vmax.f32 %v1119, %v1131
        %v1140 = vmax.f32 %v1121, %v1132
        %v1141 = vmax.f32 %v1123, %v1133
        %v1142 = vmax.f32 %v1125, %v1134
        %v1143 = vld [vmem:[%s8] sm:$0xff]
        %v1144 = vld [vmem:[%s8 + $0x8] sm:$0xff]
        %v1145 = vld [vmem:[%s8 + $0x10] sm:$0xff]
        %v1146 = vld [vmem:[%s8 + $0x18] sm:$0xff]
        %1148 = vset.pattern.permute.xlu0 0
        %1149 = vperm.xlu0 %1148, %v1143
        %v1150 = vpop.permute.xlu0 %1149
        %1153 = vset.pattern.permute.xlu0 0
        %1154 = vperm.xlu0 %1153, %v1144
        %v1155 = vpop.permute.xlu0 %1154
        %1158 = vset.pattern.permute.xlu0 0
        %1159 = vperm.xlu0 %1158, %v1145
        %v1160 = vpop.permute.xlu0 %1159
        %1163 = vset.pattern.permute.xlu0 0
        %1164 = vperm.xlu0 %1163, %v1146
        %v1165 = vpop.permute.xlu0 %1164
        %v1167 = vmul.f32 %v1135, %v1150
        %v1168 = vmul.f32 %v1136, %v1150
        %v1169 = vmul.f32 %v1137, %v1155
        %v1170 = vmul.f32 %v1138, %v1155
        %v1171 = vmul.f32 %v1139, %v1160
        %v1172 = vmul.f32 %v1140, %v1160
        %v1173 = vmul.f32 %v1141, %v1165
        %v1174 = vmul.f32 %v1142, %v1165
        %v1175 = vld [vmem:[%s9] sm:$0xff]
        %v1176 = vld [vmem:[%s9 + $0x8] sm:$0xff]
        %v1177 = vld [vmem:[%s9 + $0x10] sm:$0xff]
        %v1178 = vld [vmem:[%s9 + $0x18] sm:$0xff]
        %1180 = vset.pattern.permute.xlu0 0
        %1181 = vperm.xlu0 %1180, %v1175
        %v1182 = vpop.permute.xlu0 %1181
        %1185 = vset.pattern.permute.xlu0 0
        %1186 = vperm.xlu0 %1185, %v1176
        %v1187 = vpop.permute.xlu0 %1186
        %1190 = vset.pattern.permute.xlu0 0
        %1191 = vperm.xlu0 %1190, %v1177
        %v1192 = vpop.permute.xlu0 %1191
        %1195 = vset.pattern.permute.xlu0 0
        %1196 = vperm.xlu0 %1195, %v1178
        %v1197 = vpop.permute.xlu0 %1196
        %v1199 = vadd.f32 %v1167, %v1182
        %v1200 = vadd.f32 %v1168, %v1182
        %v1201 = vadd.f32 %v1169, %v1187
        %v1202 = vadd.f32 %v1170, %v1187
        %v1203 = vadd.f32 %v1171, %v1192
        %v1204 = vadd.f32 %v1172, %v1192
        %v1205 = vadd.f32 %v1173, %v1197
        %v1206 = vadd.f32 %v1174, %v1197
        %v1207 = vadd.f32 %v617, %v1199
        %v1208 = vadd.f32 %v618, %v1200
        %v1209 = vadd.f32 %v619, %v1201
        %v1210 = vadd.f32 %v620, %v1202
        %v1211 = vadd.f32 %v621, %v1203
        %v1212 = vadd.f32 %v622, %v1204
        %v1213 = vadd.f32 %v623, %v1205
        %v1214 = vadd.f32 %v624, %v1206
        %v1215 = vmul.f32 %v1207, %v496
        %v1216 = vmul.f32 %v1208, %v500
        %v1217 = vmul.f32 %v1209, %v496
        %v1218 = vmul.f32 %v1210, %v500
        %v1219 = vmul.f32 %v1211, %v496
        %v1220 = vmul.f32 %v1212, %v500
        %v1221 = vmul.f32 %v1213, %v496
        %v1222 = vmul.f32 %v1214, %v500
        %1223 = vrot.lane.b32.xlu0 %v1215, 12
        %v1224 = vpop.permute.xlu0 %1223
        %v1225 = vsel %vm625, %v1224, %v1216
        %1226 = vrot.lane.b32.xlu0 %v1217, 12
        %v1227 = vpop.permute.xlu0 %1226
        %v1228 = vsel %vm625, %v1227, %v1218
        %1229 = vrot.lane.b32.xlu0 %v1219, 12
        %v1230 = vpop.permute.xlu0 %1229
        %v1231 = vsel %vm625, %v1230, %v1220
        %1232 = vrot.lane.b32.xlu0 %v1221, 12
        %v1233 = vpop.permute.xlu0 %1232
        %v1234 = vsel %vm625, %v1233, %v1222
        %1235 = vrot.lane.b32.xlu0 %v1225, 12
        %v1236 = vpop.permute.xlu0 %1235
        %1237 = vrot.lane.b32.xlu0 %v1228, 12
        %v1238 = vpop.permute.xlu0 %1237
        %1239 = vrot.lane.b32.xlu0 %v1231, 12
        %v1240 = vpop.permute.xlu0 %1239
        %1241 = vrot.lane.b32.xlu0 %v1234, 12
        %v1242 = vpop.permute.xlu0 %1241
        %v1243 = vsel %vm625, %v1236, %v1224
        %v1244 = vsel %vm625, %v1238, %v1227
        %v1245 = vsel %vm625, %v1240, %v1230
        %v1246 = vsel %vm625, %v1242, %v1233
        %1255 = vrot.lane.b32.xlu0 %v1225, 118
        %v1256 = vpop.permute.xlu0 %1255
        %1257 = vrot.lane.b32.xlu0 %v1243, 118
        %v1258 = vpop.permute.xlu0 %1257
        %1259 = vrot.lane.b32.xlu0 %v1228, 118
        %v1260 = vpop.permute.xlu0 %1259
        %1261 = vrot.lane.b32.xlu0 %v1244, 118
        %v1262 = vpop.permute.xlu0 %1261
        %1263 = vrot.lane.b32.xlu0 %v1231, 118
        %v1264 = vpop.permute.xlu0 %1263
        %1265 = vrot.lane.b32.xlu0 %v1245, 118
        %v1266 = vpop.permute.xlu0 %1265
        %1267 = vrot.lane.b32.xlu0 %v1234, 118
        %v1268 = vpop.permute.xlu0 %1267
        %1269 = vrot.lane.b32.xlu0 %v1246, 118
        %v1270 = vpop.permute.xlu0 %1269
        %v1271 = vsel %vm678, %v1256, %v1258
        %v1272 = vsel %vm678, %v1260, %v1262
        %v1273 = vsel %vm678, %v1264, %v1266
        %v1274 = vsel %vm678, %v1268, %v1270
        %v1283 = vsel %vm652, %v1271, 0.0
        %v1284 = vsel %vm653, %v1258, 0.0
        %v1285 = vsel %vm652, %v1272, 0.0
        %v1286 = vsel %vm653, %v1262, 0.0
        %v1287 = vsel %vm652, %v1273, 0.0
        %v1288 = vsel %vm653, %v1266, 0.0
        %v1289 = vsel %vm652, %v1274, 0.0
        %v1290 = vsel %vm653, %v1270, 0.0
        %1295 = vrot.lane.b32.xlu0 %v1215, 126
        %v1296 = vpop.permute.xlu0 %1295
        %1297 = vrot.lane.b32.xlu0 %v1225, 126
        %v1298 = vpop.permute.xlu0 %1297
        %1299 = vrot.lane.b32.xlu0 %v1217, 126
        %v1300 = vpop.permute.xlu0 %1299
        %1301 = vrot.lane.b32.xlu0 %v1228, 126
        %v1302 = vpop.permute.xlu0 %1301
        %1303 = vrot.lane.b32.xlu0 %v1219, 126
        %v1304 = vpop.permute.xlu0 %1303
        %1305 = vrot.lane.b32.xlu0 %v1231, 126
        %v1306 = vpop.permute.xlu0 %1305
        %1307 = vrot.lane.b32.xlu0 %v1221, 126
        %v1308 = vpop.permute.xlu0 %1307
        %1309 = vrot.lane.b32.xlu0 %v1234, 126
        %v1310 = vpop.permute.xlu0 %1309
        %v1311 = vsel %vm723, %v1296, %v1298
        %v1312 = vsel %vm723, %v1300, %v1302
        %v1313 = vsel %vm723, %v1304, %v1306
        %v1314 = vsel %vm723, %v1308, %v1310
        %v1323 = vsel %vm701, %v1311, 0.0
        %v1324 = vsel %vm702, %v1298, 0.0
        %v1325 = vsel %vm701, %v1312, 0.0
        %v1326 = vsel %vm702, %v1302, 0.0
        %v1327 = vsel %vm701, %v1313, 0.0
        %v1328 = vsel %vm702, %v1306, 0.0
        %v1329 = vsel %vm701, %v1314, 0.0
        %v1330 = vsel %vm702, %v1310, 0.0
        %s1331 = scalar_lea.vmem %s4, 48
        %v1332 = vld [vmem:[%s1331] sm:$0xf]
        %v1333 = vld [vmem:[%s1331 + $0x4] sm:$0xf]
        %v1334 = vld [vmem:[%s1331 + $0x8] sm:$0xf]
        %v1335 = vld [vmem:[%s1331 + $0xc] sm:$0xf]
        %v1336 = vpack.c.bf16 %v1285, %v1283
        %v1337 = vpack.c.bf16 %v1286, %v1284
        %v1338 = vpack.c.bf16 %v1289, %v1287
        %v1339 = vpack.c.bf16 %v1290, %v1288
        %s1340 = scalar_lea.vmem %s4, 64
        %v1341 = vld [vmem:[%s1340] sm:$0xf]
        %v1342 = vld [vmem:[%s1340 + $0x4] sm:$0xf]
        %v1343 = vld [vmem:[%s1340 + $0x8] sm:$0xf]
        %v1344 = vld [vmem:[%s1340 + $0xc] sm:$0xf]
        %v1345 = vpack.c.bf16 %v1217, %v1215
        %v1346 = vpack.c.bf16 %v1218, %v1216
        %v1347 = vpack.c.bf16 %v1221, %v1219
        %v1348 = vpack.c.bf16 %v1222, %v1220
        %v1353 = vunpack.c.l.b16 %v1341
        %v1354 = vunpack.c.l.b16 %v1342
        %v1355 = vunpack.c.l.b16 %v1343
        %v1356 = vunpack.c.l.b16 %v1344
        %v1357 = vpack.c.b16 %v1354, %v1353
        %v1358 = vpack.c.b16 %v1356, %v1355
        %v1360 = vsel %vm771, %v1357, 0
        %v1363 = vsel %vm771, %v1358, 0
        %1365 = vmatprep.subr.bf16.mxu0 %v1346
        %1366 = vmatpush1.bf16.msra.mxu0 %v1345
        %1367 = vmatprep.subr.bf16.mxu0 %v1348
        %1368 = vmatpush1.bf16.msra.mxu0 %v1347
        %1369 = vmatprep.subr.bf16.mxu0 0
        %1370 = vmatpush1.bf16.msra.mxu0 0
        %1371 = vmatprep.subr.bf16.mxu0 0
        %1372 = vmatpush1.bf16.msra.mxu0 0
        %1373 = vmatprep.subr.bf16.mxu0 0
        %1374 = vmatpush1.bf16.msra.mxu0 0
        %1375 = vmatprep.subr.bf16.mxu0 0
        %1376 = vmatpush1.bf16.msra.mxu0 0
        %1377 = vmatprep.subr.bf16.mxu0 0
        %1378 = vmatpush1.bf16.msra.mxu0 0
        %1379 = vmatprep.subr.bf16.mxu0 0
        %1380 = vmatpush1.bf16.msra.mxu0 0
        %1381 = vmatprep.subr.bf16.mxu0 0
        %1382 = vmatpush1.bf16.msra.mxu0 0
        %1383 = vmatprep.subr.bf16.mxu0 0
        %1384 = vmatpush1.bf16.msra.mxu0 0
        %1385 = vmatprep.subr.bf16.mxu0 0
        %1386 = vmatpush1.bf16.msra.mxu0 0
        %1387 = vmatprep.subr.bf16.mxu0 0
        %1388 = vmatpush1.bf16.msra.mxu0 0
        %1389 = vmatprep.subr.bf16.mxu0 0
        %1390 = vmatpush1.bf16.msra.mxu0 0
        %1391 = vmatprep.subr.bf16.mxu0 0
        %1392 = vmatpush1.bf16.msra.mxu0 0
        %1393 = vmatprep.subr.bf16.mxu0 0
        %1394 = vmatpush1.bf16.msra.mxu0 0
        %1395 = vmatprep.subr.bf16.mxu0 0
        %1396 = vmatpush1.bf16.msra.mxu0 0
        %1397 = vmatprep.mubr.bf16.mxu0 0
        %1398 = vmatmul.mubr.bf16.gmra.mrb[0].mxu0 %v1360
        %v1399 = vpop.f32.mrb[0].mxu0
        %v1400 = vadd.f32 0.0, %v1399
        %v1401 = vpop.f32.mrb[0].mxu0
        %v1402 = vadd.f32 0.0, %v1401
        %v1403 = vpop.f32.mrb[0].mxu0
        %v1404 = vadd.f32 0.0, %v1403
        %v1405 = vpop.f32.mrb[0].mxu0
        %v1406 = vadd.f32 0.0, %v1405
        %1407 = vmatprep.mubr.bf16.mxu0 0
        %1408 = vmatmul.mubr.bf16.gmra.mrb[0].mxu0 %v1363
        %v1409 = vpop.f32.mrb[0].mxu0
        %v1410 = vadd.f32 0.0, %v1409
        %v1411 = vpop.f32.mrb[0].mxu0
        %v1412 = vadd.f32 0.0, %v1411
        %v1413 = vpop.f32.mrb[0].mxu0
        %v1414 = vadd.f32 0.0, %v1413
        %v1415 = vpop.f32.mrb[0].mxu0
        %v1416 = vadd.f32 0.0, %v1415
        %1417 = vdwg.mxu0
        %v1422 = vunpack.c.l.b16 %v1332
        %v1423 = vunpack.c.l.b16 %v1333
        %v1424 = vunpack.c.l.b16 %v1334
        %v1425 = vunpack.c.l.b16 %v1335
        %v1426 = vpack.c.b16 %v1423, %v1422
        %v1427 = vpack.c.b16 %v1425, %v1424
        %v1429 = vsel %vm771, %v1426, 0
        %v1432 = vsel %vm771, %v1427, 0
        %1434 = vmatprep.subr.bf16.mxu0 %v1337
        %1435 = vmatpush1.bf16.msra.mxu0 %v1336
        %1436 = vmatprep.subr.bf16.mxu0 %v1339
        %1437 = vmatpush1.bf16.msra.mxu0 %v1338
        %1438 = vmatprep.subr.bf16.mxu0 0
        %1439 = vmatpush1.bf16.msra.mxu0 0
        %1440 = vmatprep.subr.bf16.mxu0 0
        %1441 = vmatpush1.bf16.msra.mxu0 0
        %1442 = vmatprep.subr.bf16.mxu0 0
        %1443 = vmatpush1.bf16.msra.mxu0 0
        %1444 = vmatprep.subr.bf16.mxu0 0
        %1445 = vmatpush1.bf16.msra.mxu0 0
        %1446 = vmatprep.subr.bf16.mxu0 0
        %1447 = vmatpush1.bf16.msra.mxu0 0
        %1448 = vmatprep.subr.bf16.mxu0 0
        %1449 = vmatpush1.bf16.msra.mxu0 0
        %1450 = vmatprep.subr.bf16.mxu0 0
        %1451 = vmatpush1.bf16.msra.mxu0 0
        %1452 = vmatprep.subr.bf16.mxu0 0
        %1453 = vmatpush1.bf16.msra.mxu0 0
        %1454 = vmatprep.subr.bf16.mxu0 0
        %1455 = vmatpush1.bf16.msra.mxu0 0
        %1456 = vmatprep.subr.bf16.mxu0 0
        %1457 = vmatpush1.bf16.msra.mxu0 0
        %1458 = vmatprep.subr.bf16.mxu0 0
        %1459 = vmatpush1.bf16.msra.mxu0 0
        %1460 = vmatprep.subr.bf16.mxu0 0
        %1461 = vmatpush1.bf16.msra.mxu0 0
        %1462 = vmatprep.subr.bf16.mxu0 0
        %1463 = vmatpush1.bf16.msra.mxu0 0
        %1464 = vmatprep.subr.bf16.mxu0 0
        %1465 = vmatpush1.bf16.msra.mxu0 0
        %1466 = vmatprep.mubr.bf16.mxu0 0
        %1467 = vmatmul.mubr.bf16.gmra.mrb[0].mxu0 %v1429
        %v1468 = vpop.f32.mrb[0].mxu0
        %v1469 = vadd.f32 %v1400, %v1468
        %v1470 = vpop.f32.mrb[0].mxu0
        %v1471 = vadd.f32 %v1402, %v1470
        %v1472 = vpop.f32.mrb[0].mxu0
        %v1473 = vadd.f32 %v1404, %v1472
        %v1474 = vpop.f32.mrb[0].mxu0
        %v1475 = vadd.f32 %v1406, %v1474
        %1476 = vmatprep.mubr.bf16.mxu0 0
        %1477 = vmatmul.mubr.bf16.gmra.mrb[0].mxu0 %v1432
        %v1478 = vpop.f32.mrb[0].mxu0
        %v1479 = vadd.f32 %v1410, %v1478
        %v1480 = vpop.f32.mrb[0].mxu0
        %v1481 = vadd.f32 %v1412, %v1480
        %v1482 = vpop.f32.mrb[0].mxu0
        %v1483 = vadd.f32 %v1414, %v1482
        %v1484 = vpop.f32.mrb[0].mxu0
        %v1485 = vadd.f32 %v1416, %v1484
        %1486 = vdwg.mxu0
        %s1487 = scalar_lea.vmem %s4, 80
        %v1488 = vld [vmem:[%s1487] sm:$0xf]
        %v1489 = vld [vmem:[%s1487 + $0x4] sm:$0xf]
        %v1490 = vld [vmem:[%s1487 + $0x8] sm:$0xf]
        %v1491 = vld [vmem:[%s1487 + $0xc] sm:$0xf]
        %v1492 = vpack.c.bf16 %v1325, %v1323
        %v1493 = vpack.c.bf16 %v1326, %v1324
        %v1494 = vpack.c.bf16 %v1329, %v1327
        %v1495 = vpack.c.bf16 %v1330, %v1328
        %v1500 = vunpack.c.l.b16 %v1488
        %v1501 = vunpack.c.l.b16 %v1489
        %v1502 = vunpack.c.l.b16 %v1490
        %v1503 = vunpack.c.l.b16 %v1491
        %v1504 = vpack.c.b16 %v1501, %v1500
        %v1505 = vpack.c.b16 %v1503, %v1502
        %v1507 = vsel %vm771, %v1504, 0
        %v1510 = vsel %vm771, %v1505, 0
        %1512 = vmatprep.subr.bf16.mxu0 %v1493
        %1513 = vmatpush1.bf16.msra.mxu0 %v1492
        %1514 = vmatprep.subr.bf16.mxu0 %v1495
        %1515 = vmatpush1.bf16.msra.mxu0 %v1494
        %1516 = vmatprep.subr.bf16.mxu0 0
        %1517 = vmatpush1.bf16.msra.mxu0 0
        %1518 = vmatprep.subr.bf16.mxu0 0
        %1519 = vmatpush1.bf16.msra.mxu0 0
        %1520 = vmatprep.subr.bf16.mxu0 0
        %1521 = vmatpush1.bf16.msra.mxu0 0
        %1522 = vmatprep.subr.bf16.mxu0 0
        %1523 = vmatpush1.bf16.msra.mxu0 0
        %1524 = vmatprep.subr.bf16.mxu0 0
        %1525 = vmatpush1.bf16.msra.mxu0 0
        %1526 = vmatprep.subr.bf16.mxu0 0
        %1527 = vmatpush1.bf16.msra.mxu0 0
        %1528 = vmatprep.subr.bf16.mxu0 0
        %1529 = vmatpush1.bf16.msra.mxu0 0
        %1530 = vmatprep.subr.bf16.mxu0 0
        %1531 = vmatpush1.bf16.msra.mxu0 0
        %1532 = vmatprep.subr.bf16.mxu0 0
        %1533 = vmatpush1.bf16.msra.mxu0 0
        %1534 = vmatprep.subr.bf16.mxu0 0
        %1535 = vmatpush1.bf16.msra.mxu0 0
        %1536 = vmatprep.subr.bf16.mxu0 0
        %1537 = vmatpush1.bf16.msra.mxu0 0
        %1538 = vmatprep.subr.bf16.mxu0 0
        %1539 = vmatpush1.bf16.msra.mxu0 0
        %1540 = vmatprep.subr.bf16.mxu0 0
        %1541 = vmatpush1.bf16.msra.mxu0 0
        %1542 = vmatprep.subr.bf16.mxu0 0
        %1543 = vmatpush1.bf16.msra.mxu0 0
        %1544 = vmatprep.mubr.bf16.mxu0 0
        %1545 = vmatmul.mubr.bf16.gmra.mrb[0].mxu0 %v1507
        %v1546 = vpop.f32.mrb[0].mxu0
        %v1547 = vadd.f32 0.0, %v1546
        %v1548 = vpop.f32.mrb[0].mxu0
        %v1549 = vadd.f32 0.0, %v1548
        %v1550 = vpop.f32.mrb[0].mxu0
        %v1551 = vadd.f32 0.0, %v1550
        %v1552 = vpop.f32.mrb[0].mxu0
        %v1553 = vadd.f32 0.0, %v1552
        %1554 = vmatprep.mubr.bf16.mxu0 0
        %1555 = vmatmul.mubr.bf16.gmra.mrb[0].mxu0 %v1510
        %v1556 = vpop.f32.mrb[0].mxu0
        %v1557 = vadd.f32 0.0, %v1556
        %v1558 = vpop.f32.mrb[0].mxu0
        %v1559 = vadd.f32 0.0, %v1558
        %v1560 = vpop.f32.mrb[0].mxu0
        %v1561 = vadd.f32 0.0, %v1560
        %v1562 = vpop.f32.mrb[0].mxu0
        %v1563 = vadd.f32 0.0, %v1562
        %1564 = vdwg.mxu0
        %v1565 = vadd.f32 %v1469, %v1547
        %v1566 = vadd.f32 %v1471, %v1549
        %v1567 = vadd.f32 %v1473, %v1551
        %v1568 = vadd.f32 %v1475, %v1553
        %v1569 = vadd.f32 %v1479, %v1557
        %v1570 = vadd.f32 %v1481, %v1559
        %v1571 = vadd.f32 %v1483, %v1561
        %v1572 = vadd.f32 %v1485, %v1563
        %s1573 = scalar_lea.vmem %s5, 32
        %v1574 = vld [vmem:[%s1573] sm:$0xff]
        %v1575 = vld [vmem:[%s1573 + $0x8] sm:$0xff]
        %v1576 = vld [vmem:[%s1573 + $0x10] sm:$0xff]
        %v1577 = vld [vmem:[%s1573 + $0x18] sm:$0xff]
        %1579 = vset.pattern.permute.xlu0 0
        %1580 = vperm.xlu0 %1579, %v1574
        %v1581 = vpop.permute.xlu0 %1580
        %1584 = vset.pattern.permute.xlu0 0
        %1585 = vperm.xlu0 %1584, %v1575
        %v1586 = vpop.permute.xlu0 %1585
        %1589 = vset.pattern.permute.xlu0 0
        %1590 = vperm.xlu0 %1589, %v1576
        %v1591 = vpop.permute.xlu0 %1590
        %1594 = vset.pattern.permute.xlu0 0
        %1595 = vperm.xlu0 %1594, %v1577
        %v1596 = vpop.permute.xlu0 %1595
        %v1598 = vadd.f32 %v1565, %v1581
        %v1599 = vadd.f32 %v1566, %v1581
        %v1600 = vadd.f32 %v1567, %v1586
        %v1601 = vadd.f32 %v1568, %v1586
        %v1602 = vadd.f32 %v1569, %v1591
        %v1603 = vadd.f32 %v1570, %v1591
        %v1604 = vadd.f32 %v1571, %v1596
        %v1605 = vadd.f32 %v1572, %v1596
        %v1606 = vmax.f32 %v1598, 0.0
        %v1607 = vmax.f32 %v1599, 0.0
        %v1608 = vmax.f32 %v1600, 0.0
        %v1609 = vmax.f32 %v1601, 0.0
        %v1610 = vmax.f32 %v1602, 0.0
        %v1611 = vmax.f32 %v1603, 0.0
        %v1612 = vmax.f32 %v1604, 0.0
        %v1613 = vmax.f32 %v1605, 0.0
        %s1614 = scalar_lea.vmem %s6, 16
        %v1615 = vld [vmem:[%s1614] sm:$0xf]
        %v1616 = vld [vmem:[%s1614 + $0x4] sm:$0xf]
        %v1617 = vld [vmem:[%s1614 + $0x8] sm:$0xf]
        %v1618 = vld [vmem:[%s1614 + $0xc] sm:$0xf]
        %v1619 = vpack.c.bf16 %v1608, %v1606
        %v1620 = vpack.c.bf16 %v1609, %v1607
        %v1621 = vpack.c.bf16 %v1612, %v1610
        %v1622 = vpack.c.bf16 %v1613, %v1611
        %s1623 = scalar_lea.vmem %s7, 32
        %v1624 = vld [vmem:[%s1623] sm:$0xff]
        %v1625 = vld [vmem:[%s1623 + $0x8] sm:$0xff]
        %v1626 = vld [vmem:[%s1623 + $0x10] sm:$0xff]
        %v1627 = vld [vmem:[%s1623 + $0x18] sm:$0xff]
        %1629 = vset.pattern.permute.xlu0 0
        %1630 = vperm.xlu0 %1629, %v1624
        %v1631 = vpop.permute.xlu0 %1630
        %1634 = vset.pattern.permute.xlu0 0
        %1635 = vperm.xlu0 %1634, %v1625
        %v1636 = vpop.permute.xlu0 %1635
        %1639 = vset.pattern.permute.xlu0 0
        %1640 = vperm.xlu0 %1639, %v1626
        %v1641 = vpop.permute.xlu0 %1640
        %1644 = vset.pattern.permute.xlu0 0
        %1645 = vperm.xlu0 %1644, %v1627
        %v1646 = vpop.permute.xlu0 %1645
        %v1652 = vunpack.c.l.b16 %v1615
        %v1653 = vunpack.c.l.b16 %v1616
        %v1654 = vunpack.c.l.b16 %v1617
        %v1655 = vunpack.c.l.b16 %v1618
        %v1656 = vpack.c.b16 %v1653, %v1652
        %v1657 = vpack.c.b16 %v1655, %v1654
        %v1659 = vsel %vm771, %v1656, 0
        %v1662 = vsel %vm771, %v1657, 0
        %1664 = vmatprep.subr.bf16.mxu0 %v1620
        %1665 = vmatpush1.bf16.msra.mxu0 %v1619
        %1666 = vmatprep.subr.bf16.mxu0 %v1622
        %1667 = vmatpush1.bf16.msra.mxu0 %v1621
        %1668 = vmatprep.subr.bf16.mxu0 0
        %1669 = vmatpush1.bf16.msra.mxu0 0
        %1670 = vmatprep.subr.bf16.mxu0 0
        %1671 = vmatpush1.bf16.msra.mxu0 0
        %1672 = vmatprep.subr.bf16.mxu0 0
        %1673 = vmatpush1.bf16.msra.mxu0 0
        %1674 = vmatprep.subr.bf16.mxu0 0
        %1675 = vmatpush1.bf16.msra.mxu0 0
        %1676 = vmatprep.subr.bf16.mxu0 0
        %1677 = vmatpush1.bf16.msra.mxu0 0
        %1678 = vmatprep.subr.bf16.mxu0 0
        %1679 = vmatpush1.bf16.msra.mxu0 0
        %1680 = vmatprep.subr.bf16.mxu0 0
        %1681 = vmatpush1.bf16.msra.mxu0 0
        %1682 = vmatprep.subr.bf16.mxu0 0
        %1683 = vmatpush1.bf16.msra.mxu0 0
        %1684 = vmatprep.subr.bf16.mxu0 0
        %1685 = vmatpush1.bf16.msra.mxu0 0
        %1686 = vmatprep.subr.bf16.mxu0 0
        %1687 = vmatpush1.bf16.msra.mxu0 0
        %1688 = vmatprep.subr.bf16.mxu0 0
        %1689 = vmatpush1.bf16.msra.mxu0 0
        %1690 = vmatprep.subr.bf16.mxu0 0
        %1691 = vmatpush1.bf16.msra.mxu0 0
        %1692 = vmatprep.subr.bf16.mxu0 0
        %1693 = vmatpush1.bf16.msra.mxu0 0
        %1694 = vmatprep.subr.bf16.mxu0 0
        %1695 = vmatpush1.bf16.msra.mxu0 0
        %1696 = vmatprep.mubr.bf16.mxu0 0
        %1697 = vmatmul.mubr.bf16.gmra.mrb[0].mxu0 %v1659
        %v1698 = vpop.f32.mrb[0].mxu0
        %v1699 = vadd.f32 %v1631, %v1698
        %v1700 = vpop.f32.mrb[0].mxu0
        %v1701 = vadd.f32 %v1631, %v1700
        %v1702 = vpop.f32.mrb[0].mxu0
        %v1703 = vadd.f32 %v1636, %v1702
        %v1704 = vpop.f32.mrb[0].mxu0
        %v1705 = vadd.f32 %v1636, %v1704
        %1706 = vmatprep.mubr.bf16.mxu0 0
        %1707 = vmatmul.mubr.bf16.gmra.mrb[0].mxu0 %v1662
        %v1708 = vpop.f32.mrb[0].mxu0
        %v1709 = vadd.f32 %v1641, %v1708
        %v1710 = vpop.f32.mrb[0].mxu0
        %v1711 = vadd.f32 %v1641, %v1710
        %v1712 = vpop.f32.mrb[0].mxu0
        %v1713 = vadd.f32 %v1646, %v1712
        %v1714 = vpop.f32.mrb[0].mxu0
        %v1715 = vadd.f32 %v1646, %v1714
        %1716 = vdwg.mxu0
        %v1717 = vmul.f32 %v1699, 0.2
        %v1718 = vmul.f32 %v1701, 0.2
        %v1719 = vmul.f32 %v1703, 0.2
        %v1720 = vmul.f32 %v1705, 0.2
        %v1721 = vmul.f32 %v1709, 0.2
        %v1722 = vmul.f32 %v1711, 0.2
        %v1723 = vmul.f32 %v1713, 0.2
        %v1724 = vmul.f32 %v1715, 0.2
        %v1725 = vmax.f32 %v1699, %v1717
        %v1726 = vmax.f32 %v1701, %v1718
        %v1727 = vmax.f32 %v1703, %v1719
        %v1728 = vmax.f32 %v1705, %v1720
        %v1729 = vmax.f32 %v1709, %v1721
        %v1730 = vmax.f32 %v1711, %v1722
        %v1731 = vmax.f32 %v1713, %v1723
        %v1732 = vmax.f32 %v1715, %v1724
        %s1733 = scalar_lea.vmem %s8, 32
        %v1734 = vld [vmem:[%s1733] sm:$0xff]
        %v1735 = vld [vmem:[%s1733 + $0x8] sm:$0xff]
        %v1736 = vld [vmem:[%s1733 + $0x10] sm:$0xff]
        %v1737 = vld [vmem:[%s1733 + $0x18] sm:$0xff]
        %1739 = vset.pattern.permute.xlu0 0
        %1740 = vperm.xlu0 %1739, %v1734
        %v1741 = vpop.permute.xlu0 %1740
        %1744 = vset.pattern.permute.xlu0 0
        %1745 = vperm.xlu0 %1744, %v1735
        %v1746 = vpop.permute.xlu0 %1745
        %1749 = vset.pattern.permute.xlu0 0
        %1750 = vperm.xlu0 %1749, %v1736
        %v1751 = vpop.permute.xlu0 %1750
        %1754 = vset.pattern.permute.xlu0 0
        %1755 = vperm.xlu0 %1754, %v1737
        %v1756 = vpop.permute.xlu0 %1755
        %v1758 = vmul.f32 %v1725, %v1741
        %v1759 = vmul.f32 %v1726, %v1741
        %v1760 = vmul.f32 %v1727, %v1746
        %v1761 = vmul.f32 %v1728, %v1746
        %v1762 = vmul.f32 %v1729, %v1751
        %v1763 = vmul.f32 %v1730, %v1751
        %v1764 = vmul.f32 %v1731, %v1756
        %v1765 = vmul.f32 %v1732, %v1756
        %s1766 = scalar_lea.vmem %s9, 32
        %v1767 = vld [vmem:[%s1766] sm:$0xff]
        %v1768 = vld [vmem:[%s1766 + $0x8] sm:$0xff]
        %v1769 = vld [vmem:[%s1766 + $0x10] sm:$0xff]
        %v1770 = vld [vmem:[%s1766 + $0x18] sm:$0xff]
        %1772 = vset.pattern.permute.xlu0 0
        %1773 = vperm.xlu0 %1772, %v1767
        %v1774 = vpop.permute.xlu0 %1773
        %1777 = vset.pattern.permute.xlu0 0
        %1778 = vperm.xlu0 %1777, %v1768
        %v1779 = vpop.permute.xlu0 %1778
        %1782 = vset.pattern.permute.xlu0 0
        %1783 = vperm.xlu0 %1782, %v1769
        %v1784 = vpop.permute.xlu0 %1783
        %1787 = vset.pattern.permute.xlu0 0
        %1788 = vperm.xlu0 %1787, %v1770
        %v1789 = vpop.permute.xlu0 %1788
        %v1791 = vadd.f32 %v1758, %v1774
        %v1792 = vadd.f32 %v1759, %v1774
        %v1793 = vadd.f32 %v1760, %v1779
        %v1794 = vadd.f32 %v1761, %v1779
        %v1795 = vadd.f32 %v1762, %v1784
        %v1796 = vadd.f32 %v1763, %v1784
        %v1797 = vadd.f32 %v1764, %v1789
        %v1798 = vadd.f32 %v1765, %v1789
        %v1799 = vadd.f32 %v1215, %v1791
        %v1800 = vadd.f32 %v1216, %v1792
        %v1801 = vadd.f32 %v1217, %v1793
        %v1802 = vadd.f32 %v1218, %v1794
        %v1803 = vadd.f32 %v1219, %v1795
        %v1804 = vadd.f32 %v1220, %v1796
        %v1805 = vadd.f32 %v1221, %v1797
        %v1806 = vadd.f32 %v1222, %v1798
        %v1807 = vmul.f32 %v1799, %v496
        %v1808 = vmul.f32 %v1800, %v500
        %v1809 = vmul.f32 %v1801, %v496
        %v1810 = vmul.f32 %v1802, %v500
        %v1811 = vmul.f32 %v1803, %v496
        %v1812 = vmul.f32 %v1804, %v500
        %v1813 = vmul.f32 %v1805, %v496
        %v1814 = vmul.f32 %v1806, %v500
        %1815 = vrot.lane.b32.xlu0 %v1807, 12
        %v1816 = vpop.permute.xlu0 %1815
        %v1817 = vsel %vm625, %v1816, %v1808
        %1818 = vrot.lane.b32.xlu0 %v1809, 12
        %v1819 = vpop.permute.xlu0 %1818
        %v1820 = vsel %vm625, %v1819, %v1810
        %1821 = vrot.lane.b32.xlu0 %v1811, 12
        %v1822 = vpop.permute.xlu0 %1821
        %v1823 = vsel %vm625, %v1822, %v1812
        %1824 = vrot.lane.b32.xlu0 %v1813, 12
        %v1825 = vpop.permute.xlu0 %1824
        %v1826 = vsel %vm625, %v1825, %v1814
        %1827 = vrot.lane.b32.xlu0 %v1817, 12
        %v1828 = vpop.permute.xlu0 %1827
        %1829 = vrot.lane.b32.xlu0 %v1820, 12
        %v1830 = vpop.permute.xlu0 %1829
        %1831 = vrot.lane.b32.xlu0 %v1823, 12
        %v1832 = vpop.permute.xlu0 %1831
        %1833 = vrot.lane.b32.xlu0 %v1826, 12
        %v1834 = vpop.permute.xlu0 %1833
        %v1835 = vsel %vm625, %v1828, %v1816
        %v1836 = vsel %vm625, %v1830, %v1819
        %v1837 = vsel %vm625, %v1832, %v1822
        %v1838 = vsel %vm625, %v1834, %v1825
        %1847 = vrot.lane.b32.xlu0 %v1817, 118
        %v1848 = vpop.permute.xlu0 %1847
        %1849 = vrot.lane.b32.xlu0 %v1835, 118
        %v1850 = vpop.permute.xlu0 %1849
        %1851 = vrot.lane.b32.xlu0 %v1820, 118
        %v1852 = vpop.permute.xlu0 %1851
        %1853 = vrot.lane.b32.xlu0 %v1836, 118
        %v1854 = vpop.permute.xlu0 %1853
        %1855 = vrot.lane.b32.xlu0 %v1823, 118
        %v1856 = vpop.permute.xlu0 %1855
        %1857 = vrot.lane.b32.xlu0 %v1837, 118
        %v1858 = vpop.permute.xlu0 %1857
        %1859 = vrot.lane.b32.xlu0 %v1826, 118
        %v1860 = vpop.permute.xlu0 %1859
        %1861 = vrot.lane.b32.xlu0 %v1838, 118
        %v1862 = vpop.permute.xlu0 %1861
        %v1863 = vsel %vm678, %v1848, %v1850
        %v1864 = vsel %vm678, %v1852, %v1854
        %v1865 = vsel %vm678, %v1856, %v1858
        %v1866 = vsel %vm678, %v1860, %v1862
        %v1875 = vsel %vm652, %v1863, 0.0
        %v1876 = vsel %vm653, %v1850, 0.0
        %v1877 = vsel %vm652, %v1864, 0.0
        %v1878 = vsel %vm653, %v1854, 0.0
        %v1879 = vsel %vm652, %v1865, 0.0
        %v1880 = vsel %vm653, %v1858, 0.0
        %v1881 = vsel %vm652, %v1866, 0.0
        %v1882 = vsel %vm653, %v1862, 0.0
        %1887 = vrot.lane.b32.xlu0 %v1807, 126
        %v1888 = vpop.permute.xlu0 %1887
        %1889 = vrot.lane.b32.xlu0 %v1817, 126
        %v1890 = vpop.permute.xlu0 %1889
        %1891 = vrot.lane.b32.xlu0 %v1809, 126
        %v1892 = vpop.permute.xlu0 %1891
        %1893 = vrot.lane.b32.xlu0 %v1820, 126
        %v1894 = vpop.permute.xlu0 %1893
        %1895 = vrot.lane.b32.xlu0 %v1811, 126
        %v1896 = vpop.permute.xlu0 %1895
        %1897 = vrot.lane.b32.xlu0 %v1823, 126
        %v1898 = vpop.permute.xlu0 %1897
        %1899 = vrot.lane.b32.xlu0 %v1813, 126
        %v1900 = vpop.permute.xlu0 %1899
        %1901 = vrot.lane.b32.xlu0 %v1826, 126
        %v1902 = vpop.permute.xlu0 %1901
        %v1903 = vsel %vm723, %v1888, %v1890
        %v1904 = vsel %vm723, %v1892, %v1894
        %v1905 = vsel %vm723, %v1896, %v1898
        %v1906 = vsel %vm723, %v1900, %v1902
        %v1915 = vsel %vm701, %v1903, 0.0
        %v1916 = vsel %vm702, %v1890, 0.0
        %v1917 = vsel %vm701, %v1904, 0.0
        %v1918 = vsel %vm702, %v1894, 0.0
        %v1919 = vsel %vm701, %v1905, 0.0
        %v1920 = vsel %vm702, %v1898, 0.0
        %v1921 = vsel %vm701, %v1906, 0.0
        %v1922 = vsel %vm702, %v1902, 0.0
        %s1923 = scalar_lea.vmem %s4, 96
        %v1924 = vld [vmem:[%s1923] sm:$0xf]
        %v1925 = vld [vmem:[%s1923 + $0x4] sm:$0xf]
        %v1926 = vld [vmem:[%s1923 + $0x8] sm:$0xf]
        %v1927 = vld [vmem:[%s1923 + $0xc] sm:$0xf]
        %v1928 = vpack.c.bf16 %v1877, %v1875
        %v1929 = vpack.c.bf16 %v1878, %v1876
        %v1930 = vpack.c.bf16 %v1881, %v1879
        %v1931 = vpack.c.bf16 %v1882, %v1880
        %s1932 = scalar_lea.vmem %s4, 112
        %v1933 = vld [vmem:[%s1932] sm:$0xf]
        %v1934 = vld [vmem:[%s1932 + $0x4] sm:$0xf]
        %v1935 = vld [vmem:[%s1932 + $0x8] sm:$0xf]
        %v1936 = vld [vmem:[%s1932 + $0xc] sm:$0xf]
        %v1937 = vpack.c.bf16 %v1809, %v1807
        %v1938 = vpack.c.bf16 %v1810, %v1808
        %v1939 = vpack.c.bf16 %v1813, %v1811
        %v1940 = vpack.c.bf16 %v1814, %v1812
        %v1945 = vunpack.c.l.b16 %v1933
        %v1946 = vunpack.c.l.b16 %v1934
        %v1947 = vunpack.c.l.b16 %v1935
        %v1948 = vunpack.c.l.b16 %v1936
        %v1949 = vpack.c.b16 %v1946, %v1945
        %v1950 = vpack.c.b16 %v1948, %v1947
        %v1952 = vsel %vm771, %v1949, 0
        %v1955 = vsel %vm771, %v1950, 0
        %1957 = vmatprep.subr.bf16.mxu0 %v1938
        %1958 = vmatpush1.bf16.msra.mxu0 %v1937
        %1959 = vmatprep.subr.bf16.mxu0 %v1940
        %1960 = vmatpush1.bf16.msra.mxu0 %v1939
        %1961 = vmatprep.subr.bf16.mxu0 0
        %1962 = vmatpush1.bf16.msra.mxu0 0
        %1963 = vmatprep.subr.bf16.mxu0 0
        %1964 = vmatpush1.bf16.msra.mxu0 0
        %1965 = vmatprep.subr.bf16.mxu0 0
        %1966 = vmatpush1.bf16.msra.mxu0 0
        %1967 = vmatprep.subr.bf16.mxu0 0
        %1968 = vmatpush1.bf16.msra.mxu0 0
        %1969 = vmatprep.subr.bf16.mxu0 0
        %1970 = vmatpush1.bf16.msra.mxu0 0
        %1971 = vmatprep.subr.bf16.mxu0 0
        %1972 = vmatpush1.bf16.msra.mxu0 0
        %1973 = vmatprep.subr.bf16.mxu0 0
        %1974 = vmatpush1.bf16.msra.mxu0 0
        %1975 = vmatprep.subr.bf16.mxu0 0
        %1976 = vmatpush1.bf16.msra.mxu0 0
        %1977 = vmatprep.subr.bf16.mxu0 0
        %1978 = vmatpush1.bf16.msra.mxu0 0
        %1979 = vmatprep.subr.bf16.mxu0 0
        %1980 = vmatpush1.bf16.msra.mxu0 0
        %1981 = vmatprep.subr.bf16.mxu0 0
        %1982 = vmatpush1.bf16.msra.mxu0 0
        %1983 = vmatprep.subr.bf16.mxu0 0
        %1984 = vmatpush1.bf16.msra.mxu0 0
        %1985 = vmatprep.subr.bf16.mxu0 0
        %1986 = vmatpush1.bf16.msra.mxu0 0
        %1987 = vmatprep.subr.bf16.mxu0 0
        %1988 = vmatpush1.bf16.msra.mxu0 0
        %1989 = vmatprep.mubr.bf16.mxu0 0
        %1990 = vmatmul.mubr.bf16.gmra.mrb[0].mxu0 %v1952
        %v1991 = vpop.f32.mrb[0].mxu0
        %v1992 = vadd.f32 0.0, %v1991
        %v1993 = vpop.f32.mrb[0].mxu0
        %v1994 = vadd.f32 0.0, %v1993
        %v1995 = vpop.f32.mrb[0].mxu0
        %v1996 = vadd.f32 0.0, %v1995
        %v1997 = vpop.f32.mrb[0].mxu0
        %v1998 = vadd.f32 0.0, %v1997
        %1999 = vmatprep.mubr.bf16.mxu0 0
        %2000 = vmatmul.mubr.bf16.gmra.mrb[0].mxu0 %v1955
        %v2001 = vpop.f32.mrb[0].mxu0
        %v2002 = vadd.f32 0.0, %v2001
        %v2003 = vpop.f32.mrb[0].mxu0
        %v2004 = vadd.f32 0.0, %v2003
        %v2005 = vpop.f32.mrb[0].mxu0
        %v2006 = vadd.f32 0.0, %v2005
        %v2007 = vpop.f32.mrb[0].mxu0
        %v2008 = vadd.f32 0.0, %v2007
        %2009 = vdwg.mxu0
        %v2014 = vunpack.c.l.b16 %v1924
        %v2015 = vunpack.c.l.b16 %v1925
        %v2016 = vunpack.c.l.b16 %v1926
        %v2017 = vunpack.c.l.b16 %v1927
        %v2018 = vpack.c.b16 %v2015, %v2014
        %v2019 = vpack.c.b16 %v2017, %v2016
        %v2021 = vsel %vm771, %v2018, 0
        %v2024 = vsel %vm771, %v2019, 0
        %2026 = vmatprep.subr.bf16.mxu0 %v1929
        %2027 = vmatpush1.bf16.msra.mxu0 %v1928
        %2028 = vmatprep.subr.bf16.mxu0 %v1931
        %2029 = vmatpush1.bf16.msra.mxu0 %v1930
        %2030 = vmatprep.subr.bf16.mxu0 0
        %2031 = vmatpush1.bf16.msra.mxu0 0
        %2032 = vmatprep.subr.bf16.mxu0 0
        %2033 = vmatpush1.bf16.msra.mxu0 0
        %2034 = vmatprep.subr.bf16.mxu0 0
        %2035 = vmatpush1.bf16.msra.mxu0 0
        %2036 = vmatprep.subr.bf16.mxu0 0
        %2037 = vmatpush1.bf16.msra.mxu0 0
        %2038 = vmatprep.subr.bf16.mxu0 0
        %2039 = vmatpush1.bf16.msra.mxu0 0
        %2040 = vmatprep.subr.bf16.mxu0 0
        %2041 = vmatpush1.bf16.msra.mxu0 0
        %2042 = vmatprep.subr.bf16.mxu0 0
        %2043 = vmatpush1.bf16.msra.mxu0 0
        %2044 = vmatprep.subr.bf16.mxu0 0
        %2045 = vmatpush1.bf16.msra.mxu0 0
        %2046 = vmatprep.subr.bf16.mxu0 0
        %2047 = vmatpush1.bf16.msra.mxu0 0
        %2048 = vmatprep.subr.bf16.mxu0 0
        %2049 = vmatpush1.bf16.msra.mxu0 0
        %2050 = vmatprep.subr.bf16.mxu0 0
        %2051 = vmatpush1.bf16.msra.mxu0 0
        %2052 = vmatprep.subr.bf16.mxu0 0
        %2053 = vmatpush1.bf16.msra.mxu0 0
        %2054 = vmatprep.subr.bf16.mxu0 0
        %2055 = vmatpush1.bf16.msra.mxu0 0
        %2056 = vmatprep.subr.bf16.mxu0 0
        %2057 = vmatpush1.bf16.msra.mxu0 0
        %2058 = vmatprep.mubr.bf16.mxu0 0
        %2059 = vmatmul.mubr.bf16.gmra.mrb[0].mxu0 %v2021
        %v2060 = vpop.f32.mrb[0].mxu0
        %v2061 = vadd.f32 %v1992, %v2060
        %v2062 = vpop.f32.mrb[0].mxu0
        %v2063 = vadd.f32 %v1994, %v2062
        %v2064 = vpop.f32.mrb[0].mxu0
        %v2065 = vadd.f32 %v1996, %v2064
        %v2066 = vpop.f32.mrb[0].mxu0
        %v2067 = vadd.f32 %v1998, %v2066
        %2068 = vmatprep.mubr.bf16.mxu0 0
        %2069 = vmatmul.mubr.bf16.gmra.mrb[0].mxu0 %v2024
        %v2070 = vpop.f32.mrb[0].mxu0
        %v2071 = vadd.f32 %v2002, %v2070
        %v2072 = vpop.f32.mrb[0].mxu0
        %v2073 = vadd.f32 %v2004, %v2072
        %v2074 = vpop.f32.mrb[0].mxu0
        %v2075 = vadd.f32 %v2006, %v2074
        %v2076 = vpop.f32.mrb[0].mxu0
        %v2077 = vadd.f32 %v2008, %v2076
        %2078 = vdwg.mxu0
        %s2079 = scalar_lea.vmem %s4, 128
        %v2080 = vld [vmem:[%s2079] sm:$0xf]
        %v2081 = vld [vmem:[%s2079 + $0x4] sm:$0xf]
        %v2082 = vld [vmem:[%s2079 + $0x8] sm:$0xf]
        %v2083 = vld [vmem:[%s2079 + $0xc] sm:$0xf]
        %v2084 = vpack.c.bf16 %v1917, %v1915
        %v2085 = vpack.c.bf16 %v1918, %v1916
        %v2086 = vpack.c.bf16 %v1921, %v1919
        %v2087 = vpack.c.bf16 %v1922, %v1920
        %v2092 = vunpack.c.l.b16 %v2080
        %v2093 = vunpack.c.l.b16 %v2081
        %v2094 = vunpack.c.l.b16 %v2082
        %v2095 = vunpack.c.l.b16 %v2083
        %v2096 = vpack.c.b16 %v2093, %v2092
        %v2097 = vpack.c.b16 %v2095, %v2094
        %v2099 = vsel %vm771, %v2096, 0
        %v2102 = vsel %vm771, %v2097, 0
        %2104 = vmatprep.subr.bf16.mxu0 %v2085
        %2105 = vmatpush1.bf16.msra.mxu0 %v2084
        %2106 = vmatprep.subr.bf16.mxu0 %v2087
        %2107 = vmatpush1.bf16.msra.mxu0 %v2086
        %2108 = vmatprep.subr.bf16.mxu0 0
        %2109 = vmatpush1.bf16.msra.mxu0 0
        %2110 = vmatprep.subr.bf16.mxu0 0
        %2111 = vmatpush1.bf16.msra.mxu0 0
        %2112 = vmatprep.subr.bf16.mxu0 0
        %2113 = vmatpush1.bf16.msra.mxu0 0
        %2114 = vmatprep.subr.bf16.mxu0 0
        %2115 = vmatpush1.bf16.msra.mxu0 0
        %2116 = vmatprep.subr.bf16.mxu0 0
        %2117 = vmatpush1.bf16.msra.mxu0 0
        %2118 = vmatprep.subr.bf16.mxu0 0
        %2119 = vmatpush1.bf16.msra.mxu0 0
        %2120 = vmatprep.subr.bf16.mxu0 0
        %2121 = vmatpush1.bf16.msra.mxu0 0
        %2122 = vmatprep.subr.bf16.mxu0 0
        %2123 = vmatpush1.bf16.msra.mxu0 0
        %2124 = vmatprep.subr.bf16.mxu0 0
        %2125 = vmatpush1.bf16.msra.mxu0 0
        %2126 = vmatprep.subr.bf16.mxu0 0
        %2127 = vmatpush1.bf16.msra.mxu0 0
        %2128 = vmatprep.subr.bf16.mxu0 0
        %2129 = vmatpush1.bf16.msra.mxu0 0
        %2130 = vmatprep.subr.bf16.mxu0 0
        %2131 = vmatpush1.bf16.msra.mxu0 0
        %2132 = vmatprep.subr.bf16.mxu0 0
        %2133 = vmatpush1.bf16.msra.mxu0 0
        %2134 = vmatprep.subr.bf16.mxu0 0
        %2135 = vmatpush1.bf16.msra.mxu0 0
        %2136 = vmatprep.mubr.bf16.mxu0 0
        %2137 = vmatmul.mubr.bf16.gmra.mrb[0].mxu0 %v2099
        %v2138 = vpop.f32.mrb[0].mxu0
        %v2139 = vadd.f32 0.0, %v2138
        %v2140 = vpop.f32.mrb[0].mxu0
        %v2141 = vadd.f32 0.0, %v2140
        %v2142 = vpop.f32.mrb[0].mxu0
        %v2143 = vadd.f32 0.0, %v2142
        %v2144 = vpop.f32.mrb[0].mxu0
        %v2145 = vadd.f32 0.0, %v2144
        %2146 = vmatprep.mubr.bf16.mxu0 0
        %2147 = vmatmul.mubr.bf16.gmra.mrb[0].mxu0 %v2102
        %v2148 = vpop.f32.mrb[0].mxu0
        %v2149 = vadd.f32 0.0, %v2148
        %v2150 = vpop.f32.mrb[0].mxu0
        %v2151 = vadd.f32 0.0, %v2150
        %v2152 = vpop.f32.mrb[0].mxu0
        %v2153 = vadd.f32 0.0, %v2152
        %v2154 = vpop.f32.mrb[0].mxu0
        %v2155 = vadd.f32 0.0, %v2154
        %2156 = vdwg.mxu0
        %v2157 = vadd.f32 %v2061, %v2139
        %v2158 = vadd.f32 %v2063, %v2141
        %v2159 = vadd.f32 %v2065, %v2143
        %v2160 = vadd.f32 %v2067, %v2145
        %v2161 = vadd.f32 %v2071, %v2149
        %v2162 = vadd.f32 %v2073, %v2151
        %v2163 = vadd.f32 %v2075, %v2153
        %v2164 = vadd.f32 %v2077, %v2155
        %s2165 = scalar_lea.vmem %s5, 64
        %v2166 = vld [vmem:[%s2165] sm:$0xff]
        %v2167 = vld [vmem:[%s2165 + $0x8] sm:$0xff]
        %v2168 = vld [vmem:[%s2165 + $0x10] sm:$0xff]
        %v2169 = vld [vmem:[%s2165 + $0x18] sm:$0xff]
        %2171 = vset.pattern.permute.xlu0 0
        %2172 = vperm.xlu0 %2171, %v2166
        %v2173 = vpop.permute.xlu0 %2172
        %2176 = vset.pattern.permute.xlu0 0
        %2177 = vperm.xlu0 %2176, %v2167
        %v2178 = vpop.permute.xlu0 %2177
        %2181 = vset.pattern.permute.xlu0 0
        %2182 = vperm.xlu0 %2181, %v2168
        %v2183 = vpop.permute.xlu0 %2182
        %2186 = vset.pattern.permute.xlu0 0
        %2187 = vperm.xlu0 %2186, %v2169
        %v2188 = vpop.permute.xlu0 %2187
        %v2190 = vadd.f32 %v2157, %v2173
        %v2191 = vadd.f32 %v2158, %v2173
        %v2192 = vadd.f32 %v2159, %v2178
        %v2193 = vadd.f32 %v2160, %v2178
        %v2194 = vadd.f32 %v2161, %v2183
        %v2195 = vadd.f32 %v2162, %v2183
        %v2196 = vadd.f32 %v2163, %v2188
        %v2197 = vadd.f32 %v2164, %v2188
        %v2198 = vmax.f32 %v2190, 0.0
        %v2199 = vmax.f32 %v2191, 0.0
        %v2200 = vmax.f32 %v2192, 0.0
        %v2201 = vmax.f32 %v2193, 0.0
        %v2202 = vmax.f32 %v2194, 0.0
        %v2203 = vmax.f32 %v2195, 0.0
        %v2204 = vmax.f32 %v2196, 0.0
        %v2205 = vmax.f32 %v2197, 0.0
        %s2206 = scalar_lea.vmem %s6, 32
        %v2207 = vld [vmem:[%s2206] sm:$0xf]
        %v2208 = vld [vmem:[%s2206 + $0x4] sm:$0xf]
        %v2209 = vld [vmem:[%s2206 + $0x8] sm:$0xf]
        %v2210 = vld [vmem:[%s2206 + $0xc] sm:$0xf]
        %v2211 = vpack.c.bf16 %v2200, %v2198
        %v2212 = vpack.c.bf16 %v2201, %v2199
        %v2213 = vpack.c.bf16 %v2204, %v2202
        %v2214 = vpack.c.bf16 %v2205, %v2203
        %s2215 = scalar_lea.vmem %s7, 64
        %v2216 = vld [vmem:[%s2215] sm:$0xff]
        %v2217 = vld [vmem:[%s2215 + $0x8] sm:$0xff]
        %v2218 = vld [vmem:[%s2215 + $0x10] sm:$0xff]
        %v2219 = vld [vmem:[%s2215 + $0x18] sm:$0xff]
        %2221 = vset.pattern.permute.xlu0 0
        %2222 = vperm.xlu0 %2221, %v2216
        %v2223 = vpop.permute.xlu0 %2222
        %2226 = vset.pattern.permute.xlu0 0
        %2227 = vperm.xlu0 %2226, %v2217
        %v2228 = vpop.permute.xlu0 %2227
        %2231 = vset.pattern.permute.xlu0 0
        %2232 = vperm.xlu0 %2231, %v2218
        %v2233 = vpop.permute.xlu0 %2232
        %2236 = vset.pattern.permute.xlu0 0
        %2237 = vperm.xlu0 %2236, %v2219
        %v2238 = vpop.permute.xlu0 %2237
        %v2244 = vunpack.c.l.b16 %v2207
        %v2245 = vunpack.c.l.b16 %v2208
        %v2246 = vunpack.c.l.b16 %v2209
        %v2247 = vunpack.c.l.b16 %v2210
        %v2248 = vpack.c.b16 %v2245, %v2244
        %v2249 = vpack.c.b16 %v2247, %v2246
        %v2251 = vsel %vm771, %v2248, 0
        %v2254 = vsel %vm771, %v2249, 0
        %2256 = vmatprep.subr.bf16.mxu0 %v2212
        %2257 = vmatpush1.bf16.msra.mxu0 %v2211
        %2258 = vmatprep.subr.bf16.mxu0 %v2214
        %2259 = vmatpush1.bf16.msra.mxu0 %v2213
        %2260 = vmatprep.subr.bf16.mxu0 0
        %2261 = vmatpush1.bf16.msra.mxu0 0
        %2262 = vmatprep.subr.bf16.mxu0 0
        %2263 = vmatpush1.bf16.msra.mxu0 0
        %2264 = vmatprep.subr.bf16.mxu0 0
        %2265 = vmatpush1.bf16.msra.mxu0 0
        %2266 = vmatprep.subr.bf16.mxu0 0
        %2267 = vmatpush1.bf16.msra.mxu0 0
        %2268 = vmatprep.subr.bf16.mxu0 0
        %2269 = vmatpush1.bf16.msra.mxu0 0
        %2270 = vmatprep.subr.bf16.mxu0 0
        %2271 = vmatpush1.bf16.msra.mxu0 0
        %2272 = vmatprep.subr.bf16.mxu0 0
        %2273 = vmatpush1.bf16.msra.mxu0 0
        %2274 = vmatprep.subr.bf16.mxu0 0
        %2275 = vmatpush1.bf16.msra.mxu0 0
        %2276 = vmatprep.subr.bf16.mxu0 0
        %2277 = vmatpush1.bf16.msra.mxu0 0
        %2278 = vmatprep.subr.bf16.mxu0 0
        %2279 = vmatpush1.bf16.msra.mxu0 0
        %2280 = vmatprep.subr.bf16.mxu0 0
        %2281 = vmatpush1.bf16.msra.mxu0 0
        %2282 = vmatprep.subr.bf16.mxu0 0
        %2283 = vmatpush1.bf16.msra.mxu0 0
        %2284 = vmatprep.subr.bf16.mxu0 0
        %2285 = vmatpush1.bf16.msra.mxu0 0
        %2286 = vmatprep.subr.bf16.mxu0 0
        %2287 = vmatpush1.bf16.msra.mxu0 0
        %2288 = vmatprep.mubr.bf16.mxu0 0
        %2289 = vmatmul.mubr.bf16.gmra.mrb[0].mxu0 %v2251
        %v2290 = vpop.f32.mrb[0].mxu0
        %v2291 = vadd.f32 %v2223, %v2290
        %v2292 = vpop.f32.mrb[0].mxu0
        %v2293 = vadd.f32 %v2223, %v2292
        %v2294 = vpop.f32.mrb[0].mxu0
        %v2295 = vadd.f32 %v2228, %v2294
        %v2296 = vpop.f32.mrb[0].mxu0
        %v2297 = vadd.f32 %v2228, %v2296
        %2298 = vmatprep.mubr.bf16.mxu0 0
        %2299 = vmatmul.mubr.bf16.gmra.mrb[0].mxu0 %v2254
        %v2300 = vpop.f32.mrb[0].mxu0
        %v2301 = vadd.f32 %v2233, %v2300
        %v2302 = vpop.f32.mrb[0].mxu0
        %v2303 = vadd.f32 %v2233, %v2302
        %v2304 = vpop.f32.mrb[0].mxu0
        %v2305 = vadd.f32 %v2238, %v2304
        %v2306 = vpop.f32.mrb[0].mxu0
        %v2307 = vadd.f32 %v2238, %v2306
        %2308 = vdwg.mxu0
        %v2309 = vmul.f32 %v2291, 0.2
        %v2310 = vmul.f32 %v2293, 0.2
        %v2311 = vmul.f32 %v2295, 0.2
        %v2312 = vmul.f32 %v2297, 0.2
        %v2313 = vmul.f32 %v2301, 0.2
        %v2314 = vmul.f32 %v2303, 0.2
        %v2315 = vmul.f32 %v2305, 0.2
        %v2316 = vmul.f32 %v2307, 0.2
        %v2317 = vmax.f32 %v2291, %v2309
        %v2318 = vmax.f32 %v2293, %v2310
        %v2319 = vmax.f32 %v2295, %v2311
        %v2320 = vmax.f32 %v2297, %v2312
        %v2321 = vmax.f32 %v2301, %v2313
        %v2322 = vmax.f32 %v2303, %v2314
        %v2323 = vmax.f32 %v2305, %v2315
        %v2324 = vmax.f32 %v2307, %v2316
        %s2325 = scalar_lea.vmem %s8, 64
        %v2326 = vld [vmem:[%s2325] sm:$0xff]
        %v2327 = vld [vmem:[%s2325 + $0x8] sm:$0xff]
        %v2328 = vld [vmem:[%s2325 + $0x10] sm:$0xff]
        %v2329 = vld [vmem:[%s2325 + $0x18] sm:$0xff]
        %2331 = vset.pattern.permute.xlu0 0
        %2332 = vperm.xlu0 %2331, %v2326
        %v2333 = vpop.permute.xlu0 %2332
        %2336 = vset.pattern.permute.xlu0 0
        %2337 = vperm.xlu0 %2336, %v2327
        %v2338 = vpop.permute.xlu0 %2337
        %2341 = vset.pattern.permute.xlu0 0
        %2342 = vperm.xlu0 %2341, %v2328
        %v2343 = vpop.permute.xlu0 %2342
        %2346 = vset.pattern.permute.xlu0 0
        %2347 = vperm.xlu0 %2346, %v2329
        %v2348 = vpop.permute.xlu0 %2347
        %v2350 = vmul.f32 %v2317, %v2333
        %v2351 = vmul.f32 %v2318, %v2333
        %v2352 = vmul.f32 %v2319, %v2338
        %v2353 = vmul.f32 %v2320, %v2338
        %v2354 = vmul.f32 %v2321, %v2343
        %v2355 = vmul.f32 %v2322, %v2343
        %v2356 = vmul.f32 %v2323, %v2348
        %v2357 = vmul.f32 %v2324, %v2348
        %s2358 = scalar_lea.vmem %s9, 64
        %v2359 = vld [vmem:[%s2358] sm:$0xff]
        %v2360 = vld [vmem:[%s2358 + $0x8] sm:$0xff]
        %v2361 = vld [vmem:[%s2358 + $0x10] sm:$0xff]
        %v2362 = vld [vmem:[%s2358 + $0x18] sm:$0xff]
        %2364 = vset.pattern.permute.xlu0 0
        %2365 = vperm.xlu0 %2364, %v2359
        %v2366 = vpop.permute.xlu0 %2365
        %2369 = vset.pattern.permute.xlu0 0
        %2370 = vperm.xlu0 %2369, %v2360
        %v2371 = vpop.permute.xlu0 %2370
        %2374 = vset.pattern.permute.xlu0 0
        %2375 = vperm.xlu0 %2374, %v2361
        %v2376 = vpop.permute.xlu0 %2375
        %2379 = vset.pattern.permute.xlu0 0
        %2380 = vperm.xlu0 %2379, %v2362
        %v2381 = vpop.permute.xlu0 %2380
        %v2383 = vadd.f32 %v2350, %v2366
        %v2384 = vadd.f32 %v2351, %v2366
        %v2385 = vadd.f32 %v2352, %v2371
        %v2386 = vadd.f32 %v2353, %v2371
        %v2387 = vadd.f32 %v2354, %v2376
        %v2388 = vadd.f32 %v2355, %v2376
        %v2389 = vadd.f32 %v2356, %v2381
        %v2390 = vadd.f32 %v2357, %v2381
        %v2391 = vadd.f32 %v1807, %v2383
        %v2392 = vadd.f32 %v1808, %v2384
        %v2393 = vadd.f32 %v1809, %v2385
        %v2394 = vadd.f32 %v1810, %v2386
        %v2395 = vadd.f32 %v1811, %v2387
        %v2396 = vadd.f32 %v1812, %v2388
        %v2397 = vadd.f32 %v1813, %v2389
        %v2398 = vadd.f32 %v1814, %v2390
        %v2399 = vmul.f32 %v2391, %v496
        %v2400 = vmul.f32 %v2392, %v500
        %v2401 = vmul.f32 %v2393, %v496
        %v2402 = vmul.f32 %v2394, %v500
        %v2403 = vmul.f32 %v2395, %v496
        %v2404 = vmul.f32 %v2396, %v500
        %v2405 = vmul.f32 %v2397, %v496
        %v2406 = vmul.f32 %v2398, %v500
        %v2407 = vld [vmem:[%s10] sm:$0xf]
        %v2408 = vpack.c.bf16 %v2401, %v2399
        %v2409 = vpack.c.bf16 %v2402, %v2400
        %v2410 = vpack.c.bf16 %v2405, %v2403
        %v2411 = vpack.c.bf16 %v2406, %v2404
        %v2412 = vld [vmem:[%s11] sm:$0xff]
        %2414 = vset.pattern.permute.xlu0 0
        %2415 = vperm.xlu0 %2414, %v2412
        %v2416 = vpop.permute.xlu0 %2415
        %v2419 = vsel %vm771, %v2407, 0
        %2421 = vmatprep.subr.bf16.mxu0 %v2409
        %2422 = vmatpush1.bf16.msra.mxu0 %v2408
        %2423 = vmatprep.subr.bf16.mxu0 %v2411
        %2424 = vmatpush1.bf16.msra.mxu0 %v2410
        %2425 = vmatprep.subr.bf16.mxu0 0
        %2426 = vmatpush1.bf16.msra.mxu0 0
        %2427 = vmatprep.subr.bf16.mxu0 0
        %2428 = vmatpush1.bf16.msra.mxu0 0
        %2429 = vmatprep.subr.bf16.mxu0 0
        %2430 = vmatpush1.bf16.msra.mxu0 0
        %2431 = vmatprep.subr.bf16.mxu0 0
        %2432 = vmatpush1.bf16.msra.mxu0 0
        %2433 = vmatprep.subr.bf16.mxu0 0
        %2434 = vmatpush1.bf16.msra.mxu0 0
        %2435 = vmatprep.subr.bf16.mxu0 0
        %2436 = vmatpush1.bf16.msra.mxu0 0
        %2437 = vmatprep.subr.bf16.mxu0 0
        %2438 = vmatpush1.bf16.msra.mxu0 0
        %2439 = vmatprep.subr.bf16.mxu0 0
        %2440 = vmatpush1.bf16.msra.mxu0 0
        %2441 = vmatprep.subr.bf16.mxu0 0
        %2442 = vmatpush1.bf16.msra.mxu0 0
        %2443 = vmatprep.subr.bf16.mxu0 0
        %2444 = vmatpush1.bf16.msra.mxu0 0
        %2445 = vmatprep.subr.bf16.mxu0 0
        %2446 = vmatpush1.bf16.msra.mxu0 0
        %2447 = vmatprep.subr.bf16.mxu0 0
        %2448 = vmatpush1.bf16.msra.mxu0 0
        %2449 = vmatprep.subr.bf16.mxu0 0
        %2450 = vmatpush1.bf16.msra.mxu0 0
        %2451 = vmatprep.subr.bf16.mxu0 0
        %2452 = vmatpush1.bf16.msra.mxu0 0
        %2453 = vmatprep.mubr.bf16.mxu0 0
        %2454 = vmatmul.mubr.bf16.gmra.mrb[0].mxu0 %v2419
        %v2455 = vpop.f32.mrb[0].mxu0
        %v2456 = vadd.f32 %v2416, %v2455
        %v2457 = vpop.f32.mrb[0].mxu0
        %v2458 = vadd.f32 %v2416, %v2457
        %v2459 = vpop.f32.mrb[0].mxu0
        %v2460 = vpop.f32.mrb[0].mxu0
        %2461 = vdwg.mxu0
        %v2462 = vmul.f32 %v2456, %v496
        %v2463 = vmul.f32 %v2458, %v500
        %2466 = vrot.lane.b32.xlu0 %v2462, 122
        %v2467 = vpop.permute.xlu0 %2466
        %2468 = vrot.lane.b32.xlu0 %v2463, 122
        %v2469 = vpop.permute.xlu0 %2468
        %vm2470 = vcmask 998400
        %v2471 = vsel %vm2470, %v2467, %v2469
        %2473 = vst [vmem:[%s453] sm:$0xff] %v2471
        %s2474 = sand.u32 %s314, 1
        %s2475 = scalar_lea.sflag [#allocation3], %s2474
        %s2476 = sand.u32 %s314, 1
        %s2477 = smul.addr %s2476, 8
        %s2478 = scalar_lea.vmem [#allocation2], %s2477
        // Predicated region
        $region69: #{tpu_custom_call.1} parent=67 // pred_check
          %p2479 = pneg %p324
        $region70: #{tpu_custom_call.1} parent=67 // pred_check_branch
          %2481 = sbr.rel (%p2479) target = $region72
        $region71: #{tpu_custom_call.1} parent=67 // pred_region
          %s2483 = ssub.s32 128, 128
          %2484 = vsyncadd %s2475, %s2483
          %s2485 = sadd.s32 %s31, %s30
          %s2486 = smul.addr %s2485, 128
          %s2487 = scalar_lea.hbm %s12, %s2486
          %s2489 = sshll.u32 %s2478, 4
          %s2490 = int_to_ptr.vmem [resolvable:$true] %s2489
          %2492 = dma.vmem_to_hbm [thread:$0]  %s2490, 128, %s2487, %s2475
        $region72: #{tpu_custom_call.1} parent=67 // pred_fallthru
          _
      $region68: #{tpu_custom_call.1} parent=5 // pred_fallthru
        _
      %p2493 = scmp.le.s32.totalorder 2, %s21
      // Predicated region
      $region73: #{tpu_custom_call.1} parent=5 // pred_check
        %p2494 = pneg %p2493
      $region74: #{tpu_custom_call.1} parent=5 // pred_check_branch
        %2496 = sbr.rel (%p2494) target = $region76
      $region75: #{tpu_custom_call.1} parent=5 // pred_region
        %s2497 = ssub.s32 %s21, 2
        // Predicated region
        $region77: #{tpu_custom_call.1} parent=75 // pred_check
          %p2498 = pneg %p330
        $region78: #{tpu_custom_call.1} parent=75 // pred_check_branch
          %2500 = sbr.rel (%p2498) target = $region80
        $region79: #{tpu_custom_call.1} parent=75 // pred_region
          %s2501 = sand.u32 %s315, 1
          %s2502 = scalar_lea.sflag [#allocation3], %s2501
          %s2503 = sand.u32 %s315, 1
          %s2504 = smul.addr %s2503, 8
          %s2505 = scalar_lea.vmem [#allocation2], %s2504
          %2506 = dma.done %s2502, 128
        $region80: #{tpu_custom_call.1} parent=75 // pred_fallthru
          _
      $region76: #{tpu_custom_call.1} parent=5 // pred_fallthru
        _
    $region6: #{tpu_custom_call.1} parent=1 // loop_footer
      %s25 = sadd.s32 1, %s21
    $region7: #{tpu_custom_call.1} parent=1 // loop_footer_branch
      %20 = sbr.rel target = $region3
    $region8: #{tpu_custom_call.1} parent=1 // loop_exit
      _
    %2507 = vsyncpa [#allocation3], 1
    %s2508 = scalar_lea.sflag [#allocation3], 1
    %2509 = vsyncpa %s2508, 1

</llo_original>
